<compile_context>
chip_gen: v6e
topology: v6e:2x2x1
jax: 0.10.0
libtpu: 0.0.40
codegen_flags: <defaults>
</compile_context>

<pallas_src>
import functools

import jax
import jax.numpy as jnp
from jax.experimental import pallas as pl
from jax.experimental.pallas import tpu as pltpu


def _round_up(n, m):
    return ((n + m - 1) // m) * m


def resblock_kernel(x_ref, w1_ref, b1_ref, w2_ref, b2_ref, out_ref, *, H, W, W2p):
    # x_ref  : (1, Hp, Wp, Cin)  input, zero-padded (real image at rows [2,2+H), cols [2,2+W)), f32
    # w1_ref : (Cin, 9*Cmid)     conv1 tap weights concatenated along N (t = kh*3+kw), bf16
    # b1_ref : (1, Cmid)         f32
    # w2_ref : (Cmid, 9*Cout)    conv2 tap weights concatenated along N, bf16
    # b2_ref : (1, Cout)         f32
    # out_ref: (1, H, W, Cout)
    _, Hp, Wp, Cin = x_ref.shape
    Cmid = b1_ref.shape[-1]
    Cout = b2_ref.shape[-1]
    H2 = H + 2                              # conv2 sees relu(conv1) zero-padded by 1

    x_pad = x_ref[0]                        # (Hp, Wp, Cin), original x (for residual)
    xr = jnp.maximum(x_pad, 0.0)            # relu(x); halo zeros stay zero

    # ---- conv1: ONE bf16 matmul against all 9 taps, then 9 shifted adds ----
    lhs1 = xr.reshape(Hp * Wp, Cin).astype(jnp.bfloat16)
    z1 = jnp.dot(lhs1, w1_ref[...], preferred_element_type=jnp.float32)
    z1 = z1.reshape(Hp, Wp, 9 * Cmid)       # z1[p,q, t*Cmid:(t+1)*Cmid] = relu(x)[p,q] @ w1[tap t]

    c1 = None                               # conv1 evaluated on the (H+2, W2p) pad-1 grid
    for t in range(9):
        kh, kw = divmod(t, 3)
        slab = z1[kh:kh + H2, kw:kw + W2p, t * Cmid:(t + 1) * Cmid]
        c1 = slab if c1 is None else c1 + slab
    c1 = c1 + b1_ref[...][None]             # single broadcast bias add

    # relu, then zero the 1-pixel padding ring (and the alignment columns >= W+1)
    row = jax.lax.broadcasted_iota(jnp.int32, (H2, W2p, Cmid), 0)
    col = jax.lax.broadcasted_iota(jnp.int32, (H2, W2p, Cmid), 1)
    interior = (row >= 1) & (row <= H) & (col >= 1) & (col <= W)
    r1p = jnp.where(interior, jnp.maximum(c1, 0.0), 0.0)   # == pad1(relu(conv1(relu(x))))

    # ---- conv2: ONE bf16 matmul against all 9 taps, then 9 shifted adds ----
    lhs2 = r1p.reshape(H2 * W2p, Cmid).astype(jnp.bfloat16)
    z2 = jnp.dot(lhs2, w2_ref[...], preferred_element_type=jnp.float32)
    z2 = z2.reshape(H2, W2p, 9 * Cout)

    r2 = None
    for t in range(9):
        kh, kw = divmod(t, 3)
        slab = z2[kh:kh + H, kw:kw + W, t * Cout:(t + 1) * Cout]
        r2 = slab if r2 is None else r2 + slab
    r2 = r2 + b2_ref[...][None]

    # ---- residual: original (un-relu'd) x + conv path ----
    out_ref[0] = (x_pad[2:2 + H, 2:2 + W, :] + r2).astype(out_ref.dtype)


def resblock_pallas(x_nchw, w1_oihw, b1, w2_oihw, b2):
    """ResBlock forward (downsample=None case). x_nchw: (B, C, H, W) float32."""
    B, C, H, W = x_nchw.shape
    Cmid = w1_oihw.shape[0]
    Cout = w2_oihw.shape[0]
    assert Cmid == C and Cout == C, "default ResBlock config: outdim == indim, stride == 1"
    # TODO(synk): downsample branch (outdim != indim or stride != 1) not implemented;
    # the default module config has self.downsample is None.

    # Spatial frame: pad by 2 so conv1 can be evaluated on conv2's pad-1 grid; round
    # widths up to multiples of 8 so all in-kernel reshapes stay sublane-aligned.
    W2p = _round_up(W + 2, 8)          # width of the pad-1 intermediate grid
    Wp = _round_up(W2p + 2, 8)         # width of the padded input frame
    Hp = H + 4

    x_nhwc = jnp.transpose(x_nchw, (0, 2, 3, 1)).astype(jnp.float32)
    x_pad = jnp.pad(x_nhwc, ((0, 0), (2, Hp - H - 2), (2, Wp - W - 2), (0, 0)))

    def pack_taps(w_oihw):
        # OIHW -> (Cin, 9*Cout): tap-major along N (t = kh*3 + kw), bf16 for the MXU.
        co, ci = w_oihw.shape[0], w_oihw.shape[1]
        w_hwio = jnp.transpose(w_oihw, (2, 3, 1, 0)).reshape(9, ci, co)
        return jnp.transpose(w_hwio, (1, 0, 2)).reshape(ci, 9 * co).astype(jnp.bfloat16)

    w1_cat = pack_taps(w1_oihw)
    w2_cat = pack_taps(w2_oihw)
    b1_ = b1.reshape(1, Cmid).astype(jnp.float32)
    b2_ = b2.reshape(1, Cout).astype(jnp.float32)

    kernel = functools.partial(resblock_kernel, H=H, W=W, W2p=W2p)

    out_nhwc = pl.pallas_call(
        kernel,
        out_shape=jax.ShapeDtypeStruct((B, H, W, Cout), jnp.float32),
        grid=(B,),
        in_specs=[
            pl.BlockSpec((1, Hp, Wp, C), lambda b: (b, 0, 0, 0)),
            pl.BlockSpec((C, 9 * Cmid), lambda b: (0, 0)),
            pl.BlockSpec((1, Cmid), lambda b: (0, 0)),
            pl.BlockSpec((Cmid, 9 * Cout), lambda b: (0, 0)),
            pl.BlockSpec((1, Cout), lambda b: (0, 0)),
        ],
        out_specs=pl.BlockSpec((1, H, W, Cout), lambda b: (b, 0, 0, 0)),
        compiler_params=pltpu.CompilerParams(
            dimension_semantics=("parallel",),       # batch elems independent (v7x 2 TCs)
            vmem_limit_bytes=32 * 1024 * 1024,
        ),
    )(x_pad, w1_cat, b1_, w2_cat, b2_)

    return jnp.transpose(out_nhwc, (0, 3, 1, 2))     # back to NCHW


def resblock_ref(x_nchw, w1_oihw, b1, w2_oihw, b2):
    """Pure-JAX f32 reference matching the PyTorch forward exactly."""
    def conv(x, w, b):
        y = jax.lax.conv_general_dilated(
            x, w, window_strides=(1, 1), padding=((1, 1), (1, 1)),
            dimension_numbers=("NCHW", "OIHW", "NCHW"))
        return y + b[None, :, None, None]

    r = conv(jax.nn.relu(x_nchw), w1_oihw, b1)
    r = conv(jax.nn.relu(r), w2_oihw, b2)
    return x_nchw + r


if __name__ == "__main__":
    B, C, H, W = 2, 4, 16, 16
    key = jax.random.PRNGKey(0)
    kx, k1, k2, k3, k4 = jax.random.split(key, 5)

    x = jax.random.normal(kx, (B, C, H, W), jnp.float32)

    # deterministic conv param init (PyTorch-style uniform bound)
    fan_in = C * 3 * 3
    bound = 1.0 / (fan_in ** 0.5)
    w1 = jax.random.uniform(k1, (C, C, 3, 3), jnp.float32, -bound, bound)  # OIHW
    b1 = jax.random.uniform(k2, (C,), jnp.float32, -bound, bound)
    w2 = jax.random.uniform(k3, (C, C, 3, 3), jnp.float32, -bound, bound)  # OIHW
    b2 = jax.random.uniform(k4, (C,), jnp.float32, -bound, bound)

    out = resblock_pallas(x, w1, b1, w2, b2)
    out = jax.block_until_ready(out)

    ref = resblock_ref(x, w1, b1, w2, b2)
    max_err = float(jnp.max(jnp.abs(out - ref)))
    # Tolerance loosened vs f32: matmul operands are cast to bf16 (MXU-native) while
    # accumulation stays f32.
    assert jnp.allclose(out, ref, atol=2e-2, rtol=2e-2), f"max_err={max_err}"

    print("KERNEL_OK")
</pallas_src>

<mosaic_0001>
module attributes {stable_mosaic.version = 11 : i64} {
  func.func @resblock_kernel(%arg0: i32, %arg1: memref<1x20x32x4xf32, #tpu.memory_space<vmem>>, %arg2: memref<4x36xbf16, #tpu.memory_space<vmem>>, %arg3: memref<1x4xf32, #tpu.memory_space<vmem>>, %arg4: memref<4x36xbf16, #tpu.memory_space<vmem>>, %arg5: memref<1x4xf32, #tpu.memory_space<vmem>>, %arg6: memref<1x16x16x4xf32, #tpu.memory_space<vmem>>) attributes {dimension_semantics = [#tpu.dimension_semantics<parallel>], iteration_bounds = array<i64: 2>, scalar_prefetch = 0 : i64, scratch_operands = 0 : i64, tpu.core_type = #tpu.core_type<tc>, window_params = [{transform_indices = @transform_0, window_bounds = array<i64: 1, 20, 32, 4>}, {pipeline_mode = #tpu.pipeline_mode<synchronous>, transform_indices = @transform_1, window_bounds = array<i64: 4, 36>}, {pipeline_mode = #tpu.pipeline_mode<synchronous>, transform_indices = @transform_2, window_bounds = array<i64: 1, 4>}, {pipeline_mode = #tpu.pipeline_mode<synchronous>, transform_indices = @transform_3, window_bounds = array<i64: 4, 36>}, {pipeline_mode = #tpu.pipeline_mode<synchronous>, transform_indices = @transform_4, window_bounds = array<i64: 1, 4>}, {transform_indices = @transform_5, window_bounds = array<i64: 1, 16, 16, 4>}]} {
    %c0 = arith.constant 0 : index
    %c0_0 = arith.constant 0 : index
    %c0_1 = arith.constant 0 : index
    %c0_2 = arith.constant 0 : index
    %0 = vector.load %arg1[%c0, %c0_0, %c0_1, %c0_2] : memref<1x20x32x4xf32, #tpu.memory_space<vmem>>, vector<1x20x32x4xf32>
    %1 = vector.shape_cast %0 : vector<1x20x32x4xf32> to vector<20x32x4xf32>
    %cst = arith.constant 0.000000e+00 : f32
    %2 = vector.broadcast %cst : f32 to vector<20x32x4xf32>
    %3 = arith.maximumf %1, %2 : vector<20x32x4xf32>
    %4 = vector.shape_cast %3 : vector<20x32x4xf32> to vector<640x4xf32>
    %5 = arith.truncf %4 : vector<640x4xf32> to vector<640x4xbf16>
    %c0_3 = arith.constant 0 : index
    %c0_4 = arith.constant 0 : index
    %6 = vector.load %arg2[%c0_3, %c0_4] : memref<4x36xbf16, #tpu.memory_space<vmem>>, vector<4x36xbf16>
    %cst_5 = arith.constant dense<0.000000e+00> : vector<640x36xf32>
    %7 = tpu.matmul %5, %6, %cst_5 {dimension_numbers = #tpu.dot_dimension_numbers<[1], [0], [0], [1], [0, 0, 1, 1], [], []>} : vector<640x4xbf16>, vector<4x36xbf16>, vector<640x36xf32> -> vector<640x36xf32>
    %8 = vector.shape_cast %7 : vector<640x36xf32> to vector<20x32x36xf32>
    %9 = vector.extract_strided_slice %8 {offsets = [0, 0, 0], sizes = [18, 24, 4], strides = [1, 1, 1]} : vector<20x32x36xf32> to vector<18x24x4xf32>
    %10 = vector.extract_strided_slice %8 {offsets = [0, 1, 4], sizes = [18, 24, 4], strides = [1, 1, 1]} : vector<20x32x36xf32> to vector<18x24x4xf32>
    %11 = arith.addf %9, %10 : vector<18x24x4xf32>
    %12 = vector.extract_strided_slice %8 {offsets = [0, 2, 8], sizes = [18, 24, 4], strides = [1, 1, 1]} : vector<20x32x36xf32> to vector<18x24x4xf32>
    %13 = arith.addf %11, %12 : vector<18x24x4xf32>
    %14 = vector.extract_strided_slice %8 {offsets = [1, 0, 12], sizes = [18, 24, 4], strides = [1, 1, 1]} : vector<20x32x36xf32> to vector<18x24x4xf32>
    %15 = arith.addf %13, %14 : vector<18x24x4xf32>
    %16 = vector.extract_strided_slice %8 {offsets = [1, 1, 16], sizes = [18, 24, 4], strides = [1, 1, 1]} : vector<20x32x36xf32> to vector<18x24x4xf32>
    %17 = arith.addf %15, %16 : vector<18x24x4xf32>
    %18 = vector.extract_strided_slice %8 {offsets = [1, 2, 20], sizes = [18, 24, 4], strides = [1, 1, 1]} : vector<20x32x36xf32> to vector<18x24x4xf32>
    %19 = arith.addf %17, %18 : vector<18x24x4xf32>
    %20 = vector.extract_strided_slice %8 {offsets = [2, 0, 24], sizes = [18, 24, 4], strides = [1, 1, 1]} : vector<20x32x36xf32> to vector<18x24x4xf32>
    %21 = arith.addf %19, %20 : vector<18x24x4xf32>
    %22 = vector.extract_strided_slice %8 {offsets = [2, 1, 28], sizes = [18, 24, 4], strides = [1, 1, 1]} : vector<20x32x36xf32> to vector<18x24x4xf32>
    %23 = arith.addf %21, %22 : vector<18x24x4xf32>
    %24 = vector.extract_strided_slice %8 {offsets = [2, 2, 32], sizes = [18, 24, 4], strides = [1, 1, 1]} : vector<20x32x36xf32> to vector<18x24x4xf32>
    %25 = arith.addf %23, %24 : vector<18x24x4xf32>
    %c0_6 = arith.constant 0 : index
    %c0_7 = arith.constant 0 : index
    %26 = vector.load %arg3[%c0_6, %c0_7] : memref<1x4xf32, #tpu.memory_space<vmem>>, vector<1x4xf32>
    %27 = vector.shape_cast %26 : vector<1x4xf32> to vector<1x1x4xf32>
    %28 = vector.broadcast %27 : vector<1x1x4xf32> to vector<18x24x4xf32>
    %29 = arith.addf %25, %28 : vector<18x24x4xf32>
    %30 = tpu.iota {dimensions = array<i32: 0>} : vector<18x24x4xi32>
    %31 = tpu.iota {dimensions = array<i32: 1>} : vector<18x24x4xi32>
    %c1_i32 = arith.constant 1 : i32
    %32 = vector.broadcast %c1_i32 : i32 to vector<18x24x4xi32>
    %33 = arith.cmpi sge, %30, %32 : vector<18x24x4xi32>
    %c16_i32 = arith.constant 16 : i32
    %34 = vector.broadcast %c16_i32 : i32 to vector<18x24x4xi32>
    %35 = arith.cmpi sle, %30, %34 : vector<18x24x4xi32>
    %36 = arith.andi %33, %35 : vector<18x24x4xi1>
    %c1_i32_8 = arith.constant 1 : i32
    %37 = vector.broadcast %c1_i32_8 : i32 to vector<18x24x4xi32>
    %38 = arith.cmpi sge, %31, %37 : vector<18x24x4xi32>
    %39 = arith.andi %36, %38 : vector<18x24x4xi1>
    %c16_i32_9 = arith.constant 16 : i32
    %40 = vector.broadcast %c16_i32_9 : i32 to vector<18x24x4xi32>
    %41 = arith.cmpi sle, %31, %40 : vector<18x24x4xi32>
    %42 = arith.andi %39, %41 : vector<18x24x4xi1>
    %cst_10 = arith.constant 0.000000e+00 : f32
    %43 = vector.broadcast %cst_10 : f32 to vector<18x24x4xf32>
    %44 = arith.maximumf %29, %43 : vector<18x24x4xf32>
    %cst_11 = arith.constant 0.000000e+00 : f32
    %45 = vector.broadcast %cst_11 : f32 to vector<18x24x4xf32>
    %46 = arith.select %42, %44, %45 : vector<18x24x4xi1>, vector<18x24x4xf32>
    %47 = vector.shape_cast %46 : vector<18x24x4xf32> to vector<432x4xf32>
    %48 = arith.truncf %47 : vector<432x4xf32> to vector<432x4xbf16>
    %c0_12 = arith.constant 0 : index
    %c0_13 = arith.constant 0 : index
    %49 = vector.load %arg4[%c0_12, %c0_13] : memref<4x36xbf16, #tpu.memory_space<vmem>>, vector<4x36xbf16>
    %cst_14 = arith.constant dense<0.000000e+00> : vector<432x36xf32>
    %50 = tpu.matmul %48, %49, %cst_14 {dimension_numbers = #tpu.dot_dimension_numbers<[1], [0], [0], [1], [0, 0, 1, 1], [], []>} : vector<432x4xbf16>, vector<4x36xbf16>, vector<432x36xf32> -> vector<432x36xf32>
    %51 = vector.shape_cast %50 : vector<432x36xf32> to vector<18x24x36xf32>
    %52 = vector.extract_strided_slice %51 {offsets = [0, 0, 0], sizes = [16, 16, 4], strides = [1, 1, 1]} : vector<18x24x36xf32> to vector<16x16x4xf32>
    %53 = vector.extract_strided_slice %51 {offsets = [0, 1, 4], sizes = [16, 16, 4], strides = [1, 1, 1]} : vector<18x24x36xf32> to vector<16x16x4xf32>
    %54 = arith.addf %52, %53 : vector<16x16x4xf32>
    %55 = vector.extract_strided_slice %51 {offsets = [0, 2, 8], sizes = [16, 16, 4], strides = [1, 1, 1]} : vector<18x24x36xf32> to vector<16x16x4xf32>
    %56 = arith.addf %54, %55 : vector<16x16x4xf32>
    %57 = vector.extract_strided_slice %51 {offsets = [1, 0, 12], sizes = [16, 16, 4], strides = [1, 1, 1]} : vector<18x24x36xf32> to vector<16x16x4xf32>
    %58 = arith.addf %56, %57 : vector<16x16x4xf32>
    %59 = vector.extract_strided_slice %51 {offsets = [1, 1, 16], sizes = [16, 16, 4], strides = [1, 1, 1]} : vector<18x24x36xf32> to vector<16x16x4xf32>
    %60 = arith.addf %58, %59 : vector<16x16x4xf32>
    %61 = vector.extract_strided_slice %51 {offsets = [1, 2, 20], sizes = [16, 16, 4], strides = [1, 1, 1]} : vector<18x24x36xf32> to vector<16x16x4xf32>
    %62 = arith.addf %60, %61 : vector<16x16x4xf32>
    %63 = vector.extract_strided_slice %51 {offsets = [2, 0, 24], sizes = [16, 16, 4], strides = [1, 1, 1]} : vector<18x24x36xf32> to vector<16x16x4xf32>
    %64 = arith.addf %62, %63 : vector<16x16x4xf32>
    %65 = vector.extract_strided_slice %51 {offsets = [2, 1, 28], sizes = [16, 16, 4], strides = [1, 1, 1]} : vector<18x24x36xf32> to vector<16x16x4xf32>
    %66 = arith.addf %64, %65 : vector<16x16x4xf32>
    %67 = vector.extract_strided_slice %51 {offsets = [2, 2, 32], sizes = [16, 16, 4], strides = [1, 1, 1]} : vector<18x24x36xf32> to vector<16x16x4xf32>
    %68 = arith.addf %66, %67 : vector<16x16x4xf32>
    %c0_15 = arith.constant 0 : index
    %c0_16 = arith.constant 0 : index
    %69 = vector.load %arg5[%c0_15, %c0_16] : memref<1x4xf32, #tpu.memory_space<vmem>>, vector<1x4xf32>
    %70 = vector.shape_cast %69 : vector<1x4xf32> to vector<1x1x4xf32>
    %71 = vector.broadcast %70 : vector<1x1x4xf32> to vector<16x16x4xf32>
    %72 = arith.addf %68, %71 : vector<16x16x4xf32>
    %73 = vector.extract_strided_slice %1 {offsets = [2, 2, 0], sizes = [16, 16, 4], strides = [1, 1, 1]} : vector<20x32x4xf32> to vector<16x16x4xf32>
    %74 = arith.addf %73, %72 : vector<16x16x4xf32>
    %c0_17 = arith.constant 0 : index
    %c0_18 = arith.constant 0 : index
    %c0_19 = arith.constant 0 : index
    %c0_20 = arith.constant 0 : index
    %75 = vector.load %arg6[%c0_17, %c0_18, %c0_19, %c0_20] : memref<1x16x16x4xf32, #tpu.memory_space<vmem>>, vector<1x16x16x4xf32>
    %76 = vector.shape_cast %75 : vector<1x16x16x4xf32> to vector<16x16x4xf32>
    %77 = vector.shape_cast %74 : vector<16x16x4xf32> to vector<1x16x16x4xf32>
    tpu.vector_store %arg6[%c0_17, %c0_18, %c0_19, %c0_20], %77 {strides = array<i32>} : memref<1x16x16x4xf32, #tpu.memory_space<vmem>>, vector<1x16x16x4xf32>,
    return
  }
  func.func @transform_0(%arg0: i32) -> (i32, i32, i32, i32) {
    %c0_i32 = arith.constant 0 : i32
    %c0_i32_0 = arith.constant 0 : i32
    %c0_i32_1 = arith.constant 0 : i32
    %c0_i32_2 = arith.constant 0 : i32
    return %arg0, %c0_i32, %c0_i32_0, %c0_i32_1 : i32, i32, i32, i32
  }
  func.func @transform_1(%arg0: i32) -> (i32, i32) {
    %c0_i32 = arith.constant 0 : i32
    %c0_i32_0 = arith.constant 0 : i32
    %c0_i32_1 = arith.constant 0 : i32
    return %c0_i32, %c0_i32_0 : i32, i32
  }
  func.func @transform_2(%arg0: i32) -> (i32, i32) {
    %c0_i32 = arith.constant 0 : i32
    %c0_i32_0 = arith.constant 0 : i32
    %c0_i32_1 = arith.constant 0 : i32
    return %c0_i32, %c0_i32_0 : i32, i32
  }
  func.func @transform_3(%arg0: i32) -> (i32, i32) {
    %c0_i32 = arith.constant 0 : i32
    %c0_i32_0 = arith.constant 0 : i32
    %c0_i32_1 = arith.constant 0 : i32
    return %c0_i32, %c0_i32_0 : i32, i32
  }
  func.func @transform_4(%arg0: i32) -> (i32, i32) {
    %c0_i32 = arith.constant 0 : i32
    %c0_i32_0 = arith.constant 0 : i32
    %c0_i32_1 = arith.constant 0 : i32
    return %c0_i32, %c0_i32_0 : i32, i32
  }
  func.func @transform_5(%arg0: i32) -> (i32, i32, i32, i32) {
    %c0_i32 = arith.constant 0 : i32
    %c0_i32_0 = arith.constant 0 : i32
    %c0_i32_1 = arith.constant 0 : i32
    %c0_i32_2 = arith.constant 0 : i32
    return %arg0, %c0_i32, %c0_i32_0, %c0_i32_1 : i32, i32, i32, i32
  }
}

</mosaic_0001>

<llo_original>
// kernel: tpu_custom_call.1
$region0: #{tpu_custom_call.1}
  #allocation0 [shape = 'u32[]', space=smem, size = 0x4, offset = 0x4, fixed_abs, tag = 'smem constant byte address 0x4 - core index']
  #allocation1 [shape = 'u32[144,128]{1,0:T(1,128)}', space=vmem, size = 0x12000, scoped, tag = 'internal scratch']
  %s0 = inlined_call_operand.vmem [shape: f32[2,20,32,4], index: 0, kind: input, shape index: {}]
  %s1 = inlined_call_operand.vmem [shape: bf16[4,36], index: 1, kind: input, shape index: {}]
  %s2 = inlined_call_operand.vmem [shape: f32[1,4], index: 2, kind: input, shape index: {}]
  %s3 = inlined_call_operand.vmem [shape: bf16[4,36], index: 3, kind: input, shape index: {}]
  %s4 = inlined_call_operand.vmem [shape: f32[1,4], index: 4, kind: input, shape index: {}]
  %s5 = inlined_call_operand.vmem [shape: f32[2,16,16,4], index: 5, kind: output, shape index: {}]
  %s6 = sld [smem:[#allocation0]]
  $region53: #{tpu_custom_call.1} parent=0
    _
  %s8 = ssub.s32 1, %s6
  %s9 = scalar_select 0, %s8, %s6
  loop: start=0, step=1, limit=4
  $region2: #{tpu_custom_call.1} parent=0 // loop_pre_header
    _
  $region3: #{tpu_custom_call.1} parent=0 // loop_header
    %s11 = sphi 0, %s15
    %p12 = scmp.ge.s32.totalorder %s11, 4
    %s21 = sphi 0, %s23
    %s24 = sphi 0, %s21
    %s25 = sphi 0, %s24
    %s41 = sphi 0, %s25
    %s45 = sphi 0, %s45
    %s47 = sphi 0, %s45
    %s48 = sphi 0, %s47
    %s62 = sphi 0, %s48
    %s66 = sphi 0, %s66
    %s68 = sphi 0, %s66
    %s69 = sphi 0, %s68
    %s83 = sphi 0, %s69
    %s87 = sphi 0, %s87
    %s89 = sphi 0, %s87
    %s90 = sphi 0, %s89
    %s104 = sphi 0, %s90
    %s108 = sphi 0, %s108
    %s110 = sphi 0, %s108
    %s111 = sphi 0, %s110
    %s125 = sphi 0, %s111
    %s131 = sphi 0, %s133
    %s134 = sphi 0, %s131
    %s135 = sphi 0, %s134
    %s151 = sphi 0, %s135
  $region4: #{tpu_custom_call.1} parent=0 // loop_header_branch
    %14 = sbr.rel (%p12) target = $region8
  $region5: #{tpu_custom_call.1} parent=0 // loop_body
    %s16 = ssub.s32 %s11, 1
    %s17 = ssub.s32 %s11, 2
    %s18 = sadd.s32 %s11, 1
    %s19 = ssub.s32 %s11, %s18
    %p20 = scmp.eq.s32.totalorder %s19, 0
    %s22 = sadd.s32 %s21, 1
    %s23 = scalar_select %p20, %s21, %s22
    %p26 = pneg %p20
    %p27 = scmp.eq.s32.totalorder %s11, 1
    %p28 = por %p26, %p27
    %p29 = scmp.ne.s32.totalorder %s21, %s24
    %p30 = scmp.eq.s32.totalorder %s11, 0
    %p31 = por %p29, %p30
    %p32 = scmp.ne.s32.totalorder %s21, %s24
    %p33 = scmp.eq.s32.totalorder %s16, 1
    %p34 = por %p32, %p33
    %p35 = scmp.ne.s32.totalorder %s24, %s25
    %p36 = scmp.eq.s32.totalorder %s16, 0
    %p37 = por %p35, %p36
    %p38 = scmp.ne.s32.totalorder %s24, %s25
    %p39 = scmp.eq.s32.totalorder %s17, 1
    %p40 = por %p38, %p39
    %p42 = scmp.ne.s32.totalorder %s25, %s41
    %p43 = scmp.eq.s32.totalorder %s17, 0
    %p44 = por %p42, %p43
    %s46 = sadd.s32 %s45, 1
    %p49 = scmp.eq.s32.totalorder %s11, 1
    %p50 = scmp.ne.s32.totalorder %s45, %s47
    %p51 = scmp.eq.s32.totalorder %s11, 0
    %p52 = por %p50, %p51
    %p53 = scmp.ne.s32.totalorder %s45, %s47
    %p54 = scmp.eq.s32.totalorder %s16, 1
    %p55 = por %p53, %p54
    %p56 = scmp.ne.s32.totalorder %s47, %s48
    %p57 = scmp.eq.s32.totalorder %s16, 0
    %p58 = por %p56, %p57
    %p59 = scmp.ne.s32.totalorder %s47, %s48
    %p60 = scmp.eq.s32.totalorder %s17, 1
    %p61 = por %p59, %p60
    %p63 = scmp.ne.s32.totalorder %s48, %s62
    %p64 = scmp.eq.s32.totalorder %s17, 0
    %p65 = por %p63, %p64
    %s67 = sadd.s32 %s66, 1
    %p70 = scmp.eq.s32.totalorder %s11, 1
    %p71 = scmp.ne.s32.totalorder %s66, %s68
    %p72 = scmp.eq.s32.totalorder %s11, 0
    %p73 = por %p71, %p72
    %p74 = scmp.ne.s32.totalorder %s66, %s68
    %p75 = scmp.eq.s32.totalorder %s16, 1
    %p76 = por %p74, %p75
    %p77 = scmp.ne.s32.totalorder %s68, %s69
    %p78 = scmp.eq.s32.totalorder %s16, 0
    %p79 = por %p77, %p78
    %p80 = scmp.ne.s32.totalorder %s68, %s69
    %p81 = scmp.eq.s32.totalorder %s17, 1
    %p82 = por %p80, %p81
    %p84 = scmp.ne.s32.totalorder %s69, %s83
    %p85 = scmp.eq.s32.totalorder %s17, 0
    %p86 = por %p84, %p85
    %s88 = sadd.s32 %s87, 1
    %p91 = scmp.eq.s32.totalorder %s11, 1
    %p92 = scmp.ne.s32.totalorder %s87, %s89
    %p93 = scmp.eq.s32.totalorder %s11, 0
    %p94 = por %p92, %p93
    %p95 = scmp.ne.s32.totalorder %s87, %s89
    %p96 = scmp.eq.s32.totalorder %s16, 1
    %p97 = por %p95, %p96
    %p98 = scmp.ne.s32.totalorder %s89, %s90
    %p99 = scmp.eq.s32.totalorder %s16, 0
    %p100 = por %p98, %p99
    %p101 = scmp.ne.s32.totalorder %s89, %s90
    %p102 = scmp.eq.s32.totalorder %s17, 1
    %p103 = por %p101, %p102
    %p105 = scmp.ne.s32.totalorder %s90, %s104
    %p106 = scmp.eq.s32.totalorder %s17, 0
    %p107 = por %p105, %p106
    %s109 = sadd.s32 %s108, 1
    %p112 = scmp.eq.s32.totalorder %s11, 1
    %p113 = scmp.ne.s32.totalorder %s108, %s110
    %p114 = scmp.eq.s32.totalorder %s11, 0
    %p115 = por %p113, %p114
    %p116 = scmp.ne.s32.totalorder %s108, %s110
    %p117 = scmp.eq.s32.totalorder %s16, 1
    %p118 = por %p116, %p117
    %p119 = scmp.ne.s32.totalorder %s110, %s111
    %p120 = scmp.eq.s32.totalorder %s16, 0
    %p121 = por %p119, %p120
    %p122 = scmp.ne.s32.totalorder %s110, %s111
    %p123 = scmp.eq.s32.totalorder %s17, 1
    %p124 = por %p122, %p123
    %p126 = scmp.ne.s32.totalorder %s111, %s125
    %p127 = scmp.eq.s32.totalorder %s17, 0
    %p128 = por %p126, %p127
    %s129 = ssub.s32 %s11, %s18
    %p130 = scmp.eq.s32.totalorder %s129, 0
    %s132 = sadd.s32 %s131, 1
    %s133 = scalar_select %p130, %s131, %s132
    %p136 = pneg %p130
    %p137 = scmp.eq.s32.totalorder %s11, 1
    %p138 = por %p136, %p137
    %p139 = scmp.ne.s32.totalorder %s131, %s134
    %p140 = scmp.eq.s32.totalorder %s11, 0
    %p141 = por %p139, %p140
    %p142 = scmp.ne.s32.totalorder %s131, %s134
    %p143 = scmp.eq.s32.totalorder %s16, 1
    %p144 = por %p142, %p143
    %p145 = scmp.ne.s32.totalorder %s134, %s135
    %p146 = scmp.eq.s32.totalorder %s16, 0
    %p147 = por %p145, %p146
    %p148 = scmp.ne.s32.totalorder %s134, %s135
    %p149 = scmp.eq.s32.totalorder %s17, 1
    %p150 = por %p148, %p149
    %p152 = scmp.ne.s32.totalorder %s135, %s151
    %p153 = scmp.eq.s32.totalorder %s17, 0
    %p154 = por %p152, %p153
    %p155 = scmp.le.s32.totalorder 1, %s11
    %p156 = scmp.lt.s32.totalorder %s11, 3
    %p157 = pnand %p155, %p156
    %p158 = pneg %p157
    // Predicated region
    $region9: #{tpu_custom_call.1} parent=5 // pred_check
      _
    $region10: #{tpu_custom_call.1} parent=5 // pred_check_branch
      %160 = sbr.rel (%p157) target = $region12
    $region11: #{tpu_custom_call.1} parent=5 // pred_region
      %s161 = ssub.s32 %s11, 1
      // Predicated region
      $region13: #{tpu_custom_call.1} parent=11 // pred_check
        %p162 = pneg %p58
      $region14: #{tpu_custom_call.1} parent=11 // pred_check_branch
        %164 = sbr.rel (%p162) target = $region16
      $region15: #{tpu_custom_call.1} parent=11 // pred_region
        _
      $region16: #{tpu_custom_call.1} parent=11 // pred_fallthru
        _
      // Predicated region
      $region17: #{tpu_custom_call.1} parent=11 // pred_check
        %p165 = pneg %p79
      $region18: #{tpu_custom_call.1} parent=11 // pred_check_branch
        %167 = sbr.rel (%p165) target = $region20
      $region19: #{tpu_custom_call.1} parent=11 // pred_region
        _
      $region20: #{tpu_custom_call.1} parent=11 // pred_fallthru
        _
      // Predicated region
      $region21: #{tpu_custom_call.1} parent=11 // pred_check
        %p168 = pneg %p100
      $region22: #{tpu_custom_call.1} parent=11 // pred_check_branch
        %170 = sbr.rel (%p168) target = $region24
      $region23: #{tpu_custom_call.1} parent=11 // pred_region
        _
      $region24: #{tpu_custom_call.1} parent=11 // pred_fallthru
        _
      // Predicated region
      $region25: #{tpu_custom_call.1} parent=11 // pred_check
        %p171 = pneg %p121
      $region26: #{tpu_custom_call.1} parent=11 // pred_check_branch
        %173 = sbr.rel (%p171) target = $region28
      $region27: #{tpu_custom_call.1} parent=11 // pred_region
        _
      $region28: #{tpu_custom_call.1} parent=11 // pred_fallthru
        _
    $region12: #{tpu_custom_call.1} parent=5 // pred_fallthru
      _
    %p174 = scmp.lt.s32.totalorder %s11, 2
    // Predicated region
    $region29: #{tpu_custom_call.1} parent=5 // pred_check
      %p175 = pneg %p174
    $region30: #{tpu_custom_call.1} parent=5 // pred_check_branch
      %177 = sbr.rel (%p175) target = $region32
    $region31: #{tpu_custom_call.1} parent=5 // pred_region
      // Predicated region
      $region33: #{tpu_custom_call.1} parent=31 // pred_check
        %p178 = pneg %p31
      $region34: #{tpu_custom_call.1} parent=31 // pred_check_branch
        %180 = sbr.rel (%p178) target = $region36
      $region35: #{tpu_custom_call.1} parent=31 // pred_region
        %p181 = scmp.lt.s32.totalorder %s11, 1
        %s182 = scalar_select %p181, %s11, 1
        %s183 = smul.addr %s182, 80
        %s184 = smul.addr %s183, 8
        %s185 = scalar_lea.vmem %s0, %s184
      $region36: #{tpu_custom_call.1} parent=31 // pred_fallthru
        _
    $region32: #{tpu_custom_call.1} parent=5 // pred_fallthru
      _
    %p186 = scmp.le.s32.totalorder 1, %s11
    %p187 = scmp.lt.s32.totalorder %s11, 3
    %p188 = pnand %p186, %p187
    %p189 = pneg %p188
    // Predicated region
    $region37: #{tpu_custom_call.1} parent=5 // pred_check
      _
    $region38: #{tpu_custom_call.1} parent=5 // pred_check_branch
      %191 = sbr.rel (%p188) target = $region40
    $region39: #{tpu_custom_call.1} parent=5 // pred_region
      %s192 = ssub.s32 %s11, 1
      %p193 = scmp.lt.s32.totalorder %s16, 1
      %s194 = scalar_select %p193, %s16, 1
      %s195 = smul.addr %s194, 80
      %s196 = smul.addr %s195, 8
      %s197 = scalar_lea.vmem %s0, %s196
      %p198 = pneg %p37
      %p199 = pneg %p34
      %p200 = pneg %p58
      %p201 = pneg %p55
      %p202 = pneg %p79
      %p203 = pneg %p76
      %p204 = pneg %p100
      %p205 = pneg %p97
      %p206 = pneg %p121
      %p207 = pneg %p118
      %p208 = pneg %p147
      %p209 = pneg %p144
      %p210 = scmp.lt.s32.totalorder %s16, 1
      %s211 = scalar_select %p210, %s16, 1
      %s212 = smul.addr %s211, 32
      %s213 = smul.addr %s212, 8
      %s214 = scalar_lea.vmem %s5, %s213
      %p215 = scmp.lt.s32.totalorder %s16, 1
      %s216 = scalar_select %p215, %s16, 1
      %s217 = smul.addr %s216, 80
      %s218 = smul.addr %s217, 8
      %s219 = scalar_lea.vmem %s0, %s218
      %p220 = scmp.lt.s32.totalorder %s16, 1
      %s221 = scalar_select %p220, %s16, 1
      %s222 = smul.addr %s221, 32
      %s223 = smul.addr %s222, 8
      %s224 = scalar_lea.vmem %s5, %s223
      %v226 = vld [vmem:[%s219] sm:$0xff]
      %v227 = vld [vmem:[%s219 + $0x8] sm:$0xff]
      %v228 = vld [vmem:[%s219 + $0x10] sm:$0xff]
      %v229 = vld [vmem:[%s219 + $0x18] sm:$0xff]
      %v230 = vld [vmem:[%s219 + $0x20] sm:$0xff]
      %v231 = vld [vmem:[%s219 + $0x28] sm:$0xff]
      %v232 = vld [vmem:[%s219 + $0x30] sm:$0xff]
      %v233 = vld [vmem:[%s219 + $0x38] sm:$0xff]
      %v234 = vld [vmem:[%s219 + $0x40] sm:$0xff]
      %v235 = vld [vmem:[%s219 + $0x48] sm:$0xff]
      %v236 = vld [vmem:[%s219 + $0x50] sm:$0xff]
      %v237 = vld [vmem:[%s219 + $0x58] sm:$0xff]
      %v238 = vld [vmem:[%s219 + $0x60] sm:$0xff]
      %v239 = vld [vmem:[%s219 + $0x68] sm:$0xff]
      %v240 = vld [vmem:[%s219 + $0x70] sm:$0xff]
      %v241 = vld [vmem:[%s219 + $0x78] sm:$0xff]
      %v242 = vld [vmem:[%s219 + $0x80] sm:$0xff]
      %v243 = vld [vmem:[%s219 + $0x88] sm:$0xff]
      %v244 = vld [vmem:[%s219 + $0x90] sm:$0xff]
      %v245 = vld [vmem:[%s219 + $0x98] sm:$0xff]
      %v246 = vld [vmem:[%s219 + $0xa0] sm:$0xff]
      %v247 = vld [vmem:[%s219 + $0xa8] sm:$0xff]
      %v248 = vld [vmem:[%s219 + $0xb0] sm:$0xff]
      %v249 = vld [vmem:[%s219 + $0xb8] sm:$0xff]
      %v250 = vld [vmem:[%s219 + $0xc0] sm:$0xff]
      %v251 = vld [vmem:[%s219 + $0xc8] sm:$0xff]
      %v252 = vld [vmem:[%s219 + $0xd0] sm:$0xff]
      %v253 = vld [vmem:[%s219 + $0xd8] sm:$0xff]
      %v254 = vld [vmem:[%s219 + $0xe0] sm:$0xff]
      %v255 = vld [vmem:[%s219 + $0xe8] sm:$0xff]
      %v256 = vld [vmem:[%s219 + $0xf0] sm:$0xff]
      %v257 = vld [vmem:[%s219 + $0xf8] sm:$0xff]
      %v258 = vld [vmem:[%s219 + $0x100] sm:$0xff]
      %v259 = vld [vmem:[%s219 + $0x108] sm:$0xff]
      %v260 = vld [vmem:[%s219 + $0x110] sm:$0xff]
      %v261 = vld [vmem:[%s219 + $0x118] sm:$0xff]
      %v262 = vld [vmem:[%s219 + $0x120] sm:$0xff]
      %v263 = vld [vmem:[%s219 + $0x128] sm:$0xff]
      %v264 = vld [vmem:[%s219 + $0x130] sm:$0xff]
      %v265 = vld [vmem:[%s219 + $0x138] sm:$0xff]
      %v266 = vld [vmem:[%s219 + $0x140] sm:$0xff]
      %v267 = vld [vmem:[%s219 + $0x148] sm:$0xff]
      %v268 = vld [vmem:[%s219 + $0x150] sm:$0xff]
      %v269 = vld [vmem:[%s219 + $0x158] sm:$0xff]
      %v270 = vld [vmem:[%s219 + $0x160] sm:$0xff]
      %v271 = vld [vmem:[%s219 + $0x168] sm:$0xff]
      %v272 = vld [vmem:[%s219 + $0x170] sm:$0xff]
      %v273 = vld [vmem:[%s219 + $0x178] sm:$0xff]
      %v274 = vld [vmem:[%s219 + $0x180] sm:$0xff]
      %v275 = vld [vmem:[%s219 + $0x188] sm:$0xff]
      %v276 = vld [vmem:[%s219 + $0x190] sm:$0xff]
      %v277 = vld [vmem:[%s219 + $0x198] sm:$0xff]
      %v278 = vld [vmem:[%s219 + $0x1a0] sm:$0xff]
      %v279 = vld [vmem:[%s219 + $0x1a8] sm:$0xff]
      %v280 = vld [vmem:[%s219 + $0x1b0] sm:$0xff]
      %v281 = vld [vmem:[%s219 + $0x1b8] sm:$0xff]
      %v282 = vld [vmem:[%s219 + $0x1c0] sm:$0xff]
      %v283 = vld [vmem:[%s219 + $0x1c8] sm:$0xff]
      %v284 = vld [vmem:[%s219 + $0x1d0] sm:$0xff]
      %v285 = vld [vmem:[%s219 + $0x1d8] sm:$0xff]
      %v286 = vld [vmem:[%s219 + $0x1e0] sm:$0xff]
      %v287 = vld [vmem:[%s219 + $0x1e8] sm:$0xff]
      %v288 = vld [vmem:[%s219 + $0x1f0] sm:$0xff]
      %v289 = vld [vmem:[%s219 + $0x1f8] sm:$0xff]
      %v290 = vld [vmem:[%s219 + $0x200] sm:$0xff]
      %v291 = vld [vmem:[%s219 + $0x208] sm:$0xff]
      %v292 = vld [vmem:[%s219 + $0x210] sm:$0xff]
      %v293 = vld [vmem:[%s219 + $0x218] sm:$0xff]
      %v294 = vld [vmem:[%s219 + $0x220] sm:$0xff]
      %v295 = vld [vmem:[%s219 + $0x228] sm:$0xff]
      %v296 = vld [vmem:[%s219 + $0x230] sm:$0xff]
      %v297 = vld [vmem:[%s219 + $0x238] sm:$0xff]
      %v298 = vld [vmem:[%s219 + $0x240] sm:$0xff]
      %v299 = vld [vmem:[%s219 + $0x248] sm:$0xff]
      %v300 = vld [vmem:[%s219 + $0x250] sm:$0xff]
      %v301 = vld [vmem:[%s219 + $0x258] sm:$0xff]
      %v302 = vld [vmem:[%s219 + $0x260] sm:$0xff]
      %v303 = vld [vmem:[%s219 + $0x268] sm:$0xff]
      %v304 = vld [vmem:[%s219 + $0x270] sm:$0xff]
      %v305 = vld [vmem:[%s219 + $0x278] sm:$0xff]
      %v306 = vmax.f32 %v226, 0.0
      %v307 = vmax.f32 %v227, 0.0
      %v308 = vmax.f32 %v228, 0.0
      %v309 = vmax.f32 %v229, 0.0
      %v310 = vmax.f32 %v230, 0.0
      %v311 = vmax.f32 %v231, 0.0
      %v312 = vmax.f32 %v232, 0.0
      %v313 = vmax.f32 %v233, 0.0
      %v314 = vmax.f32 %v234, 0.0
      %v315 = vmax.f32 %v235, 0.0
      %v316 = vmax.f32 %v236, 0.0
      %v317 = vmax.f32 %v237, 0.0
      %v318 = vmax.f32 %v238, 0.0
      %v319 = vmax.f32 %v239, 0.0
      %v320 = vmax.f32 %v240, 0.0
      %v321 = vmax.f32 %v241, 0.0
      %v322 = vmax.f32 %v242, 0.0
      %v323 = vmax.f32 %v243, 0.0
      %v324 = vmax.f32 %v244, 0.0
      %v325 = vmax.f32 %v245, 0.0
      %v326 = vmax.f32 %v246, 0.0
      %v327 = vmax.f32 %v247, 0.0
      %v328 = vmax.f32 %v248, 0.0
      %v329 = vmax.f32 %v249, 0.0
      %v330 = vmax.f32 %v250, 0.0
      %v331 = vmax.f32 %v251, 0.0
      %v332 = vmax.f32 %v252, 0.0
      %v333 = vmax.f32 %v253, 0.0
      %v334 = vmax.f32 %v254, 0.0
      %v335 = vmax.f32 %v255, 0.0
      %v336 = vmax.f32 %v256, 0.0
      %v337 = vmax.f32 %v257, 0.0
      %v338 = vmax.f32 %v258, 0.0
      %v339 = vmax.f32 %v259, 0.0
      %v340 = vmax.f32 %v260, 0.0
      %v341 = vmax.f32 %v261, 0.0
      %v342 = vmax.f32 %v262, 0.0
      %v343 = vmax.f32 %v263, 0.0
      %v344 = vmax.f32 %v264, 0.0
      %v345 = vmax.f32 %v265, 0.0
      %v346 = vmax.f32 %v266, 0.0
      %v347 = vmax.f32 %v267, 0.0
      %v348 = vmax.f32 %v268, 0.0
      %v349 = vmax.f32 %v269, 0.0
      %v350 = vmax.f32 %v270, 0.0
      %v351 = vmax.f32 %v271, 0.0
      %v352 = vmax.f32 %v272, 0.0
      %v353 = vmax.f32 %v273, 0.0
      %v354 = vmax.f32 %v274, 0.0
      %v355 = vmax.f32 %v275, 0.0
      %v356 = vmax.f32 %v276, 0.0
      %v357 = vmax.f32 %v277, 0.0
      %v358 = vmax.f32 %v278, 0.0
      %v359 = vmax.f32 %v279, 0.0
      %v360 = vmax.f32 %v280, 0.0
      %v361 = vmax.f32 %v281, 0.0
      %v362 = vmax.f32 %v282, 0.0
      %v363 = vmax.f32 %v283, 0.0
      %v364 = vmax.f32 %v284, 0.0
      %v365 = vmax.f32 %v285, 0.0
      %v366 = vmax.f32 %v286, 0.0
      %v367 = vmax.f32 %v287, 0.0
      %v368 = vmax.f32 %v288, 0.0
      %v369 = vmax.f32 %v289, 0.0
      %v370 = vmax.f32 %v290, 0.0
      %v371 = vmax.f32 %v291, 0.0
      %v372 = vmax.f32 %v292, 0.0
      %v373 = vmax.f32 %v293, 0.0
      %v374 = vmax.f32 %v294, 0.0
      %v375 = vmax.f32 %v295, 0.0
      %v376 = vmax.f32 %v296, 0.0
      %v377 = vmax.f32 %v297, 0.0
      %v378 = vmax.f32 %v298, 0.0
      %v379 = vmax.f32 %v299, 0.0
      %v380 = vmax.f32 %v300, 0.0
      %v381 = vmax.f32 %v301, 0.0
      %v382 = vmax.f32 %v302, 0.0
      %v383 = vmax.f32 %v303, 0.0
      %v384 = vmax.f32 %v304, 0.0
      %v385 = vmax.f32 %v305, 0.0
      %v386 = vpack.c.bf16 %v307, %v306
      %v387 = vpack.c.bf16 %v309, %v308
      %v388 = vpack.c.bf16 %v311, %v310
      %v389 = vpack.c.bf16 %v313, %v312
      %v390 = vpack.c.bf16 %v315, %v314
      %v391 = vpack.c.bf16 %v317, %v316
      %v392 = vpack.c.bf16 %v319, %v318
      %v393 = vpack.c.bf16 %v321, %v320
      %v394 = vpack.c.bf16 %v323, %v322
      %v395 = vpack.c.bf16 %v325, %v324
      %v396 = vpack.c.bf16 %v327, %v326
      %v397 = vpack.c.bf16 %v329, %v328
      %v398 = vpack.c.bf16 %v331, %v330
      %v399 = vpack.c.bf16 %v333, %v332
      %v400 = vpack.c.bf16 %v335, %v334
      %v401 = vpack.c.bf16 %v337, %v336
      %v402 = vpack.c.bf16 %v339, %v338
      %v403 = vpack.c.bf16 %v341, %v340
      %v404 = vpack.c.bf16 %v343, %v342
      %v405 = vpack.c.bf16 %v345, %v344
      %v406 = vpack.c.bf16 %v347, %v346
      %v407 = vpack.c.bf16 %v349, %v348
      %v408 = vpack.c.bf16 %v351, %v350
      %v409 = vpack.c.bf16 %v353, %v352
      %v410 = vpack.c.bf16 %v355, %v354
      %v411 = vpack.c.bf16 %v357, %v356
      %v412 = vpack.c.bf16 %v359, %v358
      %v413 = vpack.c.bf16 %v361, %v360
      %v414 = vpack.c.bf16 %v363, %v362
      %v415 = vpack.c.bf16 %v365, %v364
      %v416 = vpack.c.bf16 %v367, %v366
      %v417 = vpack.c.bf16 %v369, %v368
      %v418 = vpack.c.bf16 %v371, %v370
      %v419 = vpack.c.bf16 %v373, %v372
      %v420 = vpack.c.bf16 %v375, %v374
      %v421 = vpack.c.bf16 %v377, %v376
      %v422 = vpack.c.bf16 %v379, %v378
      %v423 = vpack.c.bf16 %v381, %v380
      %v424 = vpack.c.bf16 %v383, %v382
      %v425 = vpack.c.bf16 %v385, %v384
      %v426 = vld [vmem:[%s1] sm:$0x3]
      %vm427 = vcmask 31744
      %v429 = vsel %vm427, %v386, 0
      %v432 = vsel %vm427, %v387, 0
      %v435 = vsel %vm427, %v388, 0
      %v438 = vsel %vm427, %v389, 0
      %v441 = vsel %vm427, %v390, 0
      %v444 = vsel %vm427, %v391, 0
      %v447 = vsel %vm427, %v392, 0
      %v450 = vsel %vm427, %v393, 0
      %v453 = vsel %vm427, %v394, 0
      %v456 = vsel %vm427, %v395, 0
      %v459 = vsel %vm427, %v396, 0
      %v462 = vsel %vm427, %v397, 0
      %v465 = vsel %vm427, %v398, 0
      %v468 = vsel %vm427, %v399, 0
      %v471 = vsel %vm427, %v400, 0
      %v474 = vsel %vm427, %v401, 0
      %v477 = vsel %vm427, %v402, 0
      %v480 = vsel %vm427, %v403, 0
      %v483 = vsel %vm427, %v404, 0
      %v486 = vsel %vm427, %v405, 0
      %v489 = vsel %vm427, %v406, 0
      %v492 = vsel %vm427, %v407, 0
      %v495 = vsel %vm427, %v408, 0
      %v498 = vsel %vm427, %v409, 0
      %v501 = vsel %vm427, %v410, 0
      %v504 = vsel %vm427, %v411, 0
      %v507 = vsel %vm427, %v412, 0
      %v510 = vsel %vm427, %v413, 0
      %v513 = vsel %vm427, %v414, 0
      %v516 = vsel %vm427, %v415, 0
      %v519 = vsel %vm427, %v416, 0
      %v522 = vsel %vm427, %v417, 0
      %v525 = vsel %vm427, %v418, 0
      %v528 = vsel %vm427, %v419, 0
      %v531 = vsel %vm427, %v420, 0
      %v534 = vsel %vm427, %v421, 0
      %v537 = vsel %vm427, %v422, 0
      %v540 = vsel %vm427, %v423, 0
      %v543 = vsel %vm427, %v424, 0
      %v546 = vsel %vm427, %v425, 0
      %vm548 = vcmask 1041408
      %v550 = vsel %vm548, %v426, 0
      %552 = vmatprep.subr.bf16.mxu0 0
      %553 = vmatpush1.bf16.msra.mxu0 0
      %554 = vmatprep.subr.bf16.mxu0 0
      %555 = vmatpush1.bf16.msra.mxu0 0
      %556 = vmatprep.subr.bf16.mxu0 0
      %557 = vmatpush1.bf16.msra.mxu0 0
      %558 = vmatprep.subr.bf16.mxu0 0
      %559 = vmatpush1.bf16.msra.mxu0 0
      %560 = vmatprep.subr.bf16.mxu0 0
      %561 = vmatpush1.bf16.msra.mxu0 0
      %562 = vmatprep.subr.bf16.mxu0 0
      %563 = vmatpush1.bf16.msra.mxu0 0
      %564 = vmatprep.subr.bf16.mxu0 0
      %565 = vmatpush1.bf16.msra.mxu0 0
      %566 = vmatprep.subr.bf16.mxu0 0
      %567 = vmatpush1.bf16.msra.mxu0 %v550
      %568 = vmatprep.subr.bf16.mxu0 0
      %569 = vmatpush2.bf16.msra.mxu0 0
      %570 = vmatprep.subr.bf16.mxu0 0
      %571 = vmatpush2.bf16.msra.mxu0 0
      %572 = vmatprep.subr.bf16.mxu0 0
      %573 = vmatpush2.bf16.msra.mxu0 0
      %574 = vmatprep.subr.bf16.mxu0 0
      %575 = vmatpush2.bf16.msra.mxu0 0
      %576 = vmatprep.subr.bf16.mxu0 0
      %577 = vmatpush2.bf16.msra.mxu0 0
      %578 = vmatprep.subr.bf16.mxu0 0
      %579 = vmatpush2.bf16.msra.mxu0 0
      %580 = vmatprep.subr.bf16.mxu0 0
      %581 = vmatpush2.bf16.msra.mxu0 0
      %582 = vmatprep.subr.bf16.mxu0 0
      %583 = vmatpush2.bf16.msra.mxu0 0
      %584 = vmatprep.mubr.bf16.mxu0 0
      %585 = vmatmul.mubr.bf16.gmra.mxu0 %v429
      %v586 = vpop.f32.mrf.mxu0
      %v587 = vadd.f32 0.0, %v586
      %v588 = vpop.f32.mrf.mxu0
      %v589 = vpop.f32.mrf.mxu0
      %v590 = vadd.f32 0.0, %v589
      %v591 = vpop.f32.mrf.mxu0
      %592 = vmatprep.mubr.bf16.mxu0 0
      %593 = vmatmul.mubr.bf16.gmra.mxu0 %v432
      %v594 = vpop.f32.mrf.mxu0
      %v595 = vadd.f32 0.0, %v594
      %v596 = vpop.f32.mrf.mxu0
      %v597 = vpop.f32.mrf.mxu0
      %v598 = vadd.f32 0.0, %v597
      %v599 = vpop.f32.mrf.mxu0
      %600 = vmatprep.mubr.bf16.mxu0 0
      %601 = vmatmul.mubr.bf16.gmra.mxu0 %v435
      %v602 = vpop.f32.mrf.mxu0
      %v603 = vadd.f32 0.0, %v602
      %v604 = vpop.f32.mrf.mxu0
      %v605 = vpop.f32.mrf.mxu0
      %v606 = vadd.f32 0.0, %v605
      %v607 = vpop.f32.mrf.mxu0
      %608 = vmatprep.mubr.bf16.mxu0 0
      %609 = vmatmul.mubr.bf16.gmra.mxu0 %v438
      %v610 = vpop.f32.mrf.mxu0
      %v611 = vadd.f32 0.0, %v610
      %v612 = vpop.f32.mrf.mxu0
      %v613 = vpop.f32.mrf.mxu0
      %v614 = vadd.f32 0.0, %v613
      %v615 = vpop.f32.mrf.mxu0
      %616 = vmatprep.mubr.bf16.mxu0 0
      %617 = vmatmul.mubr.bf16.gmra.mxu0 %v441
      %v618 = vpop.f32.mrf.mxu0
      %v619 = vadd.f32 0.0, %v618
      %v620 = vpop.f32.mrf.mxu0
      %v621 = vpop.f32.mrf.mxu0
      %v622 = vadd.f32 0.0, %v621
      %v623 = vpop.f32.mrf.mxu0
      %624 = vmatprep.mubr.bf16.mxu0 0
      %625 = vmatmul.mubr.bf16.gmra.mxu0 %v444
      %v626 = vpop.f32.mrf.mxu0
      %v627 = vadd.f32 0.0, %v626
      %v628 = vpop.f32.mrf.mxu0
      %v629 = vpop.f32.mrf.mxu0
      %v630 = vadd.f32 0.0, %v629
      %v631 = vpop.f32.mrf.mxu0
      %632 = vmatprep.mubr.bf16.mxu0 0
      %633 = vmatmul.mubr.bf16.gmra.mxu0 %v447
      %v634 = vpop.f32.mrf.mxu0
      %v635 = vadd.f32 0.0, %v634
      %v636 = vpop.f32.mrf.mxu0
      %v637 = vpop.f32.mrf.mxu0
      %v638 = vadd.f32 0.0, %v637
      %v639 = vpop.f32.mrf.mxu0
      %640 = vmatprep.mubr.bf16.mxu0 0
      %641 = vmatmul.mubr.bf16.gmra.mxu0 %v450
      %v642 = vpop.f32.mrf.mxu0
      %v643 = vadd.f32 0.0, %v642
      %v644 = vpop.f32.mrf.mxu0
      %v645 = vpop.f32.mrf.mxu0
      %v646 = vadd.f32 0.0, %v645
      %v647 = vpop.f32.mrf.mxu0
      %648 = vmatprep.mubr.bf16.mxu0 0
      %649 = vmatmul.mubr.bf16.gmra.mxu0 %v453
      %v650 = vpop.f32.mrf.mxu0
      %v651 = vadd.f32 0.0, %v650
      %v652 = vpop.f32.mrf.mxu0
      %v653 = vpop.f32.mrf.mxu0
      %v654 = vadd.f32 0.0, %v653
      %v655 = vpop.f32.mrf.mxu0
      %656 = vmatprep.mubr.bf16.mxu0 0
      %657 = vmatmul.mubr.bf16.gmra.mxu0 %v456
      %v658 = vpop.f32.mrf.mxu0
      %v659 = vadd.f32 0.0, %v658
      %v660 = vpop.f32.mrf.mxu0
      %v661 = vpop.f32.mrf.mxu0
      %v662 = vadd.f32 0.0, %v661
      %v663 = vpop.f32.mrf.mxu0
      %664 = vmatprep.mubr.bf16.mxu0 0
      %665 = vmatmul.mubr.bf16.gmra.mxu0 %v459
      %v666 = vpop.f32.mrf.mxu0
      %v667 = vadd.f32 0.0, %v666
      %v668 = vpop.f32.mrf.mxu0
      %v669 = vpop.f32.mrf.mxu0
      %v670 = vadd.f32 0.0, %v669
      %v671 = vpop.f32.mrf.mxu0
      %672 = vmatprep.mubr.bf16.mxu0 0
      %673 = vmatmul.mubr.bf16.gmra.mxu0 %v462
      %v674 = vpop.f32.mrf.mxu0
      %v675 = vadd.f32 0.0, %v674
      %v676 = vpop.f32.mrf.mxu0
      %v677 = vpop.f32.mrf.mxu0
      %v678 = vadd.f32 0.0, %v677
      %v679 = vpop.f32.mrf.mxu0
      %680 = vmatprep.mubr.bf16.mxu0 0
      %681 = vmatmul.mubr.bf16.gmra.mxu0 %v465
      %v682 = vpop.f32.mrf.mxu0
      %v683 = vadd.f32 0.0, %v682
      %v684 = vpop.f32.mrf.mxu0
      %v685 = vpop.f32.mrf.mxu0
      %v686 = vadd.f32 0.0, %v685
      %v687 = vpop.f32.mrf.mxu0
      %688 = vmatprep.mubr.bf16.mxu0 0
      %689 = vmatmul.mubr.bf16.gmra.mxu0 %v468
      %v690 = vpop.f32.mrf.mxu0
      %v691 = vadd.f32 0.0, %v690
      %v692 = vpop.f32.mrf.mxu0
      %v693 = vpop.f32.mrf.mxu0
      %v694 = vadd.f32 0.0, %v693
      %v695 = vpop.f32.mrf.mxu0
      %696 = vmatprep.mubr.bf16.mxu0 0
      %697 = vmatmul.mubr.bf16.gmra.mxu0 %v471
      %v698 = vpop.f32.mrf.mxu0
      %v699 = vadd.f32 0.0, %v698
      %v700 = vpop.f32.mrf.mxu0
      %v701 = vpop.f32.mrf.mxu0
      %v702 = vadd.f32 0.0, %v701
      %v703 = vpop.f32.mrf.mxu0
      %704 = vmatprep.mubr.bf16.mxu0 0
      %705 = vmatmul.mubr.bf16.gmra.mxu0 %v474
      %v706 = vpop.f32.mrf.mxu0
      %v707 = vadd.f32 0.0, %v706
      %v708 = vpop.f32.mrf.mxu0
      %v709 = vpop.f32.mrf.mxu0
      %v710 = vadd.f32 0.0, %v709
      %v711 = vpop.f32.mrf.mxu0
      %712 = vmatprep.mubr.bf16.mxu0 0
      %713 = vmatmul.mubr.bf16.gmra.mxu0 %v477
      %v714 = vpop.f32.mrf.mxu0
      %v715 = vadd.f32 0.0, %v714
      %v716 = vpop.f32.mrf.mxu0
      %v717 = vpop.f32.mrf.mxu0
      %v718 = vadd.f32 0.0, %v717
      %v719 = vpop.f32.mrf.mxu0
      %720 = vmatprep.mubr.bf16.mxu0 0
      %721 = vmatmul.mubr.bf16.gmra.mxu0 %v480
      %v722 = vpop.f32.mrf.mxu0
      %v723 = vadd.f32 0.0, %v722
      %v724 = vpop.f32.mrf.mxu0
      %v725 = vpop.f32.mrf.mxu0
      %v726 = vadd.f32 0.0, %v725
      %v727 = vpop.f32.mrf.mxu0
      %728 = vmatprep.mubr.bf16.mxu0 0
      %729 = vmatmul.mubr.bf16.gmra.mxu0 %v483
      %v730 = vpop.f32.mrf.mxu0
      %v731 = vadd.f32 0.0, %v730
      %v732 = vpop.f32.mrf.mxu0
      %v733 = vpop.f32.mrf.mxu0
      %v734 = vadd.f32 0.0, %v733
      %v735 = vpop.f32.mrf.mxu0
      %736 = vmatprep.mubr.bf16.mxu0 0
      %737 = vmatmul.mubr.bf16.gmra.mxu0 %v486
      %v738 = vpop.f32.mrf.mxu0
      %v739 = vadd.f32 0.0, %v738
      %v740 = vpop.f32.mrf.mxu0
      %v741 = vpop.f32.mrf.mxu0
      %v742 = vadd.f32 0.0, %v741
      %v743 = vpop.f32.mrf.mxu0
      %744 = vmatprep.mubr.bf16.mxu0 0
      %745 = vmatmul.mubr.bf16.gmra.mxu0 %v489
      %v746 = vpop.f32.mrf.mxu0
      %v747 = vadd.f32 0.0, %v746
      %v748 = vpop.f32.mrf.mxu0
      %v749 = vpop.f32.mrf.mxu0
      %v750 = vadd.f32 0.0, %v749
      %v751 = vpop.f32.mrf.mxu0
      %752 = vmatprep.mubr.bf16.mxu0 0
      %753 = vmatmul.mubr.bf16.gmra.mxu0 %v492
      %v754 = vpop.f32.mrf.mxu0
      %v755 = vadd.f32 0.0, %v754
      %v756 = vpop.f32.mrf.mxu0
      %v757 = vpop.f32.mrf.mxu0
      %v758 = vadd.f32 0.0, %v757
      %v759 = vpop.f32.mrf.mxu0
      %760 = vmatprep.mubr.bf16.mxu0 0
      %761 = vmatmul.mubr.bf16.gmra.mxu0 %v495
      %v762 = vpop.f32.mrf.mxu0
      %v763 = vadd.f32 0.0, %v762
      %v764 = vpop.f32.mrf.mxu0
      %v765 = vpop.f32.mrf.mxu0
      %v766 = vadd.f32 0.0, %v765
      %v767 = vpop.f32.mrf.mxu0
      %768 = vmatprep.mubr.bf16.mxu0 0
      %769 = vmatmul.mubr.bf16.gmra.mxu0 %v498
      %v770 = vpop.f32.mrf.mxu0
      %v771 = vadd.f32 0.0, %v770
      %v772 = vpop.f32.mrf.mxu0
      %v773 = vpop.f32.mrf.mxu0
      %v774 = vadd.f32 0.0, %v773
      %v775 = vpop.f32.mrf.mxu0
      %776 = vmatprep.mubr.bf16.mxu0 0
      %777 = vmatmul.mubr.bf16.gmra.mxu0 %v501
      %v778 = vpop.f32.mrf.mxu0
      %v779 = vadd.f32 0.0, %v778
      %v780 = vpop.f32.mrf.mxu0
      %v781 = vpop.f32.mrf.mxu0
      %v782 = vadd.f32 0.0, %v781
      %v783 = vpop.f32.mrf.mxu0
      %784 = vmatprep.mubr.bf16.mxu0 0
      %785 = vmatmul.mubr.bf16.gmra.mxu0 %v504
      %v786 = vpop.f32.mrf.mxu0
      %v787 = vadd.f32 0.0, %v786
      %v788 = vpop.f32.mrf.mxu0
      %v789 = vpop.f32.mrf.mxu0
      %v790 = vadd.f32 0.0, %v789
      %v791 = vpop.f32.mrf.mxu0
      %792 = vmatprep.mubr.bf16.mxu0 0
      %793 = vmatmul.mubr.bf16.gmra.mxu0 %v507
      %v794 = vpop.f32.mrf.mxu0
      %v795 = vadd.f32 0.0, %v794
      %v796 = vpop.f32.mrf.mxu0
      %v797 = vpop.f32.mrf.mxu0
      %v798 = vadd.f32 0.0, %v797
      %v799 = vpop.f32.mrf.mxu0
      %800 = vmatprep.mubr.bf16.mxu0 0
      %801 = vmatmul.mubr.bf16.gmra.mxu0 %v510
      %v802 = vpop.f32.mrf.mxu0
      %v803 = vadd.f32 0.0, %v802
      %v804 = vpop.f32.mrf.mxu0
      %v805 = vpop.f32.mrf.mxu0
      %v806 = vadd.f32 0.0, %v805
      %v807 = vpop.f32.mrf.mxu0
      %808 = vmatprep.mubr.bf16.mxu0 0
      %809 = vmatmul.mubr.bf16.gmra.mxu0 %v513
      %v810 = vpop.f32.mrf.mxu0
      %v811 = vadd.f32 0.0, %v810
      %v812 = vpop.f32.mrf.mxu0
      %v813 = vpop.f32.mrf.mxu0
      %v814 = vadd.f32 0.0, %v813
      %v815 = vpop.f32.mrf.mxu0
      %816 = vmatprep.mubr.bf16.mxu0 0
      %817 = vmatmul.mubr.bf16.gmra.mxu0 %v516
      %v818 = vpop.f32.mrf.mxu0
      %v819 = vadd.f32 0.0, %v818
      %v820 = vpop.f32.mrf.mxu0
      %v821 = vpop.f32.mrf.mxu0
      %v822 = vadd.f32 0.0, %v821
      %v823 = vpop.f32.mrf.mxu0
      %824 = vmatprep.mubr.bf16.mxu0 0
      %825 = vmatmul.mubr.bf16.gmra.mxu0 %v519
      %v826 = vpop.f32.mrf.mxu0
      %v827 = vadd.f32 0.0, %v826
      %v828 = vpop.f32.mrf.mxu0
      %v829 = vpop.f32.mrf.mxu0
      %v830 = vadd.f32 0.0, %v829
      %v831 = vpop.f32.mrf.mxu0
      %832 = vmatprep.mubr.bf16.mxu0 0
      %833 = vmatmul.mubr.bf16.gmra.mxu0 %v522
      %v834 = vpop.f32.mrf.mxu0
      %v835 = vadd.f32 0.0, %v834
      %v836 = vpop.f32.mrf.mxu0
      %v837 = vpop.f32.mrf.mxu0
      %v838 = vadd.f32 0.0, %v837
      %v839 = vpop.f32.mrf.mxu0
      %840 = vmatprep.mubr.bf16.mxu0 0
      %841 = vmatmul.mubr.bf16.gmra.mxu0 %v525
      %v842 = vpop.f32.mrf.mxu0
      %v843 = vadd.f32 0.0, %v842
      %v844 = vpop.f32.mrf.mxu0
      %v845 = vpop.f32.mrf.mxu0
      %v846 = vadd.f32 0.0, %v845
      %v847 = vpop.f32.mrf.mxu0
      %848 = vmatprep.mubr.bf16.mxu0 0
      %849 = vmatmul.mubr.bf16.gmra.mxu0 %v528
      %v850 = vpop.f32.mrf.mxu0
      %v851 = vadd.f32 0.0, %v850
      %v852 = vpop.f32.mrf.mxu0
      %v853 = vpop.f32.mrf.mxu0
      %v854 = vadd.f32 0.0, %v853
      %v855 = vpop.f32.mrf.mxu0
      %856 = vmatprep.mubr.bf16.mxu0 0
      %857 = vmatmul.mubr.bf16.gmra.mxu0 %v531
      %v858 = vpop.f32.mrf.mxu0
      %v859 = vadd.f32 0.0, %v858
      %v860 = vpop.f32.mrf.mxu0
      %v861 = vpop.f32.mrf.mxu0
      %v862 = vadd.f32 0.0, %v861
      %v863 = vpop.f32.mrf.mxu0
      %864 = vmatprep.mubr.bf16.mxu0 0
      %865 = vmatmul.mubr.bf16.gmra.mxu0 %v534
      %v866 = vpop.f32.mrf.mxu0
      %v867 = vadd.f32 0.0, %v866
      %v868 = vpop.f32.mrf.mxu0
      %v869 = vpop.f32.mrf.mxu0
      %v870 = vadd.f32 0.0, %v869
      %v871 = vpop.f32.mrf.mxu0
      %872 = vmatprep.mubr.bf16.mxu0 0
      %873 = vmatmul.mubr.bf16.gmra.mxu0 %v537
      %v874 = vpop.f32.mrf.mxu0
      %v875 = vadd.f32 0.0, %v874
      %v876 = vpop.f32.mrf.mxu0
      %v877 = vpop.f32.mrf.mxu0
      %v878 = vadd.f32 0.0, %v877
      %v879 = vpop.f32.mrf.mxu0
      %880 = vmatprep.mubr.bf16.mxu0 0
      %881 = vmatmul.mubr.bf16.gmra.mxu0 %v540
      %v882 = vpop.f32.mrf.mxu0
      %v883 = vadd.f32 0.0, %v882
      %v884 = vpop.f32.mrf.mxu0
      %v885 = vpop.f32.mrf.mxu0
      %v886 = vadd.f32 0.0, %v885
      %v887 = vpop.f32.mrf.mxu0
      %888 = vmatprep.mubr.bf16.mxu0 0
      %889 = vmatmul.mubr.bf16.gmra.mxu0 %v543
      %v890 = vpop.f32.mrf.mxu0
      %v891 = vadd.f32 0.0, %v890
      %v892 = vpop.f32.mrf.mxu0
      %v893 = vpop.f32.mrf.mxu0
      %v894 = vadd.f32 0.0, %v893
      %v895 = vpop.f32.mrf.mxu0
      %896 = vmatprep.mubr.bf16.mxu0 0
      %897 = vmatmul.mubr.bf16.gmra.mxu0 %v546
      %v898 = vpop.f32.mrf.mxu0
      %v899 = vadd.f32 0.0, %v898
      %v900 = vpop.f32.mrf.mxu0
      %v901 = vpop.f32.mrf.mxu0
      %v902 = vadd.f32 0.0, %v901
      %v903 = vpop.f32.mrf.mxu0
      %904 = vdwg.mxu0
      %vm977 = vcmask 1046528
      %v978 = vrot.slane %v587, 1
      %v979 = vrot.slane %v590, 1
      %v980 = vsel %vm977, %v978, %v979
      %v981 = vrot.slane %v595, 1
      %v982 = vsel %vm977, %v979, %v981
      %v983 = vrot.slane %v598, 1
      %v984 = vsel %vm977, %v981, %v983
      %v985 = vrot.slane %v603, 1
      %v986 = vrot.slane %v606, 1
      %v987 = vsel %vm977, %v985, %v986
      %v988 = vrot.slane %v611, 1
      %v989 = vsel %vm977, %v986, %v988
      %v990 = vrot.slane %v614, 1
      %v991 = vsel %vm977, %v988, %v990
      %v992 = vrot.slane %v619, 1
      %v993 = vrot.slane %v622, 1
      %v994 = vsel %vm977, %v992, %v993
      %v995 = vrot.slane %v627, 1
      %v996 = vsel %vm977, %v993, %v995
      %v997 = vrot.slane %v630, 1
      %v998 = vsel %vm977, %v995, %v997
      %v999 = vrot.slane %v635, 1
      %v1000 = vrot.slane %v638, 1
      %v1001 = vsel %vm977, %v999, %v1000
      %v1002 = vrot.slane %v643, 1
      %v1003 = vsel %vm977, %v1000, %v1002
      %v1004 = vrot.slane %v646, 1
      %v1005 = vsel %vm977, %v1002, %v1004
      %v1006 = vrot.slane %v651, 1
      %v1007 = vrot.slane %v654, 1
      %v1008 = vsel %vm977, %v1006, %v1007
      %v1009 = vrot.slane %v659, 1
      %v1010 = vsel %vm977, %v1007, %v1009
      %v1011 = vrot.slane %v662, 1
      %v1012 = vsel %vm977, %v1009, %v1011
      %v1013 = vrot.slane %v667, 1
      %v1014 = vrot.slane %v670, 1
      %v1015 = vsel %vm977, %v1013, %v1014
      %v1016 = vrot.slane %v675, 1
      %v1017 = vsel %vm977, %v1014, %v1016
      %v1018 = vrot.slane %v678, 1
      %v1019 = vsel %vm977, %v1016, %v1018
      %v1020 = vrot.slane %v683, 1
      %v1021 = vrot.slane %v686, 1
      %v1022 = vsel %vm977, %v1020, %v1021
      %v1023 = vrot.slane %v691, 1
      %v1024 = vsel %vm977, %v1021, %v1023
      %v1025 = vrot.slane %v694, 1
      %v1026 = vsel %vm977, %v1023, %v1025
      %v1027 = vrot.slane %v699, 1
      %v1028 = vrot.slane %v702, 1
      %v1029 = vsel %vm977, %v1027, %v1028
      %v1030 = vrot.slane %v707, 1
      %v1031 = vsel %vm977, %v1028, %v1030
      %v1032 = vrot.slane %v710, 1
      %v1033 = vsel %vm977, %v1030, %v1032
      %v1034 = vrot.slane %v715, 1
      %v1035 = vrot.slane %v718, 1
      %v1036 = vsel %vm977, %v1034, %v1035
      %v1037 = vrot.slane %v723, 1
      %v1038 = vsel %vm977, %v1035, %v1037
      %v1039 = vrot.slane %v726, 1
      %v1040 = vsel %vm977, %v1037, %v1039
      %v1041 = vrot.slane %v731, 1
      %v1042 = vrot.slane %v734, 1
      %v1043 = vsel %vm977, %v1041, %v1042
      %v1044 = vrot.slane %v739, 1
      %v1045 = vsel %vm977, %v1042, %v1044
      %v1046 = vrot.slane %v742, 1
      %v1047 = vsel %vm977, %v1044, %v1046
      %v1048 = vrot.slane %v747, 1
      %v1049 = vrot.slane %v750, 1
      %v1050 = vsel %vm977, %v1048, %v1049
      %v1051 = vrot.slane %v755, 1
      %v1052 = vsel %vm977, %v1049, %v1051
      %v1053 = vrot.slane %v758, 1
      %v1054 = vsel %vm977, %v1051, %v1053
      %v1055 = vrot.slane %v763, 1
      %v1056 = vrot.slane %v766, 1
      %v1057 = vsel %vm977, %v1055, %v1056
      %v1058 = vrot.slane %v771, 1
      %v1059 = vsel %vm977, %v1056, %v1058
      %v1060 = vrot.slane %v774, 1
      %v1061 = vsel %vm977, %v1058, %v1060
      %v1062 = vrot.slane %v779, 1
      %v1063 = vrot.slane %v782, 1
      %v1064 = vsel %vm977, %v1062, %v1063
      %v1065 = vrot.slane %v787, 1
      %v1066 = vsel %vm977, %v1063, %v1065
      %v1067 = vrot.slane %v790, 1
      %v1068 = vsel %vm977, %v1065, %v1067
      %v1069 = vrot.slane %v795, 1
      %v1070 = vrot.slane %v798, 1
      %v1071 = vsel %vm977, %v1069, %v1070
      %v1072 = vrot.slane %v803, 1
      %v1073 = vsel %vm977, %v1070, %v1072
      %v1074 = vrot.slane %v806, 1
      %v1075 = vsel %vm977, %v1072, %v1074
      %v1076 = vrot.slane %v811, 1
      %v1077 = vrot.slane %v814, 1
      %v1078 = vsel %vm977, %v1076, %v1077
      %v1079 = vrot.slane %v819, 1
      %v1080 = vsel %vm977, %v1077, %v1079
      %v1081 = vrot.slane %v822, 1
      %v1082 = vsel %vm977, %v1079, %v1081
      %v1083 = vrot.slane %v827, 1
      %v1084 = vrot.slane %v830, 1
      %v1085 = vsel %vm977, %v1083, %v1084
      %v1086 = vrot.slane %v835, 1
      %v1087 = vsel %vm977, %v1084, %v1086
      %v1088 = vrot.slane %v838, 1
      %v1089 = vsel %vm977, %v1086, %v1088
      %v1090 = vrot.slane %v843, 1
      %v1091 = vrot.slane %v846, 1
      %v1092 = vsel %vm977, %v1090, %v1091
      %v1093 = vrot.slane %v851, 1
      %v1094 = vsel %vm977, %v1091, %v1093
      %v1095 = vrot.slane %v854, 1
      %v1096 = vsel %vm977, %v1093, %v1095
      %v1097 = vrot.slane %v859, 1
      %v1098 = vrot.slane %v862, 1
      %v1099 = vsel %vm977, %v1097, %v1098
      %v1100 = vrot.slane %v867, 1
      %v1101 = vsel %vm977, %v1098, %v1100
      %v1102 = vrot.slane %v870, 1
      %v1103 = vsel %vm977, %v1100, %v1102
      %1104 = vrot.lane.b32.xlu0 %v980, 124
      %v1105 = vpop.permute.xlu0 %1104
      %1106 = vrot.lane.b32.xlu0 %v982, 124
      %v1107 = vpop.permute.xlu0 %1106
      %1108 = vrot.lane.b32.xlu0 %v984, 124
      %v1109 = vpop.permute.xlu0 %1108
      %1110 = vrot.lane.b32.xlu0 %v987, 124
      %v1111 = vpop.permute.xlu0 %1110
      %1112 = vrot.lane.b32.xlu0 %v989, 124
      %v1113 = vpop.permute.xlu0 %1112
      %1114 = vrot.lane.b32.xlu0 %v991, 124
      %v1115 = vpop.permute.xlu0 %1114
      %1116 = vrot.lane.b32.xlu0 %v994, 124
      %v1117 = vpop.permute.xlu0 %1116
      %1118 = vrot.lane.b32.xlu0 %v996, 124
      %v1119 = vpop.permute.xlu0 %1118
      %1120 = vrot.lane.b32.xlu0 %v998, 124
      %v1121 = vpop.permute.xlu0 %1120
      %1122 = vrot.lane.b32.xlu0 %v1001, 124
      %v1123 = vpop.permute.xlu0 %1122
      %1124 = vrot.lane.b32.xlu0 %v1003, 124
      %v1125 = vpop.permute.xlu0 %1124
      %1126 = vrot.lane.b32.xlu0 %v1005, 124
      %v1127 = vpop.permute.xlu0 %1126
      %1128 = vrot.lane.b32.xlu0 %v1008, 124
      %v1129 = vpop.permute.xlu0 %1128
      %1130 = vrot.lane.b32.xlu0 %v1010, 124
      %v1131 = vpop.permute.xlu0 %1130
      %1132 = vrot.lane.b32.xlu0 %v1012, 124
      %v1133 = vpop.permute.xlu0 %1132
      %1134 = vrot.lane.b32.xlu0 %v1015, 124
      %v1135 = vpop.permute.xlu0 %1134
      %1136 = vrot.lane.b32.xlu0 %v1017, 124
      %v1137 = vpop.permute.xlu0 %1136
      %1138 = vrot.lane.b32.xlu0 %v1019, 124
      %v1139 = vpop.permute.xlu0 %1138
      %1140 = vrot.lane.b32.xlu0 %v1022, 124
      %v1141 = vpop.permute.xlu0 %1140
      %1142 = vrot.lane.b32.xlu0 %v1024, 124
      %v1143 = vpop.permute.xlu0 %1142
      %1144 = vrot.lane.b32.xlu0 %v1026, 124
      %v1145 = vpop.permute.xlu0 %1144
      %1146 = vrot.lane.b32.xlu0 %v1029, 124
      %v1147 = vpop.permute.xlu0 %1146
      %1148 = vrot.lane.b32.xlu0 %v1031, 124
      %v1149 = vpop.permute.xlu0 %1148
      %1150 = vrot.lane.b32.xlu0 %v1033, 124
      %v1151 = vpop.permute.xlu0 %1150
      %1152 = vrot.lane.b32.xlu0 %v1036, 124
      %v1153 = vpop.permute.xlu0 %1152
      %1154 = vrot.lane.b32.xlu0 %v1038, 124
      %v1155 = vpop.permute.xlu0 %1154
      %1156 = vrot.lane.b32.xlu0 %v1040, 124
      %v1157 = vpop.permute.xlu0 %1156
      %1158 = vrot.lane.b32.xlu0 %v1043, 124
      %v1159 = vpop.permute.xlu0 %1158
      %1160 = vrot.lane.b32.xlu0 %v1045, 124
      %v1161 = vpop.permute.xlu0 %1160
      %1162 = vrot.lane.b32.xlu0 %v1047, 124
      %v1163 = vpop.permute.xlu0 %1162
      %1164 = vrot.lane.b32.xlu0 %v1050, 124
      %v1165 = vpop.permute.xlu0 %1164
      %1166 = vrot.lane.b32.xlu0 %v1052, 124
      %v1167 = vpop.permute.xlu0 %1166
      %1168 = vrot.lane.b32.xlu0 %v1054, 124
      %v1169 = vpop.permute.xlu0 %1168
      %1170 = vrot.lane.b32.xlu0 %v1057, 124
      %v1171 = vpop.permute.xlu0 %1170
      %1172 = vrot.lane.b32.xlu0 %v1059, 124
      %v1173 = vpop.permute.xlu0 %1172
      %1174 = vrot.lane.b32.xlu0 %v1061, 124
      %v1175 = vpop.permute.xlu0 %1174
      %1176 = vrot.lane.b32.xlu0 %v1064, 124
      %v1177 = vpop.permute.xlu0 %1176
      %1178 = vrot.lane.b32.xlu0 %v1066, 124
      %v1179 = vpop.permute.xlu0 %1178
      %1180 = vrot.lane.b32.xlu0 %v1068, 124
      %v1181 = vpop.permute.xlu0 %1180
      %1182 = vrot.lane.b32.xlu0 %v1071, 124
      %v1183 = vpop.permute.xlu0 %1182
      %1184 = vrot.lane.b32.xlu0 %v1073, 124
      %v1185 = vpop.permute.xlu0 %1184
      %1186 = vrot.lane.b32.xlu0 %v1075, 124
      %v1187 = vpop.permute.xlu0 %1186
      %1188 = vrot.lane.b32.xlu0 %v1078, 124
      %v1189 = vpop.permute.xlu0 %1188
      %1190 = vrot.lane.b32.xlu0 %v1080, 124
      %v1191 = vpop.permute.xlu0 %1190
      %1192 = vrot.lane.b32.xlu0 %v1082, 124
      %v1193 = vpop.permute.xlu0 %1192
      %1194 = vrot.lane.b32.xlu0 %v1085, 124
      %v1195 = vpop.permute.xlu0 %1194
      %1196 = vrot.lane.b32.xlu0 %v1087, 124
      %v1197 = vpop.permute.xlu0 %1196
      %1198 = vrot.lane.b32.xlu0 %v1089, 124
      %v1199 = vpop.permute.xlu0 %1198
      %1200 = vrot.lane.b32.xlu0 %v1092, 124
      %v1201 = vpop.permute.xlu0 %1200
      %1202 = vrot.lane.b32.xlu0 %v1094, 124
      %v1203 = vpop.permute.xlu0 %1202
      %1204 = vrot.lane.b32.xlu0 %v1096, 124
      %v1205 = vpop.permute.xlu0 %1204
      %1206 = vrot.lane.b32.xlu0 %v1099, 124
      %v1207 = vpop.permute.xlu0 %1206
      %1208 = vrot.lane.b32.xlu0 %v1101, 124
      %v1209 = vpop.permute.xlu0 %1208
      %1210 = vrot.lane.b32.xlu0 %v1103, 124
      %v1211 = vpop.permute.xlu0 %1210
      %v1266 = vadd.f32 %v587, %v1105
      %v1267 = vadd.f32 %v590, %v1107
      %v1268 = vadd.f32 %v595, %v1109
      %v1269 = vadd.f32 %v603, %v1111
      %v1270 = vadd.f32 %v606, %v1113
      %v1271 = vadd.f32 %v611, %v1115
      %v1272 = vadd.f32 %v619, %v1117
      %v1273 = vadd.f32 %v622, %v1119
      %v1274 = vadd.f32 %v627, %v1121
      %v1275 = vadd.f32 %v635, %v1123
      %v1276 = vadd.f32 %v638, %v1125
      %v1277 = vadd.f32 %v643, %v1127
      %v1278 = vadd.f32 %v651, %v1129
      %v1279 = vadd.f32 %v654, %v1131
      %v1280 = vadd.f32 %v659, %v1133
      %v1281 = vadd.f32 %v667, %v1135
      %v1282 = vadd.f32 %v670, %v1137
      %v1283 = vadd.f32 %v675, %v1139
      %v1284 = vadd.f32 %v683, %v1141
      %v1285 = vadd.f32 %v686, %v1143
      %v1286 = vadd.f32 %v691, %v1145
      %v1287 = vadd.f32 %v699, %v1147
      %v1288 = vadd.f32 %v702, %v1149
      %v1289 = vadd.f32 %v707, %v1151
      %v1290 = vadd.f32 %v715, %v1153
      %v1291 = vadd.f32 %v718, %v1155
      %v1292 = vadd.f32 %v723, %v1157
      %v1293 = vadd.f32 %v731, %v1159
      %v1294 = vadd.f32 %v734, %v1161
      %v1295 = vadd.f32 %v739, %v1163
      %v1296 = vadd.f32 %v747, %v1165
      %v1297 = vadd.f32 %v750, %v1167
      %v1298 = vadd.f32 %v755, %v1169
      %v1299 = vadd.f32 %v763, %v1171
      %v1300 = vadd.f32 %v766, %v1173
      %v1301 = vadd.f32 %v771, %v1175
      %v1302 = vadd.f32 %v779, %v1177
      %v1303 = vadd.f32 %v782, %v1179
      %v1304 = vadd.f32 %v787, %v1181
      %v1305 = vadd.f32 %v795, %v1183
      %v1306 = vadd.f32 %v798, %v1185
      %v1307 = vadd.f32 %v803, %v1187
      %v1308 = vadd.f32 %v811, %v1189
      %v1309 = vadd.f32 %v814, %v1191
      %v1310 = vadd.f32 %v819, %v1193
      %v1311 = vadd.f32 %v827, %v1195
      %v1312 = vadd.f32 %v830, %v1197
      %v1313 = vadd.f32 %v835, %v1199
      %v1314 = vadd.f32 %v843, %v1201
      %v1315 = vadd.f32 %v846, %v1203
      %v1316 = vadd.f32 %v851, %v1205
      %v1317 = vadd.f32 %v859, %v1207
      %v1318 = vadd.f32 %v862, %v1209
      %v1319 = vadd.f32 %v867, %v1211
      %vm1320 = vcmask 1045504
      %v1321 = vrot.slane %v587, 2
      %v1322 = vrot.slane %v590, 2
      %v1323 = vsel %vm1320, %v1321, %v1322
      %v1324 = vrot.slane %v595, 2
      %v1325 = vsel %vm1320, %v1322, %v1324
      %v1326 = vrot.slane %v598, 2
      %v1327 = vsel %vm1320, %v1324, %v1326
      %v1328 = vrot.slane %v603, 2
      %v1329 = vrot.slane %v606, 2
      %v1330 = vsel %vm1320, %v1328, %v1329
      %v1331 = vrot.slane %v611, 2
      %v1332 = vsel %vm1320, %v1329, %v1331
      %v1333 = vrot.slane %v614, 2
      %v1334 = vsel %vm1320, %v1331, %v1333
      %v1335 = vrot.slane %v619, 2
      %v1336 = vrot.slane %v622, 2
      %v1337 = vsel %vm1320, %v1335, %v1336
      %v1338 = vrot.slane %v627, 2
      %v1339 = vsel %vm1320, %v1336, %v1338
      %v1340 = vrot.slane %v630, 2
      %v1341 = vsel %vm1320, %v1338, %v1340
      %v1342 = vrot.slane %v635, 2
      %v1343 = vrot.slane %v638, 2
      %v1344 = vsel %vm1320, %v1342, %v1343
      %v1345 = vrot.slane %v643, 2
      %v1346 = vsel %vm1320, %v1343, %v1345
      %v1347 = vrot.slane %v646, 2
      %v1348 = vsel %vm1320, %v1345, %v1347
      %v1349 = vrot.slane %v651, 2
      %v1350 = vrot.slane %v654, 2
      %v1351 = vsel %vm1320, %v1349, %v1350
      %v1352 = vrot.slane %v659, 2
      %v1353 = vsel %vm1320, %v1350, %v1352
      %v1354 = vrot.slane %v662, 2
      %v1355 = vsel %vm1320, %v1352, %v1354
      %v1356 = vrot.slane %v667, 2
      %v1357 = vrot.slane %v670, 2
      %v1358 = vsel %vm1320, %v1356, %v1357
      %v1359 = vrot.slane %v675, 2
      %v1360 = vsel %vm1320, %v1357, %v1359
      %v1361 = vrot.slane %v678, 2
      %v1362 = vsel %vm1320, %v1359, %v1361
      %v1363 = vrot.slane %v683, 2
      %v1364 = vrot.slane %v686, 2
      %v1365 = vsel %vm1320, %v1363, %v1364
      %v1366 = vrot.slane %v691, 2
      %v1367 = vsel %vm1320, %v1364, %v1366
      %v1368 = vrot.slane %v694, 2
      %v1369 = vsel %vm1320, %v1366, %v1368
      %v1370 = vrot.slane %v699, 2
      %v1371 = vrot.slane %v702, 2
      %v1372 = vsel %vm1320, %v1370, %v1371
      %v1373 = vrot.slane %v707, 2
      %v1374 = vsel %vm1320, %v1371, %v1373
      %v1375 = vrot.slane %v710, 2
      %v1376 = vsel %vm1320, %v1373, %v1375
      %v1377 = vrot.slane %v715, 2
      %v1378 = vrot.slane %v718, 2
      %v1379 = vsel %vm1320, %v1377, %v1378
      %v1380 = vrot.slane %v723, 2
      %v1381 = vsel %vm1320, %v1378, %v1380
      %v1382 = vrot.slane %v726, 2
      %v1383 = vsel %vm1320, %v1380, %v1382
      %v1384 = vrot.slane %v731, 2
      %v1385 = vrot.slane %v734, 2
      %v1386 = vsel %vm1320, %v1384, %v1385
      %v1387 = vrot.slane %v739, 2
      %v1388 = vsel %vm1320, %v1385, %v1387
      %v1389 = vrot.slane %v742, 2
      %v1390 = vsel %vm1320, %v1387, %v1389
      %v1391 = vrot.slane %v747, 2
      %v1392 = vrot.slane %v750, 2
      %v1393 = vsel %vm1320, %v1391, %v1392
      %v1394 = vrot.slane %v755, 2
      %v1395 = vsel %vm1320, %v1392, %v1394
      %v1396 = vrot.slane %v758, 2
      %v1397 = vsel %vm1320, %v1394, %v1396
      %v1398 = vrot.slane %v763, 2
      %v1399 = vrot.slane %v766, 2
      %v1400 = vsel %vm1320, %v1398, %v1399
      %v1401 = vrot.slane %v771, 2
      %v1402 = vsel %vm1320, %v1399, %v1401
      %v1403 = vrot.slane %v774, 2
      %v1404 = vsel %vm1320, %v1401, %v1403
      %v1405 = vrot.slane %v779, 2
      %v1406 = vrot.slane %v782, 2
      %v1407 = vsel %vm1320, %v1405, %v1406
      %v1408 = vrot.slane %v787, 2
      %v1409 = vsel %vm1320, %v1406, %v1408
      %v1410 = vrot.slane %v790, 2
      %v1411 = vsel %vm1320, %v1408, %v1410
      %v1412 = vrot.slane %v795, 2
      %v1413 = vrot.slane %v798, 2
      %v1414 = vsel %vm1320, %v1412, %v1413
      %v1415 = vrot.slane %v803, 2
      %v1416 = vsel %vm1320, %v1413, %v1415
      %v1417 = vrot.slane %v806, 2
      %v1418 = vsel %vm1320, %v1415, %v1417
      %v1419 = vrot.slane %v811, 2
      %v1420 = vrot.slane %v814, 2
      %v1421 = vsel %vm1320, %v1419, %v1420
      %v1422 = vrot.slane %v819, 2
      %v1423 = vsel %vm1320, %v1420, %v1422
      %v1424 = vrot.slane %v822, 2
      %v1425 = vsel %vm1320, %v1422, %v1424
      %v1426 = vrot.slane %v827, 2
      %v1427 = vrot.slane %v830, 2
      %v1428 = vsel %vm1320, %v1426, %v1427
      %v1429 = vrot.slane %v835, 2
      %v1430 = vsel %vm1320, %v1427, %v1429
      %v1431 = vrot.slane %v838, 2
      %v1432 = vsel %vm1320, %v1429, %v1431
      %v1433 = vrot.slane %v843, 2
      %v1434 = vrot.slane %v846, 2
      %v1435 = vsel %vm1320, %v1433, %v1434
      %v1436 = vrot.slane %v851, 2
      %v1437 = vsel %vm1320, %v1434, %v1436
      %v1438 = vrot.slane %v854, 2
      %v1439 = vsel %vm1320, %v1436, %v1438
      %v1440 = vrot.slane %v859, 2
      %v1441 = vrot.slane %v862, 2
      %v1442 = vsel %vm1320, %v1440, %v1441
      %v1443 = vrot.slane %v867, 2
      %v1444 = vsel %vm1320, %v1441, %v1443
      %v1445 = vrot.slane %v870, 2
      %v1446 = vsel %vm1320, %v1443, %v1445
      %1447 = vrot.lane.b32.xlu0 %v1323, 120
      %v1448 = vpop.permute.xlu0 %1447
      %1449 = vrot.lane.b32.xlu0 %v1325, 120
      %v1450 = vpop.permute.xlu0 %1449
      %1451 = vrot.lane.b32.xlu0 %v1327, 120
      %v1452 = vpop.permute.xlu0 %1451
      %1453 = vrot.lane.b32.xlu0 %v1330, 120
      %v1454 = vpop.permute.xlu0 %1453
      %1455 = vrot.lane.b32.xlu0 %v1332, 120
      %v1456 = vpop.permute.xlu0 %1455
      %1457 = vrot.lane.b32.xlu0 %v1334, 120
      %v1458 = vpop.permute.xlu0 %1457
      %1459 = vrot.lane.b32.xlu0 %v1337, 120
      %v1460 = vpop.permute.xlu0 %1459
      %1461 = vrot.lane.b32.xlu0 %v1339, 120
      %v1462 = vpop.permute.xlu0 %1461
      %1463 = vrot.lane.b32.xlu0 %v1341, 120
      %v1464 = vpop.permute.xlu0 %1463
      %1465 = vrot.lane.b32.xlu0 %v1344, 120
      %v1466 = vpop.permute.xlu0 %1465
      %1467 = vrot.lane.b32.xlu0 %v1346, 120
      %v1468 = vpop.permute.xlu0 %1467
      %1469 = vrot.lane.b32.xlu0 %v1348, 120
      %v1470 = vpop.permute.xlu0 %1469
      %1471 = vrot.lane.b32.xlu0 %v1351, 120
      %v1472 = vpop.permute.xlu0 %1471
      %1473 = vrot.lane.b32.xlu0 %v1353, 120
      %v1474 = vpop.permute.xlu0 %1473
      %1475 = vrot.lane.b32.xlu0 %v1355, 120
      %v1476 = vpop.permute.xlu0 %1475
      %1477 = vrot.lane.b32.xlu0 %v1358, 120
      %v1478 = vpop.permute.xlu0 %1477
      %1479 = vrot.lane.b32.xlu0 %v1360, 120
      %v1480 = vpop.permute.xlu0 %1479
      %1481 = vrot.lane.b32.xlu0 %v1362, 120
      %v1482 = vpop.permute.xlu0 %1481
      %1483 = vrot.lane.b32.xlu0 %v1365, 120
      %v1484 = vpop.permute.xlu0 %1483
      %1485 = vrot.lane.b32.xlu0 %v1367, 120
      %v1486 = vpop.permute.xlu0 %1485
      %1487 = vrot.lane.b32.xlu0 %v1369, 120
      %v1488 = vpop.permute.xlu0 %1487
      %1489 = vrot.lane.b32.xlu0 %v1372, 120
      %v1490 = vpop.permute.xlu0 %1489
      %1491 = vrot.lane.b32.xlu0 %v1374, 120
      %v1492 = vpop.permute.xlu0 %1491
      %1493 = vrot.lane.b32.xlu0 %v1376, 120
      %v1494 = vpop.permute.xlu0 %1493
      %1495 = vrot.lane.b32.xlu0 %v1379, 120
      %v1496 = vpop.permute.xlu0 %1495
      %1497 = vrot.lane.b32.xlu0 %v1381, 120
      %v1498 = vpop.permute.xlu0 %1497
      %1499 = vrot.lane.b32.xlu0 %v1383, 120
      %v1500 = vpop.permute.xlu0 %1499
      %1501 = vrot.lane.b32.xlu0 %v1386, 120
      %v1502 = vpop.permute.xlu0 %1501
      %1503 = vrot.lane.b32.xlu0 %v1388, 120
      %v1504 = vpop.permute.xlu0 %1503
      %1505 = vrot.lane.b32.xlu0 %v1390, 120
      %v1506 = vpop.permute.xlu0 %1505
      %1507 = vrot.lane.b32.xlu0 %v1393, 120
      %v1508 = vpop.permute.xlu0 %1507
      %1509 = vrot.lane.b32.xlu0 %v1395, 120
      %v1510 = vpop.permute.xlu0 %1509
      %1511 = vrot.lane.b32.xlu0 %v1397, 120
      %v1512 = vpop.permute.xlu0 %1511
      %1513 = vrot.lane.b32.xlu0 %v1400, 120
      %v1514 = vpop.permute.xlu0 %1513
      %1515 = vrot.lane.b32.xlu0 %v1402, 120
      %v1516 = vpop.permute.xlu0 %1515
      %1517 = vrot.lane.b32.xlu0 %v1404, 120
      %v1518 = vpop.permute.xlu0 %1517
      %1519 = vrot.lane.b32.xlu0 %v1407, 120
      %v1520 = vpop.permute.xlu0 %1519
      %1521 = vrot.lane.b32.xlu0 %v1409, 120
      %v1522 = vpop.permute.xlu0 %1521
      %1523 = vrot.lane.b32.xlu0 %v1411, 120
      %v1524 = vpop.permute.xlu0 %1523
      %1525 = vrot.lane.b32.xlu0 %v1414, 120
      %v1526 = vpop.permute.xlu0 %1525
      %1527 = vrot.lane.b32.xlu0 %v1416, 120
      %v1528 = vpop.permute.xlu0 %1527
      %1529 = vrot.lane.b32.xlu0 %v1418, 120
      %v1530 = vpop.permute.xlu0 %1529
      %1531 = vrot.lane.b32.xlu0 %v1421, 120
      %v1532 = vpop.permute.xlu0 %1531
      %1533 = vrot.lane.b32.xlu0 %v1423, 120
      %v1534 = vpop.permute.xlu0 %1533
      %1535 = vrot.lane.b32.xlu0 %v1425, 120
      %v1536 = vpop.permute.xlu0 %1535
      %1537 = vrot.lane.b32.xlu0 %v1428, 120
      %v1538 = vpop.permute.xlu0 %1537
      %1539 = vrot.lane.b32.xlu0 %v1430, 120
      %v1540 = vpop.permute.xlu0 %1539
      %1541 = vrot.lane.b32.xlu0 %v1432, 120
      %v1542 = vpop.permute.xlu0 %1541
      %1543 = vrot.lane.b32.xlu0 %v1435, 120
      %v1544 = vpop.permute.xlu0 %1543
      %1545 = vrot.lane.b32.xlu0 %v1437, 120
      %v1546 = vpop.permute.xlu0 %1545
      %1547 = vrot.lane.b32.xlu0 %v1439, 120
      %v1548 = vpop.permute.xlu0 %1547
      %1549 = vrot.lane.b32.xlu0 %v1442, 120
      %v1550 = vpop.permute.xlu0 %1549
      %1551 = vrot.lane.b32.xlu0 %v1444, 120
      %v1552 = vpop.permute.xlu0 %1551
      %1553 = vrot.lane.b32.xlu0 %v1446, 120
      %v1554 = vpop.permute.xlu0 %1553
      %v1609 = vadd.f32 %v1266, %v1448
      %v1610 = vadd.f32 %v1267, %v1450
      %v1611 = vadd.f32 %v1268, %v1452
      %v1612 = vadd.f32 %v1269, %v1454
      %v1613 = vadd.f32 %v1270, %v1456
      %v1614 = vadd.f32 %v1271, %v1458
      %v1615 = vadd.f32 %v1272, %v1460
      %v1616 = vadd.f32 %v1273, %v1462
      %v1617 = vadd.f32 %v1274, %v1464
      %v1618 = vadd.f32 %v1275, %v1466
      %v1619 = vadd.f32 %v1276, %v1468
      %v1620 = vadd.f32 %v1277, %v1470
      %v1621 = vadd.f32 %v1278, %v1472
      %v1622 = vadd.f32 %v1279, %v1474
      %v1623 = vadd.f32 %v1280, %v1476
      %v1624 = vadd.f32 %v1281, %v1478
      %v1625 = vadd.f32 %v1282, %v1480
      %v1626 = vadd.f32 %v1283, %v1482
      %v1627 = vadd.f32 %v1284, %v1484
      %v1628 = vadd.f32 %v1285, %v1486
      %v1629 = vadd.f32 %v1286, %v1488
      %v1630 = vadd.f32 %v1287, %v1490
      %v1631 = vadd.f32 %v1288, %v1492
      %v1632 = vadd.f32 %v1289, %v1494
      %v1633 = vadd.f32 %v1290, %v1496
      %v1634 = vadd.f32 %v1291, %v1498
      %v1635 = vadd.f32 %v1292, %v1500
      %v1636 = vadd.f32 %v1293, %v1502
      %v1637 = vadd.f32 %v1294, %v1504
      %v1638 = vadd.f32 %v1295, %v1506
      %v1639 = vadd.f32 %v1296, %v1508
      %v1640 = vadd.f32 %v1297, %v1510
      %v1641 = vadd.f32 %v1298, %v1512
      %v1642 = vadd.f32 %v1299, %v1514
      %v1643 = vadd.f32 %v1300, %v1516
      %v1644 = vadd.f32 %v1301, %v1518
      %v1645 = vadd.f32 %v1302, %v1520
      %v1646 = vadd.f32 %v1303, %v1522
      %v1647 = vadd.f32 %v1304, %v1524
      %v1648 = vadd.f32 %v1305, %v1526
      %v1649 = vadd.f32 %v1306, %v1528
      %v1650 = vadd.f32 %v1307, %v1530
      %v1651 = vadd.f32 %v1308, %v1532
      %v1652 = vadd.f32 %v1309, %v1534
      %v1653 = vadd.f32 %v1310, %v1536
      %v1654 = vadd.f32 %v1311, %v1538
      %v1655 = vadd.f32 %v1312, %v1540
      %v1656 = vadd.f32 %v1313, %v1542
      %v1657 = vadd.f32 %v1314, %v1544
      %v1658 = vadd.f32 %v1315, %v1546
      %v1659 = vadd.f32 %v1316, %v1548
      %v1660 = vadd.f32 %v1317, %v1550
      %v1661 = vadd.f32 %v1318, %v1552
      %v1662 = vadd.f32 %v1319, %v1554
      %1666 = vrot.lane.b32.xlu0 %v603, 116
      %v1667 = vpop.permute.xlu0 %1666
      %1668 = vrot.lane.b32.xlu0 %v606, 116
      %v1669 = vpop.permute.xlu0 %1668
      %1670 = vrot.lane.b32.xlu0 %v611, 116
      %v1671 = vpop.permute.xlu0 %1670
      %1672 = vrot.lane.b32.xlu0 %v619, 116
      %v1673 = vpop.permute.xlu0 %1672
      %1674 = vrot.lane.b32.xlu0 %v622, 116
      %v1675 = vpop.permute.xlu0 %1674
      %1676 = vrot.lane.b32.xlu0 %v627, 116
      %v1677 = vpop.permute.xlu0 %1676
      %1678 = vrot.lane.b32.xlu0 %v635, 116
      %v1679 = vpop.permute.xlu0 %1678
      %1680 = vrot.lane.b32.xlu0 %v638, 116
      %v1681 = vpop.permute.xlu0 %1680
      %1682 = vrot.lane.b32.xlu0 %v643, 116
      %v1683 = vpop.permute.xlu0 %1682
      %1684 = vrot.lane.b32.xlu0 %v651, 116
      %v1685 = vpop.permute.xlu0 %1684
      %1686 = vrot.lane.b32.xlu0 %v654, 116
      %v1687 = vpop.permute.xlu0 %1686
      %1688 = vrot.lane.b32.xlu0 %v659, 116
      %v1689 = vpop.permute.xlu0 %1688
      %1690 = vrot.lane.b32.xlu0 %v667, 116
      %v1691 = vpop.permute.xlu0 %1690
      %1692 = vrot.lane.b32.xlu0 %v670, 116
      %v1693 = vpop.permute.xlu0 %1692
      %1694 = vrot.lane.b32.xlu0 %v675, 116
      %v1695 = vpop.permute.xlu0 %1694
      %1696 = vrot.lane.b32.xlu0 %v683, 116
      %v1697 = vpop.permute.xlu0 %1696
      %1698 = vrot.lane.b32.xlu0 %v686, 116
      %v1699 = vpop.permute.xlu0 %1698
      %1700 = vrot.lane.b32.xlu0 %v691, 116
      %v1701 = vpop.permute.xlu0 %1700
      %1702 = vrot.lane.b32.xlu0 %v699, 116
      %v1703 = vpop.permute.xlu0 %1702
      %1704 = vrot.lane.b32.xlu0 %v702, 116
      %v1705 = vpop.permute.xlu0 %1704
      %1706 = vrot.lane.b32.xlu0 %v707, 116
      %v1707 = vpop.permute.xlu0 %1706
      %1708 = vrot.lane.b32.xlu0 %v715, 116
      %v1709 = vpop.permute.xlu0 %1708
      %1710 = vrot.lane.b32.xlu0 %v718, 116
      %v1711 = vpop.permute.xlu0 %1710
      %1712 = vrot.lane.b32.xlu0 %v723, 116
      %v1713 = vpop.permute.xlu0 %1712
      %1714 = vrot.lane.b32.xlu0 %v731, 116
      %v1715 = vpop.permute.xlu0 %1714
      %1716 = vrot.lane.b32.xlu0 %v734, 116
      %v1717 = vpop.permute.xlu0 %1716
      %1718 = vrot.lane.b32.xlu0 %v739, 116
      %v1719 = vpop.permute.xlu0 %1718
      %1720 = vrot.lane.b32.xlu0 %v747, 116
      %v1721 = vpop.permute.xlu0 %1720
      %1722 = vrot.lane.b32.xlu0 %v750, 116
      %v1723 = vpop.permute.xlu0 %1722
      %1724 = vrot.lane.b32.xlu0 %v755, 116
      %v1725 = vpop.permute.xlu0 %1724
      %1726 = vrot.lane.b32.xlu0 %v763, 116
      %v1727 = vpop.permute.xlu0 %1726
      %1728 = vrot.lane.b32.xlu0 %v766, 116
      %v1729 = vpop.permute.xlu0 %1728
      %1730 = vrot.lane.b32.xlu0 %v771, 116
      %v1731 = vpop.permute.xlu0 %1730
      %1732 = vrot.lane.b32.xlu0 %v779, 116
      %v1733 = vpop.permute.xlu0 %1732
      %1734 = vrot.lane.b32.xlu0 %v782, 116
      %v1735 = vpop.permute.xlu0 %1734
      %1736 = vrot.lane.b32.xlu0 %v787, 116
      %v1737 = vpop.permute.xlu0 %1736
      %1738 = vrot.lane.b32.xlu0 %v795, 116
      %v1739 = vpop.permute.xlu0 %1738
      %1740 = vrot.lane.b32.xlu0 %v798, 116
      %v1741 = vpop.permute.xlu0 %1740
      %1742 = vrot.lane.b32.xlu0 %v803, 116
      %v1743 = vpop.permute.xlu0 %1742
      %1744 = vrot.lane.b32.xlu0 %v811, 116
      %v1745 = vpop.permute.xlu0 %1744
      %1746 = vrot.lane.b32.xlu0 %v814, 116
      %v1747 = vpop.permute.xlu0 %1746
      %1748 = vrot.lane.b32.xlu0 %v819, 116
      %v1749 = vpop.permute.xlu0 %1748
      %1750 = vrot.lane.b32.xlu0 %v827, 116
      %v1751 = vpop.permute.xlu0 %1750
      %1752 = vrot.lane.b32.xlu0 %v830, 116
      %v1753 = vpop.permute.xlu0 %1752
      %1754 = vrot.lane.b32.xlu0 %v835, 116
      %v1755 = vpop.permute.xlu0 %1754
      %1756 = vrot.lane.b32.xlu0 %v843, 116
      %v1757 = vpop.permute.xlu0 %1756
      %1758 = vrot.lane.b32.xlu0 %v846, 116
      %v1759 = vpop.permute.xlu0 %1758
      %1760 = vrot.lane.b32.xlu0 %v851, 116
      %v1761 = vpop.permute.xlu0 %1760
      %1762 = vrot.lane.b32.xlu0 %v859, 116
      %v1763 = vpop.permute.xlu0 %1762
      %1764 = vrot.lane.b32.xlu0 %v862, 116
      %v1765 = vpop.permute.xlu0 %1764
      %1766 = vrot.lane.b32.xlu0 %v867, 116
      %v1767 = vpop.permute.xlu0 %1766
      %1768 = vrot.lane.b32.xlu0 %v875, 116
      %v1769 = vpop.permute.xlu0 %1768
      %1770 = vrot.lane.b32.xlu0 %v878, 116
      %v1771 = vpop.permute.xlu0 %1770
      %1772 = vrot.lane.b32.xlu0 %v883, 116
      %v1773 = vpop.permute.xlu0 %1772
      %v1828 = vadd.f32 %v1609, %v1667
      %v1829 = vadd.f32 %v1610, %v1669
      %v1830 = vadd.f32 %v1611, %v1671
      %v1831 = vadd.f32 %v1612, %v1673
      %v1832 = vadd.f32 %v1613, %v1675
      %v1833 = vadd.f32 %v1614, %v1677
      %v1834 = vadd.f32 %v1615, %v1679
      %v1835 = vadd.f32 %v1616, %v1681
      %v1836 = vadd.f32 %v1617, %v1683
      %v1837 = vadd.f32 %v1618, %v1685
      %v1838 = vadd.f32 %v1619, %v1687
      %v1839 = vadd.f32 %v1620, %v1689
      %v1840 = vadd.f32 %v1621, %v1691
      %v1841 = vadd.f32 %v1622, %v1693
      %v1842 = vadd.f32 %v1623, %v1695
      %v1843 = vadd.f32 %v1624, %v1697
      %v1844 = vadd.f32 %v1625, %v1699
      %v1845 = vadd.f32 %v1626, %v1701
      %v1846 = vadd.f32 %v1627, %v1703
      %v1847 = vadd.f32 %v1628, %v1705
      %v1848 = vadd.f32 %v1629, %v1707
      %v1849 = vadd.f32 %v1630, %v1709
      %v1850 = vadd.f32 %v1631, %v1711
      %v1851 = vadd.f32 %v1632, %v1713
      %v1852 = vadd.f32 %v1633, %v1715
      %v1853 = vadd.f32 %v1634, %v1717
      %v1854 = vadd.f32 %v1635, %v1719
      %v1855 = vadd.f32 %v1636, %v1721
      %v1856 = vadd.f32 %v1637, %v1723
      %v1857 = vadd.f32 %v1638, %v1725
      %v1858 = vadd.f32 %v1639, %v1727
      %v1859 = vadd.f32 %v1640, %v1729
      %v1860 = vadd.f32 %v1641, %v1731
      %v1861 = vadd.f32 %v1642, %v1733
      %v1862 = vadd.f32 %v1643, %v1735
      %v1863 = vadd.f32 %v1644, %v1737
      %v1864 = vadd.f32 %v1645, %v1739
      %v1865 = vadd.f32 %v1646, %v1741
      %v1866 = vadd.f32 %v1647, %v1743
      %v1867 = vadd.f32 %v1648, %v1745
      %v1868 = vadd.f32 %v1649, %v1747
      %v1869 = vadd.f32 %v1650, %v1749
      %v1870 = vadd.f32 %v1651, %v1751
      %v1871 = vadd.f32 %v1652, %v1753
      %v1872 = vadd.f32 %v1653, %v1755
      %v1873 = vadd.f32 %v1654, %v1757
      %v1874 = vadd.f32 %v1655, %v1759
      %v1875 = vadd.f32 %v1656, %v1761
      %v1876 = vadd.f32 %v1657, %v1763
      %v1877 = vadd.f32 %v1658, %v1765
      %v1878 = vadd.f32 %v1659, %v1767
      %v1879 = vadd.f32 %v1660, %v1769
      %v1880 = vadd.f32 %v1661, %v1771
      %v1881 = vadd.f32 %v1662, %v1773
      %v1883 = vrot.slane %v875, 1
      %v1884 = vrot.slane %v878, 1
      %v1885 = vsel %vm977, %v1883, %v1884
      %v1886 = vrot.slane %v883, 1
      %v1887 = vsel %vm977, %v1884, %v1886
      %v1888 = vrot.slane %v886, 1
      %v1889 = vsel %vm977, %v1886, %v1888
      %1890 = vrot.lane.b32.xlu0 %v987, 112
      %v1891 = vpop.permute.xlu0 %1890
      %1892 = vrot.lane.b32.xlu0 %v989, 112
      %v1893 = vpop.permute.xlu0 %1892
      %1894 = vrot.lane.b32.xlu0 %v991, 112
      %v1895 = vpop.permute.xlu0 %1894
      %1896 = vrot.lane.b32.xlu0 %v994, 112
      %v1897 = vpop.permute.xlu0 %1896
      %1898 = vrot.lane.b32.xlu0 %v996, 112
      %v1899 = vpop.permute.xlu0 %1898
      %1900 = vrot.lane.b32.xlu0 %v998, 112
      %v1901 = vpop.permute.xlu0 %1900
      %1902 = vrot.lane.b32.xlu0 %v1001, 112
      %v1903 = vpop.permute.xlu0 %1902
      %1904 = vrot.lane.b32.xlu0 %v1003, 112
      %v1905 = vpop.permute.xlu0 %1904
      %1906 = vrot.lane.b32.xlu0 %v1005, 112
      %v1907 = vpop.permute.xlu0 %1906
      %1908 = vrot.lane.b32.xlu0 %v1008, 112
      %v1909 = vpop.permute.xlu0 %1908
      %1910 = vrot.lane.b32.xlu0 %v1010, 112
      %v1911 = vpop.permute.xlu0 %1910
      %1912 = vrot.lane.b32.xlu0 %v1012, 112
      %v1913 = vpop.permute.xlu0 %1912
      %1914 = vrot.lane.b32.xlu0 %v1015, 112
      %v1915 = vpop.permute.xlu0 %1914
      %1916 = vrot.lane.b32.xlu0 %v1017, 112
      %v1917 = vpop.permute.xlu0 %1916
      %1918 = vrot.lane.b32.xlu0 %v1019, 112
      %v1919 = vpop.permute.xlu0 %1918
      %1920 = vrot.lane.b32.xlu0 %v1022, 112
      %v1921 = vpop.permute.xlu0 %1920
      %1922 = vrot.lane.b32.xlu0 %v1024, 112
      %v1923 = vpop.permute.xlu0 %1922
      %1924 = vrot.lane.b32.xlu0 %v1026, 112
      %v1925 = vpop.permute.xlu0 %1924
      %1926 = vrot.lane.b32.xlu0 %v1029, 112
      %v1927 = vpop.permute.xlu0 %1926
      %1928 = vrot.lane.b32.xlu0 %v1031, 112
      %v1929 = vpop.permute.xlu0 %1928
      %1930 = vrot.lane.b32.xlu0 %v1033, 112
      %v1931 = vpop.permute.xlu0 %1930
      %1932 = vrot.lane.b32.xlu0 %v1036, 112
      %v1933 = vpop.permute.xlu0 %1932
      %1934 = vrot.lane.b32.xlu0 %v1038, 112
      %v1935 = vpop.permute.xlu0 %1934
      %1936 = vrot.lane.b32.xlu0 %v1040, 112
      %v1937 = vpop.permute.xlu0 %1936
      %1938 = vrot.lane.b32.xlu0 %v1043, 112
      %v1939 = vpop.permute.xlu0 %1938
      %1940 = vrot.lane.b32.xlu0 %v1045, 112
      %v1941 = vpop.permute.xlu0 %1940
      %1942 = vrot.lane.b32.xlu0 %v1047, 112
      %v1943 = vpop.permute.xlu0 %1942
      %1944 = vrot.lane.b32.xlu0 %v1050, 112
      %v1945 = vpop.permute.xlu0 %1944
      %1946 = vrot.lane.b32.xlu0 %v1052, 112
      %v1947 = vpop.permute.xlu0 %1946
      %1948 = vrot.lane.b32.xlu0 %v1054, 112
      %v1949 = vpop.permute.xlu0 %1948
      %1950 = vrot.lane.b32.xlu0 %v1057, 112
      %v1951 = vpop.permute.xlu0 %1950
      %1952 = vrot.lane.b32.xlu0 %v1059, 112
      %v1953 = vpop.permute.xlu0 %1952
      %1954 = vrot.lane.b32.xlu0 %v1061, 112
      %v1955 = vpop.permute.xlu0 %1954
      %1956 = vrot.lane.b32.xlu0 %v1064, 112
      %v1957 = vpop.permute.xlu0 %1956
      %1958 = vrot.lane.b32.xlu0 %v1066, 112
      %v1959 = vpop.permute.xlu0 %1958
      %1960 = vrot.lane.b32.xlu0 %v1068, 112
      %v1961 = vpop.permute.xlu0 %1960
      %1962 = vrot.lane.b32.xlu0 %v1071, 112
      %v1963 = vpop.permute.xlu0 %1962
      %1964 = vrot.lane.b32.xlu0 %v1073, 112
      %v1965 = vpop.permute.xlu0 %1964
      %1966 = vrot.lane.b32.xlu0 %v1075, 112
      %v1967 = vpop.permute.xlu0 %1966
      %1968 = vrot.lane.b32.xlu0 %v1078, 112
      %v1969 = vpop.permute.xlu0 %1968
      %1970 = vrot.lane.b32.xlu0 %v1080, 112
      %v1971 = vpop.permute.xlu0 %1970
      %1972 = vrot.lane.b32.xlu0 %v1082, 112
      %v1973 = vpop.permute.xlu0 %1972
      %1974 = vrot.lane.b32.xlu0 %v1085, 112
      %v1975 = vpop.permute.xlu0 %1974
      %1976 = vrot.lane.b32.xlu0 %v1087, 112
      %v1977 = vpop.permute.xlu0 %1976
      %1978 = vrot.lane.b32.xlu0 %v1089, 112
      %v1979 = vpop.permute.xlu0 %1978
      %1980 = vrot.lane.b32.xlu0 %v1092, 112
      %v1981 = vpop.permute.xlu0 %1980
      %1982 = vrot.lane.b32.xlu0 %v1094, 112
      %v1983 = vpop.permute.xlu0 %1982
      %1984 = vrot.lane.b32.xlu0 %v1096, 112
      %v1985 = vpop.permute.xlu0 %1984
      %1986 = vrot.lane.b32.xlu0 %v1099, 112
      %v1987 = vpop.permute.xlu0 %1986
      %1988 = vrot.lane.b32.xlu0 %v1101, 112
      %v1989 = vpop.permute.xlu0 %1988
      %1990 = vrot.lane.b32.xlu0 %v1103, 112
      %v1991 = vpop.permute.xlu0 %1990
      %1992 = vrot.lane.b32.xlu0 %v1885, 112
      %v1993 = vpop.permute.xlu0 %1992
      %1994 = vrot.lane.b32.xlu0 %v1887, 112
      %v1995 = vpop.permute.xlu0 %1994
      %1996 = vrot.lane.b32.xlu0 %v1889, 112
      %v1997 = vpop.permute.xlu0 %1996
      %v2052 = vadd.f32 %v1828, %v1891
      %v2053 = vadd.f32 %v1829, %v1893
      %v2054 = vadd.f32 %v1830, %v1895
      %v2055 = vadd.f32 %v1831, %v1897
      %v2056 = vadd.f32 %v1832, %v1899
      %v2057 = vadd.f32 %v1833, %v1901
      %v2058 = vadd.f32 %v1834, %v1903
      %v2059 = vadd.f32 %v1835, %v1905
      %v2060 = vadd.f32 %v1836, %v1907
      %v2061 = vadd.f32 %v1837, %v1909
      %v2062 = vadd.f32 %v1838, %v1911
      %v2063 = vadd.f32 %v1839, %v1913
      %v2064 = vadd.f32 %v1840, %v1915
      %v2065 = vadd.f32 %v1841, %v1917
      %v2066 = vadd.f32 %v1842, %v1919
      %v2067 = vadd.f32 %v1843, %v1921
      %v2068 = vadd.f32 %v1844, %v1923
      %v2069 = vadd.f32 %v1845, %v1925
      %v2070 = vadd.f32 %v1846, %v1927
      %v2071 = vadd.f32 %v1847, %v1929
      %v2072 = vadd.f32 %v1848, %v1931
      %v2073 = vadd.f32 %v1849, %v1933
      %v2074 = vadd.f32 %v1850, %v1935
      %v2075 = vadd.f32 %v1851, %v1937
      %v2076 = vadd.f32 %v1852, %v1939
      %v2077 = vadd.f32 %v1853, %v1941
      %v2078 = vadd.f32 %v1854, %v1943
      %v2079 = vadd.f32 %v1855, %v1945
      %v2080 = vadd.f32 %v1856, %v1947
      %v2081 = vadd.f32 %v1857, %v1949
      %v2082 = vadd.f32 %v1858, %v1951
      %v2083 = vadd.f32 %v1859, %v1953
      %v2084 = vadd.f32 %v1860, %v1955
      %v2085 = vadd.f32 %v1861, %v1957
      %v2086 = vadd.f32 %v1862, %v1959
      %v2087 = vadd.f32 %v1863, %v1961
      %v2088 = vadd.f32 %v1864, %v1963
      %v2089 = vadd.f32 %v1865, %v1965
      %v2090 = vadd.f32 %v1866, %v1967
      %v2091 = vadd.f32 %v1867, %v1969
      %v2092 = vadd.f32 %v1868, %v1971
      %v2093 = vadd.f32 %v1869, %v1973
      %v2094 = vadd.f32 %v1870, %v1975
      %v2095 = vadd.f32 %v1871, %v1977
      %v2096 = vadd.f32 %v1872, %v1979
      %v2097 = vadd.f32 %v1873, %v1981
      %v2098 = vadd.f32 %v1874, %v1983
      %v2099 = vadd.f32 %v1875, %v1985
      %v2100 = vadd.f32 %v1876, %v1987
      %v2101 = vadd.f32 %v1877, %v1989
      %v2102 = vadd.f32 %v1878, %v1991
      %v2103 = vadd.f32 %v1879, %v1993
      %v2104 = vadd.f32 %v1880, %v1995
      %v2105 = vadd.f32 %v1881, %v1997
      %v2106 = vrot.slane %v875, 2
      %v2107 = vrot.slane %v878, 2
      %v2108 = vsel %vm1320, %v2106, %v2107
      %v2109 = vrot.slane %v883, 2
      %v2110 = vsel %vm1320, %v2107, %v2109
      %v2111 = vrot.slane %v886, 2
      %v2112 = vsel %vm1320, %v2109, %v2111
      %2113 = vrot.lane.b32.xlu0 %v1330, 108
      %v2114 = vpop.permute.xlu0 %2113
      %2115 = vrot.lane.b32.xlu0 %v1332, 108
      %v2116 = vpop.permute.xlu0 %2115
      %2117 = vrot.lane.b32.xlu0 %v1334, 108
      %v2118 = vpop.permute.xlu0 %2117
      %2119 = vrot.lane.b32.xlu0 %v1337, 108
      %v2120 = vpop.permute.xlu0 %2119
      %2121 = vrot.lane.b32.xlu0 %v1339, 108
      %v2122 = vpop.permute.xlu0 %2121
      %2123 = vrot.lane.b32.xlu0 %v1341, 108
      %v2124 = vpop.permute.xlu0 %2123
      %2125 = vrot.lane.b32.xlu0 %v1344, 108
      %v2126 = vpop.permute.xlu0 %2125
      %2127 = vrot.lane.b32.xlu0 %v1346, 108
      %v2128 = vpop.permute.xlu0 %2127
      %2129 = vrot.lane.b32.xlu0 %v1348, 108
      %v2130 = vpop.permute.xlu0 %2129
      %2131 = vrot.lane.b32.xlu0 %v1351, 108
      %v2132 = vpop.permute.xlu0 %2131
      %2133 = vrot.lane.b32.xlu0 %v1353, 108
      %v2134 = vpop.permute.xlu0 %2133
      %2135 = vrot.lane.b32.xlu0 %v1355, 108
      %v2136 = vpop.permute.xlu0 %2135
      %2137 = vrot.lane.b32.xlu0 %v1358, 108
      %v2138 = vpop.permute.xlu0 %2137
      %2139 = vrot.lane.b32.xlu0 %v1360, 108
      %v2140 = vpop.permute.xlu0 %2139
      %2141 = vrot.lane.b32.xlu0 %v1362, 108
      %v2142 = vpop.permute.xlu0 %2141
      %2143 = vrot.lane.b32.xlu0 %v1365, 108
      %v2144 = vpop.permute.xlu0 %2143
      %2145 = vrot.lane.b32.xlu0 %v1367, 108
      %v2146 = vpop.permute.xlu0 %2145
      %2147 = vrot.lane.b32.xlu0 %v1369, 108
      %v2148 = vpop.permute.xlu0 %2147
      %2149 = vrot.lane.b32.xlu0 %v1372, 108
      %v2150 = vpop.permute.xlu0 %2149
      %2151 = vrot.lane.b32.xlu0 %v1374, 108
      %v2152 = vpop.permute.xlu0 %2151
      %2153 = vrot.lane.b32.xlu0 %v1376, 108
      %v2154 = vpop.permute.xlu0 %2153
      %2155 = vrot.lane.b32.xlu0 %v1379, 108
      %v2156 = vpop.permute.xlu0 %2155
      %2157 = vrot.lane.b32.xlu0 %v1381, 108
      %v2158 = vpop.permute.xlu0 %2157
      %2159 = vrot.lane.b32.xlu0 %v1383, 108
      %v2160 = vpop.permute.xlu0 %2159
      %2161 = vrot.lane.b32.xlu0 %v1386, 108
      %v2162 = vpop.permute.xlu0 %2161
      %2163 = vrot.lane.b32.xlu0 %v1388, 108
      %v2164 = vpop.permute.xlu0 %2163
      %2165 = vrot.lane.b32.xlu0 %v1390, 108
      %v2166 = vpop.permute.xlu0 %2165
      %2167 = vrot.lane.b32.xlu0 %v1393, 108
      %v2168 = vpop.permute.xlu0 %2167
      %2169 = vrot.lane.b32.xlu0 %v1395, 108
      %v2170 = vpop.permute.xlu0 %2169
      %2171 = vrot.lane.b32.xlu0 %v1397, 108
      %v2172 = vpop.permute.xlu0 %2171
      %2173 = vrot.lane.b32.xlu0 %v1400, 108
      %v2174 = vpop.permute.xlu0 %2173
      %2175 = vrot.lane.b32.xlu0 %v1402, 108
      %v2176 = vpop.permute.xlu0 %2175
      %2177 = vrot.lane.b32.xlu0 %v1404, 108
      %v2178 = vpop.permute.xlu0 %2177
      %2179 = vrot.lane.b32.xlu0 %v1407, 108
      %v2180 = vpop.permute.xlu0 %2179
      %2181 = vrot.lane.b32.xlu0 %v1409, 108
      %v2182 = vpop.permute.xlu0 %2181
      %2183 = vrot.lane.b32.xlu0 %v1411, 108
      %v2184 = vpop.permute.xlu0 %2183
      %2185 = vrot.lane.b32.xlu0 %v1414, 108
      %v2186 = vpop.permute.xlu0 %2185
      %2187 = vrot.lane.b32.xlu0 %v1416, 108
      %v2188 = vpop.permute.xlu0 %2187
      %2189 = vrot.lane.b32.xlu0 %v1418, 108
      %v2190 = vpop.permute.xlu0 %2189
      %2191 = vrot.lane.b32.xlu0 %v1421, 108
      %v2192 = vpop.permute.xlu0 %2191
      %2193 = vrot.lane.b32.xlu0 %v1423, 108
      %v2194 = vpop.permute.xlu0 %2193
      %2195 = vrot.lane.b32.xlu0 %v1425, 108
      %v2196 = vpop.permute.xlu0 %2195
      %2197 = vrot.lane.b32.xlu0 %v1428, 108
      %v2198 = vpop.permute.xlu0 %2197
      %2199 = vrot.lane.b32.xlu0 %v1430, 108
      %v2200 = vpop.permute.xlu0 %2199
      %2201 = vrot.lane.b32.xlu0 %v1432, 108
      %v2202 = vpop.permute.xlu0 %2201
      %2203 = vrot.lane.b32.xlu0 %v1435, 108
      %v2204 = vpop.permute.xlu0 %2203
      %2205 = vrot.lane.b32.xlu0 %v1437, 108
      %v2206 = vpop.permute.xlu0 %2205
      %2207 = vrot.lane.b32.xlu0 %v1439, 108
      %v2208 = vpop.permute.xlu0 %2207
      %2209 = vrot.lane.b32.xlu0 %v1442, 108
      %v2210 = vpop.permute.xlu0 %2209
      %2211 = vrot.lane.b32.xlu0 %v1444, 108
      %v2212 = vpop.permute.xlu0 %2211
      %2213 = vrot.lane.b32.xlu0 %v1446, 108
      %v2214 = vpop.permute.xlu0 %2213
      %2215 = vrot.lane.b32.xlu0 %v2108, 108
      %v2216 = vpop.permute.xlu0 %2215
      %2217 = vrot.lane.b32.xlu0 %v2110, 108
      %v2218 = vpop.permute.xlu0 %2217
      %2219 = vrot.lane.b32.xlu0 %v2112, 108
      %v2220 = vpop.permute.xlu0 %2219
      %v2275 = vadd.f32 %v2052, %v2114
      %v2276 = vadd.f32 %v2053, %v2116
      %v2277 = vadd.f32 %v2054, %v2118
      %v2278 = vadd.f32 %v2055, %v2120
      %v2279 = vadd.f32 %v2056, %v2122
      %v2280 = vadd.f32 %v2057, %v2124
      %v2281 = vadd.f32 %v2058, %v2126
      %v2282 = vadd.f32 %v2059, %v2128
      %v2283 = vadd.f32 %v2060, %v2130
      %v2284 = vadd.f32 %v2061, %v2132
      %v2285 = vadd.f32 %v2062, %v2134
      %v2286 = vadd.f32 %v2063, %v2136
      %v2287 = vadd.f32 %v2064, %v2138
      %v2288 = vadd.f32 %v2065, %v2140
      %v2289 = vadd.f32 %v2066, %v2142
      %v2290 = vadd.f32 %v2067, %v2144
      %v2291 = vadd.f32 %v2068, %v2146
      %v2292 = vadd.f32 %v2069, %v2148
      %v2293 = vadd.f32 %v2070, %v2150
      %v2294 = vadd.f32 %v2071, %v2152
      %v2295 = vadd.f32 %v2072, %v2154
      %v2296 = vadd.f32 %v2073, %v2156
      %v2297 = vadd.f32 %v2074, %v2158
      %v2298 = vadd.f32 %v2075, %v2160
      %v2299 = vadd.f32 %v2076, %v2162
      %v2300 = vadd.f32 %v2077, %v2164
      %v2301 = vadd.f32 %v2078, %v2166
      %v2302 = vadd.f32 %v2079, %v2168
      %v2303 = vadd.f32 %v2080, %v2170
      %v2304 = vadd.f32 %v2081, %v2172
      %v2305 = vadd.f32 %v2082, %v2174
      %v2306 = vadd.f32 %v2083, %v2176
      %v2307 = vadd.f32 %v2084, %v2178
      %v2308 = vadd.f32 %v2085, %v2180
      %v2309 = vadd.f32 %v2086, %v2182
      %v2310 = vadd.f32 %v2087, %v2184
      %v2311 = vadd.f32 %v2088, %v2186
      %v2312 = vadd.f32 %v2089, %v2188
      %v2313 = vadd.f32 %v2090, %v2190
      %v2314 = vadd.f32 %v2091, %v2192
      %v2315 = vadd.f32 %v2092, %v2194
      %v2316 = vadd.f32 %v2093, %v2196
      %v2317 = vadd.f32 %v2094, %v2198
      %v2318 = vadd.f32 %v2095, %v2200
      %v2319 = vadd.f32 %v2096, %v2202
      %v2320 = vadd.f32 %v2097, %v2204
      %v2321 = vadd.f32 %v2098, %v2206
      %v2322 = vadd.f32 %v2099, %v2208
      %v2323 = vadd.f32 %v2100, %v2210
      %v2324 = vadd.f32 %v2101, %v2212
      %v2325 = vadd.f32 %v2102, %v2214
      %v2326 = vadd.f32 %v2103, %v2216
      %v2327 = vadd.f32 %v2104, %v2218
      %v2328 = vadd.f32 %v2105, %v2220
      %2332 = vrot.lane.b32.xlu0 %v619, 104
      %v2333 = vpop.permute.xlu0 %2332
      %2334 = vrot.lane.b32.xlu0 %v622, 104
      %v2335 = vpop.permute.xlu0 %2334
      %2336 = vrot.lane.b32.xlu0 %v627, 104
      %v2337 = vpop.permute.xlu0 %2336
      %2338 = vrot.lane.b32.xlu0 %v635, 104
      %v2339 = vpop.permute.xlu0 %2338
      %2340 = vrot.lane.b32.xlu0 %v638, 104
      %v2341 = vpop.permute.xlu0 %2340
      %2342 = vrot.lane.b32.xlu0 %v643, 104
      %v2343 = vpop.permute.xlu0 %2342
      %2344 = vrot.lane.b32.xlu0 %v651, 104
      %v2345 = vpop.permute.xlu0 %2344
      %2346 = vrot.lane.b32.xlu0 %v654, 104
      %v2347 = vpop.permute.xlu0 %2346
      %2348 = vrot.lane.b32.xlu0 %v659, 104
      %v2349 = vpop.permute.xlu0 %2348
      %2350 = vrot.lane.b32.xlu0 %v667, 104
      %v2351 = vpop.permute.xlu0 %2350
      %2352 = vrot.lane.b32.xlu0 %v670, 104
      %v2353 = vpop.permute.xlu0 %2352
      %2354 = vrot.lane.b32.xlu0 %v675, 104
      %v2355 = vpop.permute.xlu0 %2354
      %2356 = vrot.lane.b32.xlu0 %v683, 104
      %v2357 = vpop.permute.xlu0 %2356
      %2358 = vrot.lane.b32.xlu0 %v686, 104
      %v2359 = vpop.permute.xlu0 %2358
      %2360 = vrot.lane.b32.xlu0 %v691, 104
      %v2361 = vpop.permute.xlu0 %2360
      %2362 = vrot.lane.b32.xlu0 %v699, 104
      %v2363 = vpop.permute.xlu0 %2362
      %2364 = vrot.lane.b32.xlu0 %v702, 104
      %v2365 = vpop.permute.xlu0 %2364
      %2366 = vrot.lane.b32.xlu0 %v707, 104
      %v2367 = vpop.permute.xlu0 %2366
      %2368 = vrot.lane.b32.xlu0 %v715, 104
      %v2369 = vpop.permute.xlu0 %2368
      %2370 = vrot.lane.b32.xlu0 %v718, 104
      %v2371 = vpop.permute.xlu0 %2370
      %2372 = vrot.lane.b32.xlu0 %v723, 104
      %v2373 = vpop.permute.xlu0 %2372
      %2374 = vrot.lane.b32.xlu0 %v731, 104
      %v2375 = vpop.permute.xlu0 %2374
      %2376 = vrot.lane.b32.xlu0 %v734, 104
      %v2377 = vpop.permute.xlu0 %2376
      %2378 = vrot.lane.b32.xlu0 %v739, 104
      %v2379 = vpop.permute.xlu0 %2378
      %2380 = vrot.lane.b32.xlu0 %v747, 104
      %v2381 = vpop.permute.xlu0 %2380
      %2382 = vrot.lane.b32.xlu0 %v750, 104
      %v2383 = vpop.permute.xlu0 %2382
      %2384 = vrot.lane.b32.xlu0 %v755, 104
      %v2385 = vpop.permute.xlu0 %2384
      %2386 = vrot.lane.b32.xlu0 %v763, 104
      %v2387 = vpop.permute.xlu0 %2386
      %2388 = vrot.lane.b32.xlu0 %v766, 104
      %v2389 = vpop.permute.xlu0 %2388
      %2390 = vrot.lane.b32.xlu0 %v771, 104
      %v2391 = vpop.permute.xlu0 %2390
      %2392 = vrot.lane.b32.xlu0 %v779, 104
      %v2393 = vpop.permute.xlu0 %2392
      %2394 = vrot.lane.b32.xlu0 %v782, 104
      %v2395 = vpop.permute.xlu0 %2394
      %2396 = vrot.lane.b32.xlu0 %v787, 104
      %v2397 = vpop.permute.xlu0 %2396
      %2398 = vrot.lane.b32.xlu0 %v795, 104
      %v2399 = vpop.permute.xlu0 %2398
      %2400 = vrot.lane.b32.xlu0 %v798, 104
      %v2401 = vpop.permute.xlu0 %2400
      %2402 = vrot.lane.b32.xlu0 %v803, 104
      %v2403 = vpop.permute.xlu0 %2402
      %2404 = vrot.lane.b32.xlu0 %v811, 104
      %v2405 = vpop.permute.xlu0 %2404
      %2406 = vrot.lane.b32.xlu0 %v814, 104
      %v2407 = vpop.permute.xlu0 %2406
      %2408 = vrot.lane.b32.xlu0 %v819, 104
      %v2409 = vpop.permute.xlu0 %2408
      %2410 = vrot.lane.b32.xlu0 %v827, 104
      %v2411 = vpop.permute.xlu0 %2410
      %2412 = vrot.lane.b32.xlu0 %v830, 104
      %v2413 = vpop.permute.xlu0 %2412
      %2414 = vrot.lane.b32.xlu0 %v835, 104
      %v2415 = vpop.permute.xlu0 %2414
      %2416 = vrot.lane.b32.xlu0 %v843, 104
      %v2417 = vpop.permute.xlu0 %2416
      %2418 = vrot.lane.b32.xlu0 %v846, 104
      %v2419 = vpop.permute.xlu0 %2418
      %2420 = vrot.lane.b32.xlu0 %v851, 104
      %v2421 = vpop.permute.xlu0 %2420
      %2422 = vrot.lane.b32.xlu0 %v859, 104
      %v2423 = vpop.permute.xlu0 %2422
      %2424 = vrot.lane.b32.xlu0 %v862, 104
      %v2425 = vpop.permute.xlu0 %2424
      %2426 = vrot.lane.b32.xlu0 %v867, 104
      %v2427 = vpop.permute.xlu0 %2426
      %2428 = vrot.lane.b32.xlu0 %v875, 104
      %v2429 = vpop.permute.xlu0 %2428
      %2430 = vrot.lane.b32.xlu0 %v878, 104
      %v2431 = vpop.permute.xlu0 %2430
      %2432 = vrot.lane.b32.xlu0 %v883, 104
      %v2433 = vpop.permute.xlu0 %2432
      %2434 = vrot.lane.b32.xlu0 %v891, 104
      %v2435 = vpop.permute.xlu0 %2434
      %2436 = vrot.lane.b32.xlu0 %v894, 104
      %v2437 = vpop.permute.xlu0 %2436
      %2438 = vrot.lane.b32.xlu0 %v899, 104
      %v2439 = vpop.permute.xlu0 %2438
      %v2494 = vadd.f32 %v2275, %v2333
      %v2495 = vadd.f32 %v2276, %v2335
      %v2496 = vadd.f32 %v2277, %v2337
      %v2497 = vadd.f32 %v2278, %v2339
      %v2498 = vadd.f32 %v2279, %v2341
      %v2499 = vadd.f32 %v2280, %v2343
      %v2500 = vadd.f32 %v2281, %v2345
      %v2501 = vadd.f32 %v2282, %v2347
      %v2502 = vadd.f32 %v2283, %v2349
      %v2503 = vadd.f32 %v2284, %v2351
      %v2504 = vadd.f32 %v2285, %v2353
      %v2505 = vadd.f32 %v2286, %v2355
      %v2506 = vadd.f32 %v2287, %v2357
      %v2507 = vadd.f32 %v2288, %v2359
      %v2508 = vadd.f32 %v2289, %v2361
      %v2509 = vadd.f32 %v2290, %v2363
      %v2510 = vadd.f32 %v2291, %v2365
      %v2511 = vadd.f32 %v2292, %v2367
      %v2512 = vadd.f32 %v2293, %v2369
      %v2513 = vadd.f32 %v2294, %v2371
      %v2514 = vadd.f32 %v2295, %v2373
      %v2515 = vadd.f32 %v2296, %v2375
      %v2516 = vadd.f32 %v2297, %v2377
      %v2517 = vadd.f32 %v2298, %v2379
      %v2518 = vadd.f32 %v2299, %v2381
      %v2519 = vadd.f32 %v2300, %v2383
      %v2520 = vadd.f32 %v2301, %v2385
      %v2521 = vadd.f32 %v2302, %v2387
      %v2522 = vadd.f32 %v2303, %v2389
      %v2523 = vadd.f32 %v2304, %v2391
      %v2524 = vadd.f32 %v2305, %v2393
      %v2525 = vadd.f32 %v2306, %v2395
      %v2526 = vadd.f32 %v2307, %v2397
      %v2527 = vadd.f32 %v2308, %v2399
      %v2528 = vadd.f32 %v2309, %v2401
      %v2529 = vadd.f32 %v2310, %v2403
      %v2530 = vadd.f32 %v2311, %v2405
      %v2531 = vadd.f32 %v2312, %v2407
      %v2532 = vadd.f32 %v2313, %v2409
      %v2533 = vadd.f32 %v2314, %v2411
      %v2534 = vadd.f32 %v2315, %v2413
      %v2535 = vadd.f32 %v2316, %v2415
      %v2536 = vadd.f32 %v2317, %v2417
      %v2537 = vadd.f32 %v2318, %v2419
      %v2538 = vadd.f32 %v2319, %v2421
      %v2539 = vadd.f32 %v2320, %v2423
      %v2540 = vadd.f32 %v2321, %v2425
      %v2541 = vadd.f32 %v2322, %v2427
      %v2542 = vadd.f32 %v2323, %v2429
      %v2543 = vadd.f32 %v2324, %v2431
      %v2544 = vadd.f32 %v2325, %v2433
      %v2545 = vadd.f32 %v2326, %v2435
      %v2546 = vadd.f32 %v2327, %v2437
      %v2547 = vadd.f32 %v2328, %v2439
      %v2549 = vrot.slane %v891, 1
      %v2550 = vrot.slane %v894, 1
      %v2551 = vsel %vm977, %v2549, %v2550
      %v2552 = vrot.slane %v899, 1
      %v2553 = vsel %vm977, %v2550, %v2552
      %v2554 = vrot.slane %v902, 1
      %v2555 = vsel %vm977, %v2552, %v2554
      %2556 = vrot.lane.b32.xlu0 %v994, 100
      %v2557 = vpop.permute.xlu0 %2556
      %2558 = vrot.lane.b32.xlu0 %v996, 100
      %v2559 = vpop.permute.xlu0 %2558
      %2560 = vrot.lane.b32.xlu0 %v998, 100
      %v2561 = vpop.permute.xlu0 %2560
      %2562 = vrot.lane.b32.xlu0 %v1001, 100
      %v2563 = vpop.permute.xlu0 %2562
      %2564 = vrot.lane.b32.xlu0 %v1003, 100
      %v2565 = vpop.permute.xlu0 %2564
      %2566 = vrot.lane.b32.xlu0 %v1005, 100
      %v2567 = vpop.permute.xlu0 %2566
      %2568 = vrot.lane.b32.xlu0 %v1008, 100
      %v2569 = vpop.permute.xlu0 %2568
      %2570 = vrot.lane.b32.xlu0 %v1010, 100
      %v2571 = vpop.permute.xlu0 %2570
      %2572 = vrot.lane.b32.xlu0 %v1012, 100
      %v2573 = vpop.permute.xlu0 %2572
      %2574 = vrot.lane.b32.xlu0 %v1015, 100
      %v2575 = vpop.permute.xlu0 %2574
      %2576 = vrot.lane.b32.xlu0 %v1017, 100
      %v2577 = vpop.permute.xlu0 %2576
      %2578 = vrot.lane.b32.xlu0 %v1019, 100
      %v2579 = vpop.permute.xlu0 %2578
      %2580 = vrot.lane.b32.xlu0 %v1022, 100
      %v2581 = vpop.permute.xlu0 %2580
      %2582 = vrot.lane.b32.xlu0 %v1024, 100
      %v2583 = vpop.permute.xlu0 %2582
      %2584 = vrot.lane.b32.xlu0 %v1026, 100
      %v2585 = vpop.permute.xlu0 %2584
      %2586 = vrot.lane.b32.xlu0 %v1029, 100
      %v2587 = vpop.permute.xlu0 %2586
      %2588 = vrot.lane.b32.xlu0 %v1031, 100
      %v2589 = vpop.permute.xlu0 %2588
      %2590 = vrot.lane.b32.xlu0 %v1033, 100
      %v2591 = vpop.permute.xlu0 %2590
      %2592 = vrot.lane.b32.xlu0 %v1036, 100
      %v2593 = vpop.permute.xlu0 %2592
      %2594 = vrot.lane.b32.xlu0 %v1038, 100
      %v2595 = vpop.permute.xlu0 %2594
      %2596 = vrot.lane.b32.xlu0 %v1040, 100
      %v2597 = vpop.permute.xlu0 %2596
      %2598 = vrot.lane.b32.xlu0 %v1043, 100
      %v2599 = vpop.permute.xlu0 %2598
      %2600 = vrot.lane.b32.xlu0 %v1045, 100
      %v2601 = vpop.permute.xlu0 %2600
      %2602 = vrot.lane.b32.xlu0 %v1047, 100
      %v2603 = vpop.permute.xlu0 %2602
      %2604 = vrot.lane.b32.xlu0 %v1050, 100
      %v2605 = vpop.permute.xlu0 %2604
      %2606 = vrot.lane.b32.xlu0 %v1052, 100
      %v2607 = vpop.permute.xlu0 %2606
      %2608 = vrot.lane.b32.xlu0 %v1054, 100
      %v2609 = vpop.permute.xlu0 %2608
      %2610 = vrot.lane.b32.xlu0 %v1057, 100
      %v2611 = vpop.permute.xlu0 %2610
      %2612 = vrot.lane.b32.xlu0 %v1059, 100
      %v2613 = vpop.permute.xlu0 %2612
      %2614 = vrot.lane.b32.xlu0 %v1061, 100
      %v2615 = vpop.permute.xlu0 %2614
      %2616 = vrot.lane.b32.xlu0 %v1064, 100
      %v2617 = vpop.permute.xlu0 %2616
      %2618 = vrot.lane.b32.xlu0 %v1066, 100
      %v2619 = vpop.permute.xlu0 %2618
      %2620 = vrot.lane.b32.xlu0 %v1068, 100
      %v2621 = vpop.permute.xlu0 %2620
      %2622 = vrot.lane.b32.xlu0 %v1071, 100
      %v2623 = vpop.permute.xlu0 %2622
      %2624 = vrot.lane.b32.xlu0 %v1073, 100
      %v2625 = vpop.permute.xlu0 %2624
      %2626 = vrot.lane.b32.xlu0 %v1075, 100
      %v2627 = vpop.permute.xlu0 %2626
      %2628 = vrot.lane.b32.xlu0 %v1078, 100
      %v2629 = vpop.permute.xlu0 %2628
      %2630 = vrot.lane.b32.xlu0 %v1080, 100
      %v2631 = vpop.permute.xlu0 %2630
      %2632 = vrot.lane.b32.xlu0 %v1082, 100
      %v2633 = vpop.permute.xlu0 %2632
      %2634 = vrot.lane.b32.xlu0 %v1085, 100
      %v2635 = vpop.permute.xlu0 %2634
      %2636 = vrot.lane.b32.xlu0 %v1087, 100
      %v2637 = vpop.permute.xlu0 %2636
      %2638 = vrot.lane.b32.xlu0 %v1089, 100
      %v2639 = vpop.permute.xlu0 %2638
      %2640 = vrot.lane.b32.xlu0 %v1092, 100
      %v2641 = vpop.permute.xlu0 %2640
      %2642 = vrot.lane.b32.xlu0 %v1094, 100
      %v2643 = vpop.permute.xlu0 %2642
      %2644 = vrot.lane.b32.xlu0 %v1096, 100
      %v2645 = vpop.permute.xlu0 %2644
      %2646 = vrot.lane.b32.xlu0 %v1099, 100
      %v2647 = vpop.permute.xlu0 %2646
      %2648 = vrot.lane.b32.xlu0 %v1101, 100
      %v2649 = vpop.permute.xlu0 %2648
      %2650 = vrot.lane.b32.xlu0 %v1103, 100
      %v2651 = vpop.permute.xlu0 %2650
      %2652 = vrot.lane.b32.xlu0 %v1885, 100
      %v2653 = vpop.permute.xlu0 %2652
      %2654 = vrot.lane.b32.xlu0 %v1887, 100
      %v2655 = vpop.permute.xlu0 %2654
      %2656 = vrot.lane.b32.xlu0 %v1889, 100
      %v2657 = vpop.permute.xlu0 %2656
      %2658 = vrot.lane.b32.xlu0 %v2551, 100
      %v2659 = vpop.permute.xlu0 %2658
      %2660 = vrot.lane.b32.xlu0 %v2553, 100
      %v2661 = vpop.permute.xlu0 %2660
      %2662 = vrot.lane.b32.xlu0 %v2555, 100
      %v2663 = vpop.permute.xlu0 %2662
      %v2718 = vadd.f32 %v2494, %v2557
      %v2719 = vadd.f32 %v2495, %v2559
      %v2720 = vadd.f32 %v2496, %v2561
      %v2721 = vadd.f32 %v2497, %v2563
      %v2722 = vadd.f32 %v2498, %v2565
      %v2723 = vadd.f32 %v2499, %v2567
      %v2724 = vadd.f32 %v2500, %v2569
      %v2725 = vadd.f32 %v2501, %v2571
      %v2726 = vadd.f32 %v2502, %v2573
      %v2727 = vadd.f32 %v2503, %v2575
      %v2728 = vadd.f32 %v2504, %v2577
      %v2729 = vadd.f32 %v2505, %v2579
      %v2730 = vadd.f32 %v2506, %v2581
      %v2731 = vadd.f32 %v2507, %v2583
      %v2732 = vadd.f32 %v2508, %v2585
      %v2733 = vadd.f32 %v2509, %v2587
      %v2734 = vadd.f32 %v2510, %v2589
      %v2735 = vadd.f32 %v2511, %v2591
      %v2736 = vadd.f32 %v2512, %v2593
      %v2737 = vadd.f32 %v2513, %v2595
      %v2738 = vadd.f32 %v2514, %v2597
      %v2739 = vadd.f32 %v2515, %v2599
      %v2740 = vadd.f32 %v2516, %v2601
      %v2741 = vadd.f32 %v2517, %v2603
      %v2742 = vadd.f32 %v2518, %v2605
      %v2743 = vadd.f32 %v2519, %v2607
      %v2744 = vadd.f32 %v2520, %v2609
      %v2745 = vadd.f32 %v2521, %v2611
      %v2746 = vadd.f32 %v2522, %v2613
      %v2747 = vadd.f32 %v2523, %v2615
      %v2748 = vadd.f32 %v2524, %v2617
      %v2749 = vadd.f32 %v2525, %v2619
      %v2750 = vadd.f32 %v2526, %v2621
      %v2751 = vadd.f32 %v2527, %v2623
      %v2752 = vadd.f32 %v2528, %v2625
      %v2753 = vadd.f32 %v2529, %v2627
      %v2754 = vadd.f32 %v2530, %v2629
      %v2755 = vadd.f32 %v2531, %v2631
      %v2756 = vadd.f32 %v2532, %v2633
      %v2757 = vadd.f32 %v2533, %v2635
      %v2758 = vadd.f32 %v2534, %v2637
      %v2759 = vadd.f32 %v2535, %v2639
      %v2760 = vadd.f32 %v2536, %v2641
      %v2761 = vadd.f32 %v2537, %v2643
      %v2762 = vadd.f32 %v2538, %v2645
      %v2763 = vadd.f32 %v2539, %v2647
      %v2764 = vadd.f32 %v2540, %v2649
      %v2765 = vadd.f32 %v2541, %v2651
      %v2766 = vadd.f32 %v2542, %v2653
      %v2767 = vadd.f32 %v2543, %v2655
      %v2768 = vadd.f32 %v2544, %v2657
      %v2769 = vadd.f32 %v2545, %v2659
      %v2770 = vadd.f32 %v2546, %v2661
      %v2771 = vadd.f32 %v2547, %v2663
      %v2772 = vrot.slane %v891, 2
      %v2773 = vrot.slane %v894, 2
      %v2774 = vsel %vm1320, %v2772, %v2773
      %v2775 = vrot.slane %v899, 2
      %v2776 = vsel %vm1320, %v2773, %v2775
      %v2777 = vrot.slane %v902, 2
      %v2778 = vsel %vm1320, %v2775, %v2777
      %2779 = vrot.lane.b32.xlu0 %v1337, 96
      %v2780 = vpop.permute.xlu0 %2779
      %2781 = vrot.lane.b32.xlu0 %v1339, 96
      %v2782 = vpop.permute.xlu0 %2781
      %2783 = vrot.lane.b32.xlu0 %v1341, 96
      %v2784 = vpop.permute.xlu0 %2783
      %2785 = vrot.lane.b32.xlu0 %v1344, 96
      %v2786 = vpop.permute.xlu0 %2785
      %2787 = vrot.lane.b32.xlu0 %v1346, 96
      %v2788 = vpop.permute.xlu0 %2787
      %2789 = vrot.lane.b32.xlu0 %v1348, 96
      %v2790 = vpop.permute.xlu0 %2789
      %2791 = vrot.lane.b32.xlu0 %v1351, 96
      %v2792 = vpop.permute.xlu0 %2791
      %2793 = vrot.lane.b32.xlu0 %v1353, 96
      %v2794 = vpop.permute.xlu0 %2793
      %2795 = vrot.lane.b32.xlu0 %v1355, 96
      %v2796 = vpop.permute.xlu0 %2795
      %2797 = vrot.lane.b32.xlu0 %v1358, 96
      %v2798 = vpop.permute.xlu0 %2797
      %2799 = vrot.lane.b32.xlu0 %v1360, 96
      %v2800 = vpop.permute.xlu0 %2799
      %2801 = vrot.lane.b32.xlu0 %v1362, 96
      %v2802 = vpop.permute.xlu0 %2801
      %2803 = vrot.lane.b32.xlu0 %v1365, 96
      %v2804 = vpop.permute.xlu0 %2803
      %2805 = vrot.lane.b32.xlu0 %v1367, 96
      %v2806 = vpop.permute.xlu0 %2805
      %2807 = vrot.lane.b32.xlu0 %v1369, 96
      %v2808 = vpop.permute.xlu0 %2807
      %2809 = vrot.lane.b32.xlu0 %v1372, 96
      %v2810 = vpop.permute.xlu0 %2809
      %2811 = vrot.lane.b32.xlu0 %v1374, 96
      %v2812 = vpop.permute.xlu0 %2811
      %2813 = vrot.lane.b32.xlu0 %v1376, 96
      %v2814 = vpop.permute.xlu0 %2813
      %2815 = vrot.lane.b32.xlu0 %v1379, 96
      %v2816 = vpop.permute.xlu0 %2815
      %2817 = vrot.lane.b32.xlu0 %v1381, 96
      %v2818 = vpop.permute.xlu0 %2817
      %2819 = vrot.lane.b32.xlu0 %v1383, 96
      %v2820 = vpop.permute.xlu0 %2819
      %2821 = vrot.lane.b32.xlu0 %v1386, 96
      %v2822 = vpop.permute.xlu0 %2821
      %2823 = vrot.lane.b32.xlu0 %v1388, 96
      %v2824 = vpop.permute.xlu0 %2823
      %2825 = vrot.lane.b32.xlu0 %v1390, 96
      %v2826 = vpop.permute.xlu0 %2825
      %2827 = vrot.lane.b32.xlu0 %v1393, 96
      %v2828 = vpop.permute.xlu0 %2827
      %2829 = vrot.lane.b32.xlu0 %v1395, 96
      %v2830 = vpop.permute.xlu0 %2829
      %2831 = vrot.lane.b32.xlu0 %v1397, 96
      %v2832 = vpop.permute.xlu0 %2831
      %2833 = vrot.lane.b32.xlu0 %v1400, 96
      %v2834 = vpop.permute.xlu0 %2833
      %2835 = vrot.lane.b32.xlu0 %v1402, 96
      %v2836 = vpop.permute.xlu0 %2835
      %2837 = vrot.lane.b32.xlu0 %v1404, 96
      %v2838 = vpop.permute.xlu0 %2837
      %2839 = vrot.lane.b32.xlu0 %v1407, 96
      %v2840 = vpop.permute.xlu0 %2839
      %2841 = vrot.lane.b32.xlu0 %v1409, 96
      %v2842 = vpop.permute.xlu0 %2841
      %2843 = vrot.lane.b32.xlu0 %v1411, 96
      %v2844 = vpop.permute.xlu0 %2843
      %2845 = vrot.lane.b32.xlu0 %v1414, 96
      %v2846 = vpop.permute.xlu0 %2845
      %2847 = vrot.lane.b32.xlu0 %v1416, 96
      %v2848 = vpop.permute.xlu0 %2847
      %2849 = vrot.lane.b32.xlu0 %v1418, 96
      %v2850 = vpop.permute.xlu0 %2849
      %2851 = vrot.lane.b32.xlu0 %v1421, 96
      %v2852 = vpop.permute.xlu0 %2851
      %2853 = vrot.lane.b32.xlu0 %v1423, 96
      %v2854 = vpop.permute.xlu0 %2853
      %2855 = vrot.lane.b32.xlu0 %v1425, 96
      %v2856 = vpop.permute.xlu0 %2855
      %2857 = vrot.lane.b32.xlu0 %v1428, 96
      %v2858 = vpop.permute.xlu0 %2857
      %2859 = vrot.lane.b32.xlu0 %v1430, 96
      %v2860 = vpop.permute.xlu0 %2859
      %2861 = vrot.lane.b32.xlu0 %v1432, 96
      %v2862 = vpop.permute.xlu0 %2861
      %2863 = vrot.lane.b32.xlu0 %v1435, 96
      %v2864 = vpop.permute.xlu0 %2863
      %2865 = vrot.lane.b32.xlu0 %v1437, 96
      %v2866 = vpop.permute.xlu0 %2865
      %2867 = vrot.lane.b32.xlu0 %v1439, 96
      %v2868 = vpop.permute.xlu0 %2867
      %2869 = vrot.lane.b32.xlu0 %v1442, 96
      %v2870 = vpop.permute.xlu0 %2869
      %2871 = vrot.lane.b32.xlu0 %v1444, 96
      %v2872 = vpop.permute.xlu0 %2871
      %2873 = vrot.lane.b32.xlu0 %v1446, 96
      %v2874 = vpop.permute.xlu0 %2873
      %2875 = vrot.lane.b32.xlu0 %v2108, 96
      %v2876 = vpop.permute.xlu0 %2875
      %2877 = vrot.lane.b32.xlu0 %v2110, 96
      %v2878 = vpop.permute.xlu0 %2877
      %2879 = vrot.lane.b32.xlu0 %v2112, 96
      %v2880 = vpop.permute.xlu0 %2879
      %2881 = vrot.lane.b32.xlu0 %v2774, 96
      %v2882 = vpop.permute.xlu0 %2881
      %2883 = vrot.lane.b32.xlu0 %v2776, 96
      %v2884 = vpop.permute.xlu0 %2883
      %2885 = vrot.lane.b32.xlu0 %v2778, 96
      %v2886 = vpop.permute.xlu0 %2885
      %v2941 = vadd.f32 %v2718, %v2780
      %v2942 = vadd.f32 %v2719, %v2782
      %v2943 = vadd.f32 %v2720, %v2784
      %v2944 = vadd.f32 %v2721, %v2786
      %v2945 = vadd.f32 %v2722, %v2788
      %v2946 = vadd.f32 %v2723, %v2790
      %v2947 = vadd.f32 %v2724, %v2792
      %v2948 = vadd.f32 %v2725, %v2794
      %v2949 = vadd.f32 %v2726, %v2796
      %v2950 = vadd.f32 %v2727, %v2798
      %v2951 = vadd.f32 %v2728, %v2800
      %v2952 = vadd.f32 %v2729, %v2802
      %v2953 = vadd.f32 %v2730, %v2804
      %v2954 = vadd.f32 %v2731, %v2806
      %v2955 = vadd.f32 %v2732, %v2808
      %v2956 = vadd.f32 %v2733, %v2810
      %v2957 = vadd.f32 %v2734, %v2812
      %v2958 = vadd.f32 %v2735, %v2814
      %v2959 = vadd.f32 %v2736, %v2816
      %v2960 = vadd.f32 %v2737, %v2818
      %v2961 = vadd.f32 %v2738, %v2820
      %v2962 = vadd.f32 %v2739, %v2822
      %v2963 = vadd.f32 %v2740, %v2824
      %v2964 = vadd.f32 %v2741, %v2826
      %v2965 = vadd.f32 %v2742, %v2828
      %v2966 = vadd.f32 %v2743, %v2830
      %v2967 = vadd.f32 %v2744, %v2832
      %v2968 = vadd.f32 %v2745, %v2834
      %v2969 = vadd.f32 %v2746, %v2836
      %v2970 = vadd.f32 %v2747, %v2838
      %v2971 = vadd.f32 %v2748, %v2840
      %v2972 = vadd.f32 %v2749, %v2842
      %v2973 = vadd.f32 %v2750, %v2844
      %v2974 = vadd.f32 %v2751, %v2846
      %v2975 = vadd.f32 %v2752, %v2848
      %v2976 = vadd.f32 %v2753, %v2850
      %v2977 = vadd.f32 %v2754, %v2852
      %v2978 = vadd.f32 %v2755, %v2854
      %v2979 = vadd.f32 %v2756, %v2856
      %v2980 = vadd.f32 %v2757, %v2858
      %v2981 = vadd.f32 %v2758, %v2860
      %v2982 = vadd.f32 %v2759, %v2862
      %v2983 = vadd.f32 %v2760, %v2864
      %v2984 = vadd.f32 %v2761, %v2866
      %v2985 = vadd.f32 %v2762, %v2868
      %v2986 = vadd.f32 %v2763, %v2870
      %v2987 = vadd.f32 %v2764, %v2872
      %v2988 = vadd.f32 %v2765, %v2874
      %v2989 = vadd.f32 %v2766, %v2876
      %v2990 = vadd.f32 %v2767, %v2878
      %v2991 = vadd.f32 %v2768, %v2880
      %v2992 = vadd.f32 %v2769, %v2882
      %v2993 = vadd.f32 %v2770, %v2884
      %v2994 = vadd.f32 %v2771, %v2886
      %v2995 = vld [vmem:[%s2] sm:$0x1]
      %v2997 = vlaneseq
      %v2998 = vshrl.u32 %v2997, 7
      %v2999 = vsub.s32 0, %v2998
      %v3000 = vrot.slane %v2995, %v2999
      %v3002 = vadd.f32 %v2941, %v3000
      %v3003 = vadd.f32 %v2942, %v3000
      %v3004 = vadd.f32 %v2943, %v3000
      %v3005 = vadd.f32 %v2944, %v3000
      %v3006 = vadd.f32 %v2945, %v3000
      %v3007 = vadd.f32 %v2946, %v3000
      %v3008 = vadd.f32 %v2947, %v3000
      %v3009 = vadd.f32 %v2948, %v3000
      %v3010 = vadd.f32 %v2949, %v3000
      %v3011 = vadd.f32 %v2950, %v3000
      %v3012 = vadd.f32 %v2951, %v3000
      %v3013 = vadd.f32 %v2952, %v3000
      %v3014 = vadd.f32 %v2953, %v3000
      %v3015 = vadd.f32 %v2954, %v3000
      %v3016 = vadd.f32 %v2955, %v3000
      %v3017 = vadd.f32 %v2956, %v3000
      %v3018 = vadd.f32 %v2957, %v3000
      %v3019 = vadd.f32 %v2958, %v3000
      %v3020 = vadd.f32 %v2959, %v3000
      %v3021 = vadd.f32 %v2960, %v3000
      %v3022 = vadd.f32 %v2961, %v3000
      %v3023 = vadd.f32 %v2962, %v3000
      %v3024 = vadd.f32 %v2963, %v3000
      %v3025 = vadd.f32 %v2964, %v3000
      %v3026 = vadd.f32 %v2965, %v3000
      %v3027 = vadd.f32 %v2966, %v3000
      %v3028 = vadd.f32 %v2967, %v3000
      %v3029 = vadd.f32 %v2968, %v3000
      %v3030 = vadd.f32 %v2969, %v3000
      %v3031 = vadd.f32 %v2970, %v3000
      %v3032 = vadd.f32 %v2971, %v3000
      %v3033 = vadd.f32 %v2972, %v3000
      %v3034 = vadd.f32 %v2973, %v3000
      %v3035 = vadd.f32 %v2974, %v3000
      %v3036 = vadd.f32 %v2975, %v3000
      %v3037 = vadd.f32 %v2976, %v3000
      %v3038 = vadd.f32 %v2977, %v3000
      %v3039 = vadd.f32 %v2978, %v3000
      %v3040 = vadd.f32 %v2979, %v3000
      %v3041 = vadd.f32 %v2980, %v3000
      %v3042 = vadd.f32 %v2981, %v3000
      %v3043 = vadd.f32 %v2982, %v3000
      %v3044 = vadd.f32 %v2983, %v3000
      %v3045 = vadd.f32 %v2984, %v3000
      %v3046 = vadd.f32 %v2985, %v3000
      %v3047 = vadd.f32 %v2986, %v3000
      %v3048 = vadd.f32 %v2987, %v3000
      %v3049 = vadd.f32 %v2988, %v3000
      %v3050 = vadd.f32 %v2989, %v3000
      %v3051 = vadd.f32 %v2990, %v3000
      %v3052 = vadd.f32 %v2991, %v3000
      %v3053 = vadd.f32 %v2992, %v3000
      %v3054 = vadd.f32 %v2993, %v3000
      %v3055 = vadd.f32 %v2994, %v3000
      %v3056 = vlaneseq
      %v3057 = vshrl.u32 %v3056, 7
      %v3058 = vadd.s32 %v3057, 8
      %v3059 = vadd.s32 %v3057, 16
      %vm3060 = vcmp.ge.s32.totalorder %v3057, 1
      %vm3061 = vcmp.ge.s32.totalorder %v3058, 1
      %vm3062 = vcmp.ge.s32.totalorder %v3059, 1
      %vm3063 = vmand 0, %vm3060
      %vm3064 = vmand 0, %vm3061
      %vm3065 = vmand 0, %vm3062
      %vm3066 = vmand 1, %vm3060
      %vm3067 = vmand 1, %vm3061
      %vm3068 = vmand 1, %vm3062
      %vm3069 = vcmp.le.s32.totalorder %v3057, 16
      %vm3070 = vcmp.le.s32.totalorder %v3058, 16
      %vm3071 = vcmp.le.s32.totalorder %v3059, 16
      %vm3072 = vmand %vm3063, %vm3069
      %vm3073 = vmand %vm3064, %vm3070
      %vm3074 = vmand %vm3065, %vm3071
      %vm3075 = vmand %vm3066, %vm3069
      %vm3076 = vmand %vm3067, %vm3070
      %vm3077 = vmand %vm3068, %vm3071
      %v3078 = vmax.f32 %v3002, 0.0
      %v3079 = vmax.f32 %v3003, 0.0
      %v3080 = vmax.f32 %v3004, 0.0
      %v3081 = vmax.f32 %v3005, 0.0
      %v3082 = vmax.f32 %v3006, 0.0
      %v3083 = vmax.f32 %v3007, 0.0
      %v3084 = vmax.f32 %v3008, 0.0
      %v3085 = vmax.f32 %v3009, 0.0
      %v3086 = vmax.f32 %v3010, 0.0
      %v3087 = vmax.f32 %v3011, 0.0
      %v3088 = vmax.f32 %v3012, 0.0
      %v3089 = vmax.f32 %v3013, 0.0
      %v3090 = vmax.f32 %v3014, 0.0
      %v3091 = vmax.f32 %v3015, 0.0
      %v3092 = vmax.f32 %v3016, 0.0
      %v3093 = vmax.f32 %v3017, 0.0
      %v3094 = vmax.f32 %v3018, 0.0
      %v3095 = vmax.f32 %v3019, 0.0
      %v3096 = vmax.f32 %v3020, 0.0
      %v3097 = vmax.f32 %v3021, 0.0
      %v3098 = vmax.f32 %v3022, 0.0
      %v3099 = vmax.f32 %v3023, 0.0
      %v3100 = vmax.f32 %v3024, 0.0
      %v3101 = vmax.f32 %v3025, 0.0
      %v3102 = vmax.f32 %v3026, 0.0
      %v3103 = vmax.f32 %v3027, 0.0
      %v3104 = vmax.f32 %v3028, 0.0
      %v3105 = vmax.f32 %v3029, 0.0
      %v3106 = vmax.f32 %v3030, 0.0
      %v3107 = vmax.f32 %v3031, 0.0
      %v3108 = vmax.f32 %v3032, 0.0
      %v3109 = vmax.f32 %v3033, 0.0
      %v3110 = vmax.f32 %v3034, 0.0
      %v3111 = vmax.f32 %v3035, 0.0
      %v3112 = vmax.f32 %v3036, 0.0
      %v3113 = vmax.f32 %v3037, 0.0
      %v3114 = vmax.f32 %v3038, 0.0
      %v3115 = vmax.f32 %v3039, 0.0
      %v3116 = vmax.f32 %v3040, 0.0
      %v3117 = vmax.f32 %v3041, 0.0
      %v3118 = vmax.f32 %v3042, 0.0
      %v3119 = vmax.f32 %v3043, 0.0
      %v3120 = vmax.f32 %v3044, 0.0
      %v3121 = vmax.f32 %v3045, 0.0
      %v3122 = vmax.f32 %v3046, 0.0
      %v3123 = vmax.f32 %v3047, 0.0
      %v3124 = vmax.f32 %v3048, 0.0
      %v3125 = vmax.f32 %v3049, 0.0
      %v3126 = vmax.f32 %v3050, 0.0
      %v3127 = vmax.f32 %v3051, 0.0
      %v3128 = vmax.f32 %v3052, 0.0
      %v3129 = vmax.f32 %v3053, 0.0
      %v3130 = vmax.f32 %v3054, 0.0
      %v3131 = vmax.f32 %v3055, 0.0
      %v3132 = vsel %vm3072, %v3078, 0.0
      %v3133 = vsel %vm3073, %v3079, 0.0
      %v3134 = vsel %vm3074, %v3080, 0.0
      %v3135 = vsel %vm3075, %v3081, 0.0
      %v3136 = vsel %vm3076, %v3082, 0.0
      %v3137 = vsel %vm3077, %v3083, 0.0
      %v3138 = vsel %vm3075, %v3084, 0.0
      %v3139 = vsel %vm3076, %v3085, 0.0
      %v3140 = vsel %vm3077, %v3086, 0.0
      %v3141 = vsel %vm3075, %v3087, 0.0
      %v3142 = vsel %vm3076, %v3088, 0.0
      %v3143 = vsel %vm3077, %v3089, 0.0
      %v3144 = vsel %vm3075, %v3090, 0.0
      %v3145 = vsel %vm3076, %v3091, 0.0
      %v3146 = vsel %vm3077, %v3092, 0.0
      %v3147 = vsel %vm3075, %v3093, 0.0
      %v3148 = vsel %vm3076, %v3094, 0.0
      %v3149 = vsel %vm3077, %v3095, 0.0
      %v3150 = vsel %vm3075, %v3096, 0.0
      %v3151 = vsel %vm3076, %v3097, 0.0
      %v3152 = vsel %vm3077, %v3098, 0.0
      %v3153 = vsel %vm3075, %v3099, 0.0
      %v3154 = vsel %vm3076, %v3100, 0.0
      %v3155 = vsel %vm3077, %v3101, 0.0
      %v3156 = vsel %vm3075, %v3102, 0.0
      %v3157 = vsel %vm3076, %v3103, 0.0
      %v3158 = vsel %vm3077, %v3104, 0.0
      %v3159 = vsel %vm3075, %v3105, 0.0
      %v3160 = vsel %vm3076, %v3106, 0.0
      %v3161 = vsel %vm3077, %v3107, 0.0
      %v3162 = vsel %vm3075, %v3108, 0.0
      %v3163 = vsel %vm3076, %v3109, 0.0
      %v3164 = vsel %vm3077, %v3110, 0.0
      %v3165 = vsel %vm3075, %v3111, 0.0
      %v3166 = vsel %vm3076, %v3112, 0.0
      %v3167 = vsel %vm3077, %v3113, 0.0
      %v3168 = vsel %vm3075, %v3114, 0.0
      %v3169 = vsel %vm3076, %v3115, 0.0
      %v3170 = vsel %vm3077, %v3116, 0.0
      %v3171 = vsel %vm3075, %v3117, 0.0
      %v3172 = vsel %vm3076, %v3118, 0.0
      %v3173 = vsel %vm3077, %v3119, 0.0
      %v3174 = vsel %vm3075, %v3120, 0.0
      %v3175 = vsel %vm3076, %v3121, 0.0
      %v3176 = vsel %vm3077, %v3122, 0.0
      %v3177 = vsel %vm3075, %v3123, 0.0
      %v3178 = vsel %vm3076, %v3124, 0.0
      %v3179 = vsel %vm3077, %v3125, 0.0
      %v3180 = vsel %vm3075, %v3126, 0.0
      %v3181 = vsel %vm3076, %v3127, 0.0
      %v3182 = vsel %vm3077, %v3128, 0.0
      %v3183 = vsel %vm3072, %v3129, 0.0
      %v3184 = vsel %vm3073, %v3130, 0.0
      %v3185 = vsel %vm3074, %v3131, 0.0
      %v3186 = vpack.c.bf16 %v3133, %v3132
      %v3187 = vpack.c.bf16 %v3135, %v3134
      %v3188 = vpack.c.bf16 %v3137, %v3136
      %v3189 = vpack.c.bf16 %v3139, %v3138
      %v3190 = vpack.c.bf16 %v3141, %v3140
      %v3191 = vpack.c.bf16 %v3143, %v3142
      %v3192 = vpack.c.bf16 %v3145, %v3144
      %v3193 = vpack.c.bf16 %v3147, %v3146
      %v3194 = vpack.c.bf16 %v3149, %v3148
      %v3195 = vpack.c.bf16 %v3151, %v3150
      %v3196 = vpack.c.bf16 %v3153, %v3152
      %v3197 = vpack.c.bf16 %v3155, %v3154
      %v3198 = vpack.c.bf16 %v3157, %v3156
      %v3199 = vpack.c.bf16 %v3159, %v3158
      %v3200 = vpack.c.bf16 %v3161, %v3160
      %v3201 = vpack.c.bf16 %v3163, %v3162
      %v3202 = vpack.c.bf16 %v3165, %v3164
      %v3203 = vpack.c.bf16 %v3167, %v3166
      %v3204 = vpack.c.bf16 %v3169, %v3168
      %v3205 = vpack.c.bf16 %v3171, %v3170
      %v3206 = vpack.c.bf16 %v3173, %v3172
      %v3207 = vpack.c.bf16 %v3175, %v3174
      %v3208 = vpack.c.bf16 %v3177, %v3176
      %v3209 = vpack.c.bf16 %v3179, %v3178
      %v3210 = vpack.c.bf16 %v3181, %v3180
      %v3211 = vpack.c.bf16 %v3183, %v3182
      %v3212 = vpack.c.bf16 %v3185, %v3184
      %v3213 = vld [vmem:[%s3] sm:$0x3]
      %v3215 = vsel %vm427, %v3186, 0
      %v3218 = vsel %vm427, %v3187, 0
      %v3221 = vsel %vm427, %v3188, 0
      %v3224 = vsel %vm427, %v3189, 0
      %v3227 = vsel %vm427, %v3190, 0
      %v3230 = vsel %vm427, %v3191, 0
      %v3233 = vsel %vm427, %v3192, 0
      %v3236 = vsel %vm427, %v3193, 0
      %v3239 = vsel %vm427, %v3194, 0
      %v3242 = vsel %vm427, %v3195, 0
      %v3245 = vsel %vm427, %v3196, 0
      %v3248 = vsel %vm427, %v3197, 0
      %v3251 = vsel %vm427, %v3198, 0
      %v3254 = vsel %vm427, %v3199, 0
      %v3257 = vsel %vm427, %v3200, 0
      %v3260 = vsel %vm427, %v3201, 0
      %v3263 = vsel %vm427, %v3202, 0
      %v3266 = vsel %vm427, %v3203, 0
      %v3269 = vsel %vm427, %v3204, 0
      %v3272 = vsel %vm427, %v3205, 0
      %v3275 = vsel %vm427, %v3206, 0
      %v3278 = vsel %vm427, %v3207, 0
      %v3281 = vsel %vm427, %v3208, 0
      %v3284 = vsel %vm427, %v3209, 0
      %v3287 = vsel %vm427, %v3210, 0
      %v3290 = vsel %vm427, %v3211, 0
      %v3293 = vsel %vm427, %v3212, 0
      %v3296 = vsel %vm548, %v3213, 0
      %3298 = vmatprep.subr.bf16.mxu0 0
      %3299 = vmatpush1.bf16.msra.mxu0 0
      %3300 = vmatprep.subr.bf16.mxu0 0
      %3301 = vmatpush1.bf16.msra.mxu0 0
      %3302 = vmatprep.subr.bf16.mxu0 0
      %3303 = vmatpush1.bf16.msra.mxu0 0
      %3304 = vmatprep.subr.bf16.mxu0 0
      %3305 = vmatpush1.bf16.msra.mxu0 0
      %3306 = vmatprep.subr.bf16.mxu0 0
      %3307 = vmatpush1.bf16.msra.mxu0 0
      %3308 = vmatprep.subr.bf16.mxu0 0
      %3309 = vmatpush1.bf16.msra.mxu0 0
      %3310 = vmatprep.subr.bf16.mxu0 0
      %3311 = vmatpush1.bf16.msra.mxu0 0
      %3312 = vmatprep.subr.bf16.mxu0 0
      %3313 = vmatpush1.bf16.msra.mxu0 %v3296
      %3314 = vmatprep.subr.bf16.mxu0 0
      %3315 = vmatpush2.bf16.msra.mxu0 0
      %3316 = vmatprep.subr.bf16.mxu0 0
      %3317 = vmatpush2.bf16.msra.mxu0 0
      %3318 = vmatprep.subr.bf16.mxu0 0
      %3319 = vmatpush2.bf16.msra.mxu0 0
      %3320 = vmatprep.subr.bf16.mxu0 0
      %3321 = vmatpush2.bf16.msra.mxu0 0
      %3322 = vmatprep.subr.bf16.mxu0 0
      %3323 = vmatpush2.bf16.msra.mxu0 0
      %3324 = vmatprep.subr.bf16.mxu0 0
      %3325 = vmatpush2.bf16.msra.mxu0 0
      %3326 = vmatprep.subr.bf16.mxu0 0
      %3327 = vmatpush2.bf16.msra.mxu0 0
      %3328 = vmatprep.subr.bf16.mxu0 0
      %3329 = vmatpush2.bf16.msra.mxu0 0
      %3330 = vmatprep.mubr.bf16.mxu0 0
      %3331 = vmatmul.mubr.bf16.gmra.mxu0 %v3215
      %v3332 = vpop.f32.mrf.mxu0
      %v3333 = vadd.f32 0.0, %v3332
      %v3334 = vpop.f32.mrf.mxu0
      %v3335 = vpop.f32.mrf.mxu0
      %v3336 = vadd.f32 0.0, %v3335
      %v3337 = vpop.f32.mrf.mxu0
      %3338 = vmatprep.mubr.bf16.mxu0 0
      %3339 = vmatmul.mubr.bf16.gmra.mxu0 %v3218
      %v3340 = vpop.f32.mrf.mxu0
      %v3341 = vadd.f32 0.0, %v3340
      %v3342 = vpop.f32.mrf.mxu0
      %v3343 = vpop.f32.mrf.mxu0
      %v3344 = vadd.f32 0.0, %v3343
      %v3345 = vpop.f32.mrf.mxu0
      %3346 = vmatprep.mubr.bf16.mxu0 0
      %3347 = vmatmul.mubr.bf16.gmra.mxu0 %v3221
      %v3348 = vpop.f32.mrf.mxu0
      %v3349 = vadd.f32 0.0, %v3348
      %v3350 = vpop.f32.mrf.mxu0
      %v3351 = vpop.f32.mrf.mxu0
      %v3352 = vadd.f32 0.0, %v3351
      %v3353 = vpop.f32.mrf.mxu0
      %3354 = vmatprep.mubr.bf16.mxu0 0
      %3355 = vmatmul.mubr.bf16.gmra.mxu0 %v3224
      %v3356 = vpop.f32.mrf.mxu0
      %v3357 = vadd.f32 0.0, %v3356
      %v3358 = vpop.f32.mrf.mxu0
      %v3359 = vpop.f32.mrf.mxu0
      %v3360 = vadd.f32 0.0, %v3359
      %v3361 = vpop.f32.mrf.mxu0
      %3362 = vmatprep.mubr.bf16.mxu0 0
      %3363 = vmatmul.mubr.bf16.gmra.mxu0 %v3227
      %v3364 = vpop.f32.mrf.mxu0
      %v3365 = vadd.f32 0.0, %v3364
      %v3366 = vpop.f32.mrf.mxu0
      %v3367 = vpop.f32.mrf.mxu0
      %v3368 = vadd.f32 0.0, %v3367
      %v3369 = vpop.f32.mrf.mxu0
      %3370 = vmatprep.mubr.bf16.mxu0 0
      %3371 = vmatmul.mubr.bf16.gmra.mxu0 %v3230
      %v3372 = vpop.f32.mrf.mxu0
      %v3373 = vadd.f32 0.0, %v3372
      %v3374 = vpop.f32.mrf.mxu0
      %v3375 = vpop.f32.mrf.mxu0
      %v3376 = vadd.f32 0.0, %v3375
      %v3377 = vpop.f32.mrf.mxu0
      %3378 = vmatprep.mubr.bf16.mxu0 0
      %3379 = vmatmul.mubr.bf16.gmra.mxu0 %v3233
      %v3380 = vpop.f32.mrf.mxu0
      %v3381 = vadd.f32 0.0, %v3380
      %v3382 = vpop.f32.mrf.mxu0
      %v3383 = vpop.f32.mrf.mxu0
      %v3384 = vadd.f32 0.0, %v3383
      %v3385 = vpop.f32.mrf.mxu0
      %3386 = vmatprep.mubr.bf16.mxu0 0
      %3387 = vmatmul.mubr.bf16.gmra.mxu0 %v3236
      %v3388 = vpop.f32.mrf.mxu0
      %v3389 = vadd.f32 0.0, %v3388
      %v3390 = vpop.f32.mrf.mxu0
      %v3391 = vpop.f32.mrf.mxu0
      %v3392 = vadd.f32 0.0, %v3391
      %v3393 = vpop.f32.mrf.mxu0
      %3394 = vmatprep.mubr.bf16.mxu0 0
      %3395 = vmatmul.mubr.bf16.gmra.mxu0 %v3239
      %v3396 = vpop.f32.mrf.mxu0
      %v3397 = vadd.f32 0.0, %v3396
      %v3398 = vpop.f32.mrf.mxu0
      %v3399 = vpop.f32.mrf.mxu0
      %v3400 = vadd.f32 0.0, %v3399
      %v3401 = vpop.f32.mrf.mxu0
      %3402 = vmatprep.mubr.bf16.mxu0 0
      %3403 = vmatmul.mubr.bf16.gmra.mxu0 %v3242
      %v3404 = vpop.f32.mrf.mxu0
      %v3405 = vadd.f32 0.0, %v3404
      %v3406 = vpop.f32.mrf.mxu0
      %v3407 = vpop.f32.mrf.mxu0
      %v3408 = vadd.f32 0.0, %v3407
      %v3409 = vpop.f32.mrf.mxu0
      %3410 = vmatprep.mubr.bf16.mxu0 0
      %3411 = vmatmul.mubr.bf16.gmra.mxu0 %v3245
      %v3412 = vpop.f32.mrf.mxu0
      %v3413 = vadd.f32 0.0, %v3412
      %v3414 = vpop.f32.mrf.mxu0
      %v3415 = vpop.f32.mrf.mxu0
      %v3416 = vadd.f32 0.0, %v3415
      %v3417 = vpop.f32.mrf.mxu0
      %3418 = vmatprep.mubr.bf16.mxu0 0
      %3419 = vmatmul.mubr.bf16.gmra.mxu0 %v3248
      %v3420 = vpop.f32.mrf.mxu0
      %v3421 = vadd.f32 0.0, %v3420
      %v3422 = vpop.f32.mrf.mxu0
      %v3423 = vpop.f32.mrf.mxu0
      %v3424 = vadd.f32 0.0, %v3423
      %v3425 = vpop.f32.mrf.mxu0
      %3426 = vmatprep.mubr.bf16.mxu0 0
      %3427 = vmatmul.mubr.bf16.gmra.mxu0 %v3251
      %v3428 = vpop.f32.mrf.mxu0
      %v3429 = vadd.f32 0.0, %v3428
      %v3430 = vpop.f32.mrf.mxu0
      %v3431 = vpop.f32.mrf.mxu0
      %v3432 = vadd.f32 0.0, %v3431
      %v3433 = vpop.f32.mrf.mxu0
      %3434 = vmatprep.mubr.bf16.mxu0 0
      %3435 = vmatmul.mubr.bf16.gmra.mxu0 %v3254
      %v3436 = vpop.f32.mrf.mxu0
      %v3437 = vadd.f32 0.0, %v3436
      %v3438 = vpop.f32.mrf.mxu0
      %v3439 = vpop.f32.mrf.mxu0
      %v3440 = vadd.f32 0.0, %v3439
      %v3441 = vpop.f32.mrf.mxu0
      %3442 = vmatprep.mubr.bf16.mxu0 0
      %3443 = vmatmul.mubr.bf16.gmra.mxu0 %v3257
      %v3444 = vpop.f32.mrf.mxu0
      %v3445 = vadd.f32 0.0, %v3444
      %v3446 = vpop.f32.mrf.mxu0
      %v3447 = vpop.f32.mrf.mxu0
      %v3448 = vadd.f32 0.0, %v3447
      %v3449 = vpop.f32.mrf.mxu0
      %3450 = vmatprep.mubr.bf16.mxu0 0
      %3451 = vmatmul.mubr.bf16.gmra.mxu0 %v3260
      %v3452 = vpop.f32.mrf.mxu0
      %v3453 = vadd.f32 0.0, %v3452
      %v3454 = vpop.f32.mrf.mxu0
      %v3455 = vpop.f32.mrf.mxu0
      %v3456 = vadd.f32 0.0, %v3455
      %v3457 = vpop.f32.mrf.mxu0
      %3458 = vmatprep.mubr.bf16.mxu0 0
      %3459 = vmatmul.mubr.bf16.gmra.mxu0 %v3263
      %v3460 = vpop.f32.mrf.mxu0
      %v3461 = vadd.f32 0.0, %v3460
      %v3462 = vpop.f32.mrf.mxu0
      %v3463 = vpop.f32.mrf.mxu0
      %v3464 = vadd.f32 0.0, %v3463
      %v3465 = vpop.f32.mrf.mxu0
      %3466 = vmatprep.mubr.bf16.mxu0 0
      %3467 = vmatmul.mubr.bf16.gmra.mxu0 %v3266
      %v3468 = vpop.f32.mrf.mxu0
      %v3469 = vadd.f32 0.0, %v3468
      %v3470 = vpop.f32.mrf.mxu0
      %v3471 = vpop.f32.mrf.mxu0
      %v3472 = vadd.f32 0.0, %v3471
      %v3473 = vpop.f32.mrf.mxu0
      %3474 = vmatprep.mubr.bf16.mxu0 0
      %3475 = vmatmul.mubr.bf16.gmra.mxu0 %v3269
      %v3476 = vpop.f32.mrf.mxu0
      %v3477 = vadd.f32 0.0, %v3476
      %v3478 = vpop.f32.mrf.mxu0
      %v3479 = vpop.f32.mrf.mxu0
      %v3480 = vadd.f32 0.0, %v3479
      %v3481 = vpop.f32.mrf.mxu0
      %3482 = vmatprep.mubr.bf16.mxu0 0
      %3483 = vmatmul.mubr.bf16.gmra.mxu0 %v3272
      %v3484 = vpop.f32.mrf.mxu0
      %v3485 = vadd.f32 0.0, %v3484
      %v3486 = vpop.f32.mrf.mxu0
      %v3487 = vpop.f32.mrf.mxu0
      %v3488 = vadd.f32 0.0, %v3487
      %v3489 = vpop.f32.mrf.mxu0
      %3490 = vmatprep.mubr.bf16.mxu0 0
      %3491 = vmatmul.mubr.bf16.gmra.mxu0 %v3275
      %v3492 = vpop.f32.mrf.mxu0
      %v3493 = vadd.f32 0.0, %v3492
      %v3494 = vpop.f32.mrf.mxu0
      %v3495 = vpop.f32.mrf.mxu0
      %v3496 = vadd.f32 0.0, %v3495
      %v3497 = vpop.f32.mrf.mxu0
      %3498 = vmatprep.mubr.bf16.mxu0 0
      %3499 = vmatmul.mubr.bf16.gmra.mxu0 %v3278
      %v3500 = vpop.f32.mrf.mxu0
      %v3501 = vadd.f32 0.0, %v3500
      %v3502 = vpop.f32.mrf.mxu0
      %v3503 = vpop.f32.mrf.mxu0
      %v3504 = vadd.f32 0.0, %v3503
      %v3505 = vpop.f32.mrf.mxu0
      %3506 = vmatprep.mubr.bf16.mxu0 0
      %3507 = vmatmul.mubr.bf16.gmra.mxu0 %v3281
      %v3508 = vpop.f32.mrf.mxu0
      %v3509 = vadd.f32 0.0, %v3508
      %v3510 = vpop.f32.mrf.mxu0
      %v3511 = vpop.f32.mrf.mxu0
      %v3512 = vadd.f32 0.0, %v3511
      %v3513 = vpop.f32.mrf.mxu0
      %3514 = vmatprep.mubr.bf16.mxu0 0
      %3515 = vmatmul.mubr.bf16.gmra.mxu0 %v3284
      %v3516 = vpop.f32.mrf.mxu0
      %v3517 = vadd.f32 0.0, %v3516
      %v3518 = vpop.f32.mrf.mxu0
      %v3519 = vpop.f32.mrf.mxu0
      %v3520 = vadd.f32 0.0, %v3519
      %v3521 = vpop.f32.mrf.mxu0
      %3522 = vmatprep.mubr.bf16.mxu0 0
      %3523 = vmatmul.mubr.bf16.gmra.mxu0 %v3287
      %v3524 = vpop.f32.mrf.mxu0
      %v3525 = vadd.f32 0.0, %v3524
      %v3526 = vpop.f32.mrf.mxu0
      %v3527 = vpop.f32.mrf.mxu0
      %v3528 = vadd.f32 0.0, %v3527
      %v3529 = vpop.f32.mrf.mxu0
      %3530 = vmatprep.mubr.bf16.mxu0 0
      %3531 = vmatmul.mubr.bf16.gmra.mxu0 %v3290
      %v3532 = vpop.f32.mrf.mxu0
      %v3533 = vadd.f32 0.0, %v3532
      %v3534 = vpop.f32.mrf.mxu0
      %v3535 = vpop.f32.mrf.mxu0
      %v3536 = vadd.f32 0.0, %v3535
      %v3537 = vpop.f32.mrf.mxu0
      %3538 = vmatprep.mubr.bf16.mxu0 0
      %3539 = vmatmul.mubr.bf16.gmra.mxu0 %v3293
      %v3540 = vpop.f32.mrf.mxu0
      %v3541 = vadd.f32 0.0, %v3540
      %v3542 = vpop.f32.mrf.mxu0
      %v3543 = vpop.f32.mrf.mxu0
      %v3544 = vadd.f32 0.0, %v3543
      %v3545 = vpop.f32.mrf.mxu0
      %3546 = vdwg.mxu0
      %v3595 = vrot.slane %v3333, 1
      %v3596 = vrot.slane %v3336, 1
      %v3597 = vsel %vm977, %v3595, %v3596
      %v3598 = vrot.slane %v3341, 1
      %v3599 = vsel %vm977, %v3596, %v3598
      %v3600 = vrot.slane %v3344, 1
      %v3601 = vrot.slane %v3349, 1
      %v3602 = vsel %vm977, %v3600, %v3601
      %v3603 = vrot.slane %v3352, 1
      %v3604 = vsel %vm977, %v3601, %v3603
      %v3605 = vrot.slane %v3357, 1
      %v3606 = vrot.slane %v3360, 1
      %v3607 = vsel %vm977, %v3605, %v3606
      %v3608 = vrot.slane %v3365, 1
      %v3609 = vsel %vm977, %v3606, %v3608
      %v3610 = vrot.slane %v3368, 1
      %v3611 = vrot.slane %v3373, 1
      %v3612 = vsel %vm977, %v3610, %v3611
      %v3613 = vrot.slane %v3376, 1
      %v3614 = vsel %vm977, %v3611, %v3613
      %v3615 = vrot.slane %v3381, 1
      %v3616 = vrot.slane %v3384, 1
      %v3617 = vsel %vm977, %v3615, %v3616
      %v3618 = vrot.slane %v3389, 1
      %v3619 = vsel %vm977, %v3616, %v3618
      %v3620 = vrot.slane %v3392, 1
      %v3621 = vrot.slane %v3397, 1
      %v3622 = vsel %vm977, %v3620, %v3621
      %v3623 = vrot.slane %v3400, 1
      %v3624 = vsel %vm977, %v3621, %v3623
      %v3625 = vrot.slane %v3405, 1
      %v3626 = vrot.slane %v3408, 1
      %v3627 = vsel %vm977, %v3625, %v3626
      %v3628 = vrot.slane %v3413, 1
      %v3629 = vsel %vm977, %v3626, %v3628
      %v3630 = vrot.slane %v3416, 1
      %v3631 = vrot.slane %v3421, 1
      %v3632 = vsel %vm977, %v3630, %v3631
      %v3633 = vrot.slane %v3424, 1
      %v3634 = vsel %vm977, %v3631, %v3633
      %v3635 = vrot.slane %v3429, 1
      %v3636 = vrot.slane %v3432, 1
      %v3637 = vsel %vm977, %v3635, %v3636
      %v3638 = vrot.slane %v3437, 1
      %v3639 = vsel %vm977, %v3636, %v3638
      %v3640 = vrot.slane %v3440, 1
      %v3641 = vrot.slane %v3445, 1
      %v3642 = vsel %vm977, %v3640, %v3641
      %v3643 = vrot.slane %v3448, 1
      %v3644 = vsel %vm977, %v3641, %v3643
      %v3645 = vrot.slane %v3453, 1
      %v3646 = vrot.slane %v3456, 1
      %v3647 = vsel %vm977, %v3645, %v3646
      %v3648 = vrot.slane %v3461, 1
      %v3649 = vsel %vm977, %v3646, %v3648
      %v3650 = vrot.slane %v3464, 1
      %v3651 = vrot.slane %v3469, 1
      %v3652 = vsel %vm977, %v3650, %v3651
      %v3653 = vrot.slane %v3472, 1
      %v3654 = vsel %vm977, %v3651, %v3653
      %v3655 = vrot.slane %v3477, 1
      %v3656 = vrot.slane %v3480, 1
      %v3657 = vsel %vm977, %v3655, %v3656
      %v3658 = vrot.slane %v3485, 1
      %v3659 = vsel %vm977, %v3656, %v3658
      %v3660 = vrot.slane %v3488, 1
      %v3661 = vrot.slane %v3493, 1
      %v3662 = vsel %vm977, %v3660, %v3661
      %v3663 = vrot.slane %v3496, 1
      %v3664 = vsel %vm977, %v3661, %v3663
      %v3665 = vrot.slane %v3501, 1
      %v3666 = vrot.slane %v3504, 1
      %v3667 = vsel %vm977, %v3665, %v3666
      %v3668 = vrot.slane %v3509, 1
      %v3669 = vsel %vm977, %v3666, %v3668
      %v3670 = vrot.slane %v3512, 1
      %v3671 = vrot.slane %v3517, 1
      %v3672 = vsel %vm977, %v3670, %v3671
      %v3673 = vrot.slane %v3520, 1
      %v3674 = vsel %vm977, %v3671, %v3673
      %3675 = vrot.lane.b32.xlu0 %v3597, 124
      %v3676 = vpop.permute.xlu0 %3675
      %3677 = vrot.lane.b32.xlu0 %v3599, 124
      %v3678 = vpop.permute.xlu0 %3677
      %3679 = vrot.lane.b32.xlu0 %v3602, 124
      %v3680 = vpop.permute.xlu0 %3679
      %3681 = vrot.lane.b32.xlu0 %v3604, 124
      %v3682 = vpop.permute.xlu0 %3681
      %3683 = vrot.lane.b32.xlu0 %v3607, 124
      %v3684 = vpop.permute.xlu0 %3683
      %3685 = vrot.lane.b32.xlu0 %v3609, 124
      %v3686 = vpop.permute.xlu0 %3685
      %3687 = vrot.lane.b32.xlu0 %v3612, 124
      %v3688 = vpop.permute.xlu0 %3687
      %3689 = vrot.lane.b32.xlu0 %v3614, 124
      %v3690 = vpop.permute.xlu0 %3689
      %3691 = vrot.lane.b32.xlu0 %v3617, 124
      %v3692 = vpop.permute.xlu0 %3691
      %3693 = vrot.lane.b32.xlu0 %v3619, 124
      %v3694 = vpop.permute.xlu0 %3693
      %3695 = vrot.lane.b32.xlu0 %v3622, 124
      %v3696 = vpop.permute.xlu0 %3695
      %3697 = vrot.lane.b32.xlu0 %v3624, 124
      %v3698 = vpop.permute.xlu0 %3697
      %3699 = vrot.lane.b32.xlu0 %v3627, 124
      %v3700 = vpop.permute.xlu0 %3699
      %3701 = vrot.lane.b32.xlu0 %v3629, 124
      %v3702 = vpop.permute.xlu0 %3701
      %3703 = vrot.lane.b32.xlu0 %v3632, 124
      %v3704 = vpop.permute.xlu0 %3703
      %3705 = vrot.lane.b32.xlu0 %v3634, 124
      %v3706 = vpop.permute.xlu0 %3705
      %3707 = vrot.lane.b32.xlu0 %v3637, 124
      %v3708 = vpop.permute.xlu0 %3707
      %3709 = vrot.lane.b32.xlu0 %v3639, 124
      %v3710 = vpop.permute.xlu0 %3709
      %3711 = vrot.lane.b32.xlu0 %v3642, 124
      %v3712 = vpop.permute.xlu0 %3711
      %3713 = vrot.lane.b32.xlu0 %v3644, 124
      %v3714 = vpop.permute.xlu0 %3713
      %3715 = vrot.lane.b32.xlu0 %v3647, 124
      %v3716 = vpop.permute.xlu0 %3715
      %3717 = vrot.lane.b32.xlu0 %v3649, 124
      %v3718 = vpop.permute.xlu0 %3717
      %3719 = vrot.lane.b32.xlu0 %v3652, 124
      %v3720 = vpop.permute.xlu0 %3719
      %3721 = vrot.lane.b32.xlu0 %v3654, 124
      %v3722 = vpop.permute.xlu0 %3721
      %3723 = vrot.lane.b32.xlu0 %v3657, 124
      %v3724 = vpop.permute.xlu0 %3723
      %3725 = vrot.lane.b32.xlu0 %v3659, 124
      %v3726 = vpop.permute.xlu0 %3725
      %3727 = vrot.lane.b32.xlu0 %v3662, 124
      %v3728 = vpop.permute.xlu0 %3727
      %3729 = vrot.lane.b32.xlu0 %v3664, 124
      %v3730 = vpop.permute.xlu0 %3729
      %3731 = vrot.lane.b32.xlu0 %v3667, 124
      %v3732 = vpop.permute.xlu0 %3731
      %3733 = vrot.lane.b32.xlu0 %v3669, 124
      %v3734 = vpop.permute.xlu0 %3733
      %3735 = vrot.lane.b32.xlu0 %v3672, 124
      %v3736 = vpop.permute.xlu0 %3735
      %3737 = vrot.lane.b32.xlu0 %v3674, 124
      %v3738 = vpop.permute.xlu0 %3737
      %v3771 = vadd.f32 %v3333, %v3676
      %v3772 = vadd.f32 %v3336, %v3678
      %v3773 = vadd.f32 %v3344, %v3680
      %v3774 = vadd.f32 %v3349, %v3682
      %v3775 = vadd.f32 %v3357, %v3684
      %v3776 = vadd.f32 %v3360, %v3686
      %v3777 = vadd.f32 %v3368, %v3688
      %v3778 = vadd.f32 %v3373, %v3690
      %v3779 = vadd.f32 %v3381, %v3692
      %v3780 = vadd.f32 %v3384, %v3694
      %v3781 = vadd.f32 %v3392, %v3696
      %v3782 = vadd.f32 %v3397, %v3698
      %v3783 = vadd.f32 %v3405, %v3700
      %v3784 = vadd.f32 %v3408, %v3702
      %v3785 = vadd.f32 %v3416, %v3704
      %v3786 = vadd.f32 %v3421, %v3706
      %v3787 = vadd.f32 %v3429, %v3708
      %v3788 = vadd.f32 %v3432, %v3710
      %v3789 = vadd.f32 %v3440, %v3712
      %v3790 = vadd.f32 %v3445, %v3714
      %v3791 = vadd.f32 %v3453, %v3716
      %v3792 = vadd.f32 %v3456, %v3718
      %v3793 = vadd.f32 %v3464, %v3720
      %v3794 = vadd.f32 %v3469, %v3722
      %v3795 = vadd.f32 %v3477, %v3724
      %v3796 = vadd.f32 %v3480, %v3726
      %v3797 = vadd.f32 %v3488, %v3728
      %v3798 = vadd.f32 %v3493, %v3730
      %v3799 = vadd.f32 %v3501, %v3732
      %v3800 = vadd.f32 %v3504, %v3734
      %v3801 = vadd.f32 %v3512, %v3736
      %v3802 = vadd.f32 %v3517, %v3738
      %v3803 = vrot.slane %v3333, 2
      %v3804 = vrot.slane %v3336, 2
      %v3805 = vsel %vm1320, %v3803, %v3804
      %v3806 = vrot.slane %v3341, 2
      %v3807 = vsel %vm1320, %v3804, %v3806
      %v3808 = vrot.slane %v3344, 2
      %v3809 = vrot.slane %v3349, 2
      %v3810 = vsel %vm1320, %v3808, %v3809
      %v3811 = vrot.slane %v3352, 2
      %v3812 = vsel %vm1320, %v3809, %v3811
      %v3813 = vrot.slane %v3357, 2
      %v3814 = vrot.slane %v3360, 2
      %v3815 = vsel %vm1320, %v3813, %v3814
      %v3816 = vrot.slane %v3365, 2
      %v3817 = vsel %vm1320, %v3814, %v3816
      %v3818 = vrot.slane %v3368, 2
      %v3819 = vrot.slane %v3373, 2
      %v3820 = vsel %vm1320, %v3818, %v3819
      %v3821 = vrot.slane %v3376, 2
      %v3822 = vsel %vm1320, %v3819, %v3821
      %v3823 = vrot.slane %v3381, 2
      %v3824 = vrot.slane %v3384, 2
      %v3825 = vsel %vm1320, %v3823, %v3824
      %v3826 = vrot.slane %v3389, 2
      %v3827 = vsel %vm1320, %v3824, %v3826
      %v3828 = vrot.slane %v3392, 2
      %v3829 = vrot.slane %v3397, 2
      %v3830 = vsel %vm1320, %v3828, %v3829
      %v3831 = vrot.slane %v3400, 2
      %v3832 = vsel %vm1320, %v3829, %v3831
      %v3833 = vrot.slane %v3405, 2
      %v3834 = vrot.slane %v3408, 2
      %v3835 = vsel %vm1320, %v3833, %v3834
      %v3836 = vrot.slane %v3413, 2
      %v3837 = vsel %vm1320, %v3834, %v3836
      %v3838 = vrot.slane %v3416, 2
      %v3839 = vrot.slane %v3421, 2
      %v3840 = vsel %vm1320, %v3838, %v3839
      %v3841 = vrot.slane %v3424, 2
      %v3842 = vsel %vm1320, %v3839, %v3841
      %v3843 = vrot.slane %v3429, 2
      %v3844 = vrot.slane %v3432, 2
      %v3845 = vsel %vm1320, %v3843, %v3844
      %v3846 = vrot.slane %v3437, 2
      %v3847 = vsel %vm1320, %v3844, %v3846
      %v3848 = vrot.slane %v3440, 2
      %v3849 = vrot.slane %v3445, 2
      %v3850 = vsel %vm1320, %v3848, %v3849
      %v3851 = vrot.slane %v3448, 2
      %v3852 = vsel %vm1320, %v3849, %v3851
      %v3853 = vrot.slane %v3453, 2
      %v3854 = vrot.slane %v3456, 2
      %v3855 = vsel %vm1320, %v3853, %v3854
      %v3856 = vrot.slane %v3461, 2
      %v3857 = vsel %vm1320, %v3854, %v3856
      %v3858 = vrot.slane %v3464, 2
      %v3859 = vrot.slane %v3469, 2
      %v3860 = vsel %vm1320, %v3858, %v3859
      %v3861 = vrot.slane %v3472, 2
      %v3862 = vsel %vm1320, %v3859, %v3861
      %v3863 = vrot.slane %v3477, 2
      %v3864 = vrot.slane %v3480, 2
      %v3865 = vsel %vm1320, %v3863, %v3864
      %v3866 = vrot.slane %v3485, 2
      %v3867 = vsel %vm1320, %v3864, %v3866
      %v3868 = vrot.slane %v3488, 2
      %v3869 = vrot.slane %v3493, 2
      %v3870 = vsel %vm1320, %v3868, %v3869
      %v3871 = vrot.slane %v3496, 2
      %v3872 = vsel %vm1320, %v3869, %v3871
      %v3873 = vrot.slane %v3501, 2
      %v3874 = vrot.slane %v3504, 2
      %v3875 = vsel %vm1320, %v3873, %v3874
      %v3876 = vrot.slane %v3509, 2
      %v3877 = vsel %vm1320, %v3874, %v3876
      %v3878 = vrot.slane %v3512, 2
      %v3879 = vrot.slane %v3517, 2
      %v3880 = vsel %vm1320, %v3878, %v3879
      %v3881 = vrot.slane %v3520, 2
      %v3882 = vsel %vm1320, %v3879, %v3881
      %3883 = vrot.lane.b32.xlu0 %v3805, 120
      %v3884 = vpop.permute.xlu0 %3883
      %3885 = vrot.lane.b32.xlu0 %v3807, 120
      %v3886 = vpop.permute.xlu0 %3885
      %3887 = vrot.lane.b32.xlu0 %v3810, 120
      %v3888 = vpop.permute.xlu0 %3887
      %3889 = vrot.lane.b32.xlu0 %v3812, 120
      %v3890 = vpop.permute.xlu0 %3889
      %3891 = vrot.lane.b32.xlu0 %v3815, 120
      %v3892 = vpop.permute.xlu0 %3891
      %3893 = vrot.lane.b32.xlu0 %v3817, 120
      %v3894 = vpop.permute.xlu0 %3893
      %3895 = vrot.lane.b32.xlu0 %v3820, 120
      %v3896 = vpop.permute.xlu0 %3895
      %3897 = vrot.lane.b32.xlu0 %v3822, 120
      %v3898 = vpop.permute.xlu0 %3897
      %3899 = vrot.lane.b32.xlu0 %v3825, 120
      %v3900 = vpop.permute.xlu0 %3899
      %3901 = vrot.lane.b32.xlu0 %v3827, 120
      %v3902 = vpop.permute.xlu0 %3901
      %3903 = vrot.lane.b32.xlu0 %v3830, 120
      %v3904 = vpop.permute.xlu0 %3903
      %3905 = vrot.lane.b32.xlu0 %v3832, 120
      %v3906 = vpop.permute.xlu0 %3905
      %3907 = vrot.lane.b32.xlu0 %v3835, 120
      %v3908 = vpop.permute.xlu0 %3907
      %3909 = vrot.lane.b32.xlu0 %v3837, 120
      %v3910 = vpop.permute.xlu0 %3909
      %3911 = vrot.lane.b32.xlu0 %v3840, 120
      %v3912 = vpop.permute.xlu0 %3911
      %3913 = vrot.lane.b32.xlu0 %v3842, 120
      %v3914 = vpop.permute.xlu0 %3913
      %3915 = vrot.lane.b32.xlu0 %v3845, 120
      %v3916 = vpop.permute.xlu0 %3915
      %3917 = vrot.lane.b32.xlu0 %v3847, 120
      %v3918 = vpop.permute.xlu0 %3917
      %3919 = vrot.lane.b32.xlu0 %v3850, 120
      %v3920 = vpop.permute.xlu0 %3919
      %3921 = vrot.lane.b32.xlu0 %v3852, 120
      %v3922 = vpop.permute.xlu0 %3921
      %3923 = vrot.lane.b32.xlu0 %v3855, 120
      %v3924 = vpop.permute.xlu0 %3923
      %3925 = vrot.lane.b32.xlu0 %v3857, 120
      %v3926 = vpop.permute.xlu0 %3925
      %3927 = vrot.lane.b32.xlu0 %v3860, 120
      %v3928 = vpop.permute.xlu0 %3927
      %3929 = vrot.lane.b32.xlu0 %v3862, 120
      %v3930 = vpop.permute.xlu0 %3929
      %3931 = vrot.lane.b32.xlu0 %v3865, 120
      %v3932 = vpop.permute.xlu0 %3931
      %3933 = vrot.lane.b32.xlu0 %v3867, 120
      %v3934 = vpop.permute.xlu0 %3933
      %3935 = vrot.lane.b32.xlu0 %v3870, 120
      %v3936 = vpop.permute.xlu0 %3935
      %3937 = vrot.lane.b32.xlu0 %v3872, 120
      %v3938 = vpop.permute.xlu0 %3937
      %3939 = vrot.lane.b32.xlu0 %v3875, 120
      %v3940 = vpop.permute.xlu0 %3939
      %3941 = vrot.lane.b32.xlu0 %v3877, 120
      %v3942 = vpop.permute.xlu0 %3941
      %3943 = vrot.lane.b32.xlu0 %v3880, 120
      %v3944 = vpop.permute.xlu0 %3943
      %3945 = vrot.lane.b32.xlu0 %v3882, 120
      %v3946 = vpop.permute.xlu0 %3945
      %v3979 = vadd.f32 %v3771, %v3884
      %v3980 = vadd.f32 %v3772, %v3886
      %v3981 = vadd.f32 %v3773, %v3888
      %v3982 = vadd.f32 %v3774, %v3890
      %v3983 = vadd.f32 %v3775, %v3892
      %v3984 = vadd.f32 %v3776, %v3894
      %v3985 = vadd.f32 %v3777, %v3896
      %v3986 = vadd.f32 %v3778, %v3898
      %v3987 = vadd.f32 %v3779, %v3900
      %v3988 = vadd.f32 %v3780, %v3902
      %v3989 = vadd.f32 %v3781, %v3904
      %v3990 = vadd.f32 %v3782, %v3906
      %v3991 = vadd.f32 %v3783, %v3908
      %v3992 = vadd.f32 %v3784, %v3910
      %v3993 = vadd.f32 %v3785, %v3912
      %v3994 = vadd.f32 %v3786, %v3914
      %v3995 = vadd.f32 %v3787, %v3916
      %v3996 = vadd.f32 %v3788, %v3918
      %v3997 = vadd.f32 %v3789, %v3920
      %v3998 = vadd.f32 %v3790, %v3922
      %v3999 = vadd.f32 %v3791, %v3924
      %v4000 = vadd.f32 %v3792, %v3926
      %v4001 = vadd.f32 %v3793, %v3928
      %v4002 = vadd.f32 %v3794, %v3930
      %v4003 = vadd.f32 %v3795, %v3932
      %v4004 = vadd.f32 %v3796, %v3934
      %v4005 = vadd.f32 %v3797, %v3936
      %v4006 = vadd.f32 %v3798, %v3938
      %v4007 = vadd.f32 %v3799, %v3940
      %v4008 = vadd.f32 %v3800, %v3942
      %v4009 = vadd.f32 %v3801, %v3944
      %v4010 = vadd.f32 %v3802, %v3946
      %4013 = vrot.lane.b32.xlu0 %v3344, 116
      %v4014 = vpop.permute.xlu0 %4013
      %4015 = vrot.lane.b32.xlu0 %v3349, 116
      %v4016 = vpop.permute.xlu0 %4015
      %4017 = vrot.lane.b32.xlu0 %v3357, 116
      %v4018 = vpop.permute.xlu0 %4017
      %4019 = vrot.lane.b32.xlu0 %v3360, 116
      %v4020 = vpop.permute.xlu0 %4019
      %4021 = vrot.lane.b32.xlu0 %v3368, 116
      %v4022 = vpop.permute.xlu0 %4021
      %4023 = vrot.lane.b32.xlu0 %v3373, 116
      %v4024 = vpop.permute.xlu0 %4023
      %4025 = vrot.lane.b32.xlu0 %v3381, 116
      %v4026 = vpop.permute.xlu0 %4025
      %4027 = vrot.lane.b32.xlu0 %v3384, 116
      %v4028 = vpop.permute.xlu0 %4027
      %4029 = vrot.lane.b32.xlu0 %v3392, 116
      %v4030 = vpop.permute.xlu0 %4029
      %4031 = vrot.lane.b32.xlu0 %v3397, 116
      %v4032 = vpop.permute.xlu0 %4031
      %4033 = vrot.lane.b32.xlu0 %v3405, 116
      %v4034 = vpop.permute.xlu0 %4033
      %4035 = vrot.lane.b32.xlu0 %v3408, 116
      %v4036 = vpop.permute.xlu0 %4035
      %4037 = vrot.lane.b32.xlu0 %v3416, 116
      %v4038 = vpop.permute.xlu0 %4037
      %4039 = vrot.lane.b32.xlu0 %v3421, 116
      %v4040 = vpop.permute.xlu0 %4039
      %4041 = vrot.lane.b32.xlu0 %v3429, 116
      %v4042 = vpop.permute.xlu0 %4041
      %4043 = vrot.lane.b32.xlu0 %v3432, 116
      %v4044 = vpop.permute.xlu0 %4043
      %4045 = vrot.lane.b32.xlu0 %v3440, 116
      %v4046 = vpop.permute.xlu0 %4045
      %4047 = vrot.lane.b32.xlu0 %v3445, 116
      %v4048 = vpop.permute.xlu0 %4047
      %4049 = vrot.lane.b32.xlu0 %v3453, 116
      %v4050 = vpop.permute.xlu0 %4049
      %4051 = vrot.lane.b32.xlu0 %v3456, 116
      %v4052 = vpop.permute.xlu0 %4051
      %4053 = vrot.lane.b32.xlu0 %v3464, 116
      %v4054 = vpop.permute.xlu0 %4053
      %4055 = vrot.lane.b32.xlu0 %v3469, 116
      %v4056 = vpop.permute.xlu0 %4055
      %4057 = vrot.lane.b32.xlu0 %v3477, 116
      %v4058 = vpop.permute.xlu0 %4057
      %4059 = vrot.lane.b32.xlu0 %v3480, 116
      %v4060 = vpop.permute.xlu0 %4059
      %4061 = vrot.lane.b32.xlu0 %v3488, 116
      %v4062 = vpop.permute.xlu0 %4061
      %4063 = vrot.lane.b32.xlu0 %v3493, 116
      %v4064 = vpop.permute.xlu0 %4063
      %4065 = vrot.lane.b32.xlu0 %v3501, 116
      %v4066 = vpop.permute.xlu0 %4065
      %4067 = vrot.lane.b32.xlu0 %v3504, 116
      %v4068 = vpop.permute.xlu0 %4067
      %4069 = vrot.lane.b32.xlu0 %v3512, 116
      %v4070 = vpop.permute.xlu0 %4069
      %4071 = vrot.lane.b32.xlu0 %v3517, 116
      %v4072 = vpop.permute.xlu0 %4071
      %4073 = vrot.lane.b32.xlu0 %v3525, 116
      %v4074 = vpop.permute.xlu0 %4073
      %4075 = vrot.lane.b32.xlu0 %v3528, 116
      %v4076 = vpop.permute.xlu0 %4075
      %v4109 = vadd.f32 %v3979, %v4014
      %v4110 = vadd.f32 %v3980, %v4016
      %v4111 = vadd.f32 %v3981, %v4018
      %v4112 = vadd.f32 %v3982, %v4020
      %v4113 = vadd.f32 %v3983, %v4022
      %v4114 = vadd.f32 %v3984, %v4024
      %v4115 = vadd.f32 %v3985, %v4026
      %v4116 = vadd.f32 %v3986, %v4028
      %v4117 = vadd.f32 %v3987, %v4030
      %v4118 = vadd.f32 %v3988, %v4032
      %v4119 = vadd.f32 %v3989, %v4034
      %v4120 = vadd.f32 %v3990, %v4036
      %v4121 = vadd.f32 %v3991, %v4038
      %v4122 = vadd.f32 %v3992, %v4040
      %v4123 = vadd.f32 %v3993, %v4042
      %v4124 = vadd.f32 %v3994, %v4044
      %v4125 = vadd.f32 %v3995, %v4046
      %v4126 = vadd.f32 %v3996, %v4048
      %v4127 = vadd.f32 %v3997, %v4050
      %v4128 = vadd.f32 %v3998, %v4052
      %v4129 = vadd.f32 %v3999, %v4054
      %v4130 = vadd.f32 %v4000, %v4056
      %v4131 = vadd.f32 %v4001, %v4058
      %v4132 = vadd.f32 %v4002, %v4060
      %v4133 = vadd.f32 %v4003, %v4062
      %v4134 = vadd.f32 %v4004, %v4064
      %v4135 = vadd.f32 %v4005, %v4066
      %v4136 = vadd.f32 %v4006, %v4068
      %v4137 = vadd.f32 %v4007, %v4070
      %v4138 = vadd.f32 %v4008, %v4072
      %v4139 = vadd.f32 %v4009, %v4074
      %v4140 = vadd.f32 %v4010, %v4076
      %v4142 = vrot.slane %v3525, 1
      %v4143 = vrot.slane %v3528, 1
      %v4144 = vsel %vm977, %v4142, %v4143
      %v4145 = vrot.slane %v3533, 1
      %v4146 = vsel %vm977, %v4143, %v4145
      %4147 = vrot.lane.b32.xlu0 %v3602, 112
      %v4148 = vpop.permute.xlu0 %4147
      %4149 = vrot.lane.b32.xlu0 %v3604, 112
      %v4150 = vpop.permute.xlu0 %4149
      %4151 = vrot.lane.b32.xlu0 %v3607, 112
      %v4152 = vpop.permute.xlu0 %4151
      %4153 = vrot.lane.b32.xlu0 %v3609, 112
      %v4154 = vpop.permute.xlu0 %4153
      %4155 = vrot.lane.b32.xlu0 %v3612, 112
      %v4156 = vpop.permute.xlu0 %4155
      %4157 = vrot.lane.b32.xlu0 %v3614, 112
      %v4158 = vpop.permute.xlu0 %4157
      %4159 = vrot.lane.b32.xlu0 %v3617, 112
      %v4160 = vpop.permute.xlu0 %4159
      %4161 = vrot.lane.b32.xlu0 %v3619, 112
      %v4162 = vpop.permute.xlu0 %4161
      %4163 = vrot.lane.b32.xlu0 %v3622, 112
      %v4164 = vpop.permute.xlu0 %4163
      %4165 = vrot.lane.b32.xlu0 %v3624, 112
      %v4166 = vpop.permute.xlu0 %4165
      %4167 = vrot.lane.b32.xlu0 %v3627, 112
      %v4168 = vpop.permute.xlu0 %4167
      %4169 = vrot.lane.b32.xlu0 %v3629, 112
      %v4170 = vpop.permute.xlu0 %4169
      %4171 = vrot.lane.b32.xlu0 %v3632, 112
      %v4172 = vpop.permute.xlu0 %4171
      %4173 = vrot.lane.b32.xlu0 %v3634, 112
      %v4174 = vpop.permute.xlu0 %4173
      %4175 = vrot.lane.b32.xlu0 %v3637, 112
      %v4176 = vpop.permute.xlu0 %4175
      %4177 = vrot.lane.b32.xlu0 %v3639, 112
      %v4178 = vpop.permute.xlu0 %4177
      %4179 = vrot.lane.b32.xlu0 %v3642, 112
      %v4180 = vpop.permute.xlu0 %4179
      %4181 = vrot.lane.b32.xlu0 %v3644, 112
      %v4182 = vpop.permute.xlu0 %4181
      %4183 = vrot.lane.b32.xlu0 %v3647, 112
      %v4184 = vpop.permute.xlu0 %4183
      %4185 = vrot.lane.b32.xlu0 %v3649, 112
      %v4186 = vpop.permute.xlu0 %4185
      %4187 = vrot.lane.b32.xlu0 %v3652, 112
      %v4188 = vpop.permute.xlu0 %4187
      %4189 = vrot.lane.b32.xlu0 %v3654, 112
      %v4190 = vpop.permute.xlu0 %4189
      %4191 = vrot.lane.b32.xlu0 %v3657, 112
      %v4192 = vpop.permute.xlu0 %4191
      %4193 = vrot.lane.b32.xlu0 %v3659, 112
      %v4194 = vpop.permute.xlu0 %4193
      %4195 = vrot.lane.b32.xlu0 %v3662, 112
      %v4196 = vpop.permute.xlu0 %4195
      %4197 = vrot.lane.b32.xlu0 %v3664, 112
      %v4198 = vpop.permute.xlu0 %4197
      %4199 = vrot.lane.b32.xlu0 %v3667, 112
      %v4200 = vpop.permute.xlu0 %4199
      %4201 = vrot.lane.b32.xlu0 %v3669, 112
      %v4202 = vpop.permute.xlu0 %4201
      %4203 = vrot.lane.b32.xlu0 %v3672, 112
      %v4204 = vpop.permute.xlu0 %4203
      %4205 = vrot.lane.b32.xlu0 %v3674, 112
      %v4206 = vpop.permute.xlu0 %4205
      %4207 = vrot.lane.b32.xlu0 %v4144, 112
      %v4208 = vpop.permute.xlu0 %4207
      %4209 = vrot.lane.b32.xlu0 %v4146, 112
      %v4210 = vpop.permute.xlu0 %4209
      %v4243 = vadd.f32 %v4109, %v4148
      %v4244 = vadd.f32 %v4110, %v4150
      %v4245 = vadd.f32 %v4111, %v4152
      %v4246 = vadd.f32 %v4112, %v4154
      %v4247 = vadd.f32 %v4113, %v4156
      %v4248 = vadd.f32 %v4114, %v4158
      %v4249 = vadd.f32 %v4115, %v4160
      %v4250 = vadd.f32 %v4116, %v4162
      %v4251 = vadd.f32 %v4117, %v4164
      %v4252 = vadd.f32 %v4118, %v4166
      %v4253 = vadd.f32 %v4119, %v4168
      %v4254 = vadd.f32 %v4120, %v4170
      %v4255 = vadd.f32 %v4121, %v4172
      %v4256 = vadd.f32 %v4122, %v4174
      %v4257 = vadd.f32 %v4123, %v4176
      %v4258 = vadd.f32 %v4124, %v4178
      %v4259 = vadd.f32 %v4125, %v4180
      %v4260 = vadd.f32 %v4126, %v4182
      %v4261 = vadd.f32 %v4127, %v4184
      %v4262 = vadd.f32 %v4128, %v4186
      %v4263 = vadd.f32 %v4129, %v4188
      %v4264 = vadd.f32 %v4130, %v4190
      %v4265 = vadd.f32 %v4131, %v4192
      %v4266 = vadd.f32 %v4132, %v4194
      %v4267 = vadd.f32 %v4133, %v4196
      %v4268 = vadd.f32 %v4134, %v4198
      %v4269 = vadd.f32 %v4135, %v4200
      %v4270 = vadd.f32 %v4136, %v4202
      %v4271 = vadd.f32 %v4137, %v4204
      %v4272 = vadd.f32 %v4138, %v4206
      %v4273 = vadd.f32 %v4139, %v4208
      %v4274 = vadd.f32 %v4140, %v4210
      %v4275 = vrot.slane %v3525, 2
      %v4276 = vrot.slane %v3528, 2
      %v4277 = vsel %vm1320, %v4275, %v4276
      %v4278 = vrot.slane %v3533, 2
      %v4279 = vsel %vm1320, %v4276, %v4278
      %4280 = vrot.lane.b32.xlu0 %v3810, 108
      %v4281 = vpop.permute.xlu0 %4280
      %4282 = vrot.lane.b32.xlu0 %v3812, 108
      %v4283 = vpop.permute.xlu0 %4282
      %4284 = vrot.lane.b32.xlu0 %v3815, 108
      %v4285 = vpop.permute.xlu0 %4284
      %4286 = vrot.lane.b32.xlu0 %v3817, 108
      %v4287 = vpop.permute.xlu0 %4286
      %4288 = vrot.lane.b32.xlu0 %v3820, 108
      %v4289 = vpop.permute.xlu0 %4288
      %4290 = vrot.lane.b32.xlu0 %v3822, 108
      %v4291 = vpop.permute.xlu0 %4290
      %4292 = vrot.lane.b32.xlu0 %v3825, 108
      %v4293 = vpop.permute.xlu0 %4292
      %4294 = vrot.lane.b32.xlu0 %v3827, 108
      %v4295 = vpop.permute.xlu0 %4294
      %4296 = vrot.lane.b32.xlu0 %v3830, 108
      %v4297 = vpop.permute.xlu0 %4296
      %4298 = vrot.lane.b32.xlu0 %v3832, 108
      %v4299 = vpop.permute.xlu0 %4298
      %4300 = vrot.lane.b32.xlu0 %v3835, 108
      %v4301 = vpop.permute.xlu0 %4300
      %4302 = vrot.lane.b32.xlu0 %v3837, 108
      %v4303 = vpop.permute.xlu0 %4302
      %4304 = vrot.lane.b32.xlu0 %v3840, 108
      %v4305 = vpop.permute.xlu0 %4304
      %4306 = vrot.lane.b32.xlu0 %v3842, 108
      %v4307 = vpop.permute.xlu0 %4306
      %4308 = vrot.lane.b32.xlu0 %v3845, 108
      %v4309 = vpop.permute.xlu0 %4308
      %4310 = vrot.lane.b32.xlu0 %v3847, 108
      %v4311 = vpop.permute.xlu0 %4310
      %4312 = vrot.lane.b32.xlu0 %v3850, 108
      %v4313 = vpop.permute.xlu0 %4312
      %4314 = vrot.lane.b32.xlu0 %v3852, 108
      %v4315 = vpop.permute.xlu0 %4314
      %4316 = vrot.lane.b32.xlu0 %v3855, 108
      %v4317 = vpop.permute.xlu0 %4316
      %4318 = vrot.lane.b32.xlu0 %v3857, 108
      %v4319 = vpop.permute.xlu0 %4318
      %4320 = vrot.lane.b32.xlu0 %v3860, 108
      %v4321 = vpop.permute.xlu0 %4320
      %4322 = vrot.lane.b32.xlu0 %v3862, 108
      %v4323 = vpop.permute.xlu0 %4322
      %4324 = vrot.lane.b32.xlu0 %v3865, 108
      %v4325 = vpop.permute.xlu0 %4324
      %4326 = vrot.lane.b32.xlu0 %v3867, 108
      %v4327 = vpop.permute.xlu0 %4326
      %4328 = vrot.lane.b32.xlu0 %v3870, 108
      %v4329 = vpop.permute.xlu0 %4328
      %4330 = vrot.lane.b32.xlu0 %v3872, 108
      %v4331 = vpop.permute.xlu0 %4330
      %4332 = vrot.lane.b32.xlu0 %v3875, 108
      %v4333 = vpop.permute.xlu0 %4332
      %4334 = vrot.lane.b32.xlu0 %v3877, 108
      %v4335 = vpop.permute.xlu0 %4334
      %4336 = vrot.lane.b32.xlu0 %v3880, 108
      %v4337 = vpop.permute.xlu0 %4336
      %4338 = vrot.lane.b32.xlu0 %v3882, 108
      %v4339 = vpop.permute.xlu0 %4338
      %4340 = vrot.lane.b32.xlu0 %v4277, 108
      %v4341 = vpop.permute.xlu0 %4340
      %4342 = vrot.lane.b32.xlu0 %v4279, 108
      %v4343 = vpop.permute.xlu0 %4342
      %v4376 = vadd.f32 %v4243, %v4281
      %v4377 = vadd.f32 %v4244, %v4283
      %v4378 = vadd.f32 %v4245, %v4285
      %v4379 = vadd.f32 %v4246, %v4287
      %v4380 = vadd.f32 %v4247, %v4289
      %v4381 = vadd.f32 %v4248, %v4291
      %v4382 = vadd.f32 %v4249, %v4293
      %v4383 = vadd.f32 %v4250, %v4295
      %v4384 = vadd.f32 %v4251, %v4297
      %v4385 = vadd.f32 %v4252, %v4299
      %v4386 = vadd.f32 %v4253, %v4301
      %v4387 = vadd.f32 %v4254, %v4303
      %v4388 = vadd.f32 %v4255, %v4305
      %v4389 = vadd.f32 %v4256, %v4307
      %v4390 = vadd.f32 %v4257, %v4309
      %v4391 = vadd.f32 %v4258, %v4311
      %v4392 = vadd.f32 %v4259, %v4313
      %v4393 = vadd.f32 %v4260, %v4315
      %v4394 = vadd.f32 %v4261, %v4317
      %v4395 = vadd.f32 %v4262, %v4319
      %v4396 = vadd.f32 %v4263, %v4321
      %v4397 = vadd.f32 %v4264, %v4323
      %v4398 = vadd.f32 %v4265, %v4325
      %v4399 = vadd.f32 %v4266, %v4327
      %v4400 = vadd.f32 %v4267, %v4329
      %v4401 = vadd.f32 %v4268, %v4331
      %v4402 = vadd.f32 %v4269, %v4333
      %v4403 = vadd.f32 %v4270, %v4335
      %v4404 = vadd.f32 %v4271, %v4337
      %v4405 = vadd.f32 %v4272, %v4339
      %v4406 = vadd.f32 %v4273, %v4341
      %v4407 = vadd.f32 %v4274, %v4343
      %4410 = vrot.lane.b32.xlu0 %v3357, 104
      %v4411 = vpop.permute.xlu0 %4410
      %4412 = vrot.lane.b32.xlu0 %v3360, 104
      %v4413 = vpop.permute.xlu0 %4412
      %4414 = vrot.lane.b32.xlu0 %v3368, 104
      %v4415 = vpop.permute.xlu0 %4414
      %4416 = vrot.lane.b32.xlu0 %v3373, 104
      %v4417 = vpop.permute.xlu0 %4416
      %4418 = vrot.lane.b32.xlu0 %v3381, 104
      %v4419 = vpop.permute.xlu0 %4418
      %4420 = vrot.lane.b32.xlu0 %v3384, 104
      %v4421 = vpop.permute.xlu0 %4420
      %4422 = vrot.lane.b32.xlu0 %v3392, 104
      %v4423 = vpop.permute.xlu0 %4422
      %4424 = vrot.lane.b32.xlu0 %v3397, 104
      %v4425 = vpop.permute.xlu0 %4424
      %4426 = vrot.lane.b32.xlu0 %v3405, 104
      %v4427 = vpop.permute.xlu0 %4426
      %4428 = vrot.lane.b32.xlu0 %v3408, 104
      %v4429 = vpop.permute.xlu0 %4428
      %4430 = vrot.lane.b32.xlu0 %v3416, 104
      %v4431 = vpop.permute.xlu0 %4430
      %4432 = vrot.lane.b32.xlu0 %v3421, 104
      %v4433 = vpop.permute.xlu0 %4432
      %4434 = vrot.lane.b32.xlu0 %v3429, 104
      %v4435 = vpop.permute.xlu0 %4434
      %4436 = vrot.lane.b32.xlu0 %v3432, 104
      %v4437 = vpop.permute.xlu0 %4436
      %4438 = vrot.lane.b32.xlu0 %v3440, 104
      %v4439 = vpop.permute.xlu0 %4438
      %4440 = vrot.lane.b32.xlu0 %v3445, 104
      %v4441 = vpop.permute.xlu0 %4440
      %4442 = vrot.lane.b32.xlu0 %v3453, 104
      %v4443 = vpop.permute.xlu0 %4442
      %4444 = vrot.lane.b32.xlu0 %v3456, 104
      %v4445 = vpop.permute.xlu0 %4444
      %4446 = vrot.lane.b32.xlu0 %v3464, 104
      %v4447 = vpop.permute.xlu0 %4446
      %4448 = vrot.lane.b32.xlu0 %v3469, 104
      %v4449 = vpop.permute.xlu0 %4448
      %4450 = vrot.lane.b32.xlu0 %v3477, 104
      %v4451 = vpop.permute.xlu0 %4450
      %4452 = vrot.lane.b32.xlu0 %v3480, 104
      %v4453 = vpop.permute.xlu0 %4452
      %4454 = vrot.lane.b32.xlu0 %v3488, 104
      %v4455 = vpop.permute.xlu0 %4454
      %4456 = vrot.lane.b32.xlu0 %v3493, 104
      %v4457 = vpop.permute.xlu0 %4456
      %4458 = vrot.lane.b32.xlu0 %v3501, 104
      %v4459 = vpop.permute.xlu0 %4458
      %4460 = vrot.lane.b32.xlu0 %v3504, 104
      %v4461 = vpop.permute.xlu0 %4460
      %4462 = vrot.lane.b32.xlu0 %v3512, 104
      %v4463 = vpop.permute.xlu0 %4462
      %4464 = vrot.lane.b32.xlu0 %v3517, 104
      %v4465 = vpop.permute.xlu0 %4464
      %4466 = vrot.lane.b32.xlu0 %v3525, 104
      %v4467 = vpop.permute.xlu0 %4466
      %4468 = vrot.lane.b32.xlu0 %v3528, 104
      %v4469 = vpop.permute.xlu0 %4468
      %4470 = vrot.lane.b32.xlu0 %v3536, 104
      %v4471 = vpop.permute.xlu0 %4470
      %4472 = vrot.lane.b32.xlu0 %v3541, 104
      %v4473 = vpop.permute.xlu0 %4472
      %v4506 = vadd.f32 %v4376, %v4411
      %v4507 = vadd.f32 %v4377, %v4413
      %v4508 = vadd.f32 %v4378, %v4415
      %v4509 = vadd.f32 %v4379, %v4417
      %v4510 = vadd.f32 %v4380, %v4419
      %v4511 = vadd.f32 %v4381, %v4421
      %v4512 = vadd.f32 %v4382, %v4423
      %v4513 = vadd.f32 %v4383, %v4425
      %v4514 = vadd.f32 %v4384, %v4427
      %v4515 = vadd.f32 %v4385, %v4429
      %v4516 = vadd.f32 %v4386, %v4431
      %v4517 = vadd.f32 %v4387, %v4433
      %v4518 = vadd.f32 %v4388, %v4435
      %v4519 = vadd.f32 %v4389, %v4437
      %v4520 = vadd.f32 %v4390, %v4439
      %v4521 = vadd.f32 %v4391, %v4441
      %v4522 = vadd.f32 %v4392, %v4443
      %v4523 = vadd.f32 %v4393, %v4445
      %v4524 = vadd.f32 %v4394, %v4447
      %v4525 = vadd.f32 %v4395, %v4449
      %v4526 = vadd.f32 %v4396, %v4451
      %v4527 = vadd.f32 %v4397, %v4453
      %v4528 = vadd.f32 %v4398, %v4455
      %v4529 = vadd.f32 %v4399, %v4457
      %v4530 = vadd.f32 %v4400, %v4459
      %v4531 = vadd.f32 %v4401, %v4461
      %v4532 = vadd.f32 %v4402, %v4463
      %v4533 = vadd.f32 %v4403, %v4465
      %v4534 = vadd.f32 %v4404, %v4467
      %v4535 = vadd.f32 %v4405, %v4469
      %v4536 = vadd.f32 %v4406, %v4471
      %v4537 = vadd.f32 %v4407, %v4473
      %v4539 = vrot.slane %v3536, 1
      %v4540 = vrot.slane %v3541, 1
      %v4541 = vsel %vm977, %v4539, %v4540
      %v4542 = vrot.slane %v3544, 1
      %v4543 = vsel %vm977, %v4540, %v4542
      %4544 = vrot.lane.b32.xlu0 %v3607, 100
      %v4545 = vpop.permute.xlu0 %4544
      %4546 = vrot.lane.b32.xlu0 %v3609, 100
      %v4547 = vpop.permute.xlu0 %4546
      %4548 = vrot.lane.b32.xlu0 %v3612, 100
      %v4549 = vpop.permute.xlu0 %4548
      %4550 = vrot.lane.b32.xlu0 %v3614, 100
      %v4551 = vpop.permute.xlu0 %4550
      %4552 = vrot.lane.b32.xlu0 %v3617, 100
      %v4553 = vpop.permute.xlu0 %4552
      %4554 = vrot.lane.b32.xlu0 %v3619, 100
      %v4555 = vpop.permute.xlu0 %4554
      %4556 = vrot.lane.b32.xlu0 %v3622, 100
      %v4557 = vpop.permute.xlu0 %4556
      %4558 = vrot.lane.b32.xlu0 %v3624, 100
      %v4559 = vpop.permute.xlu0 %4558
      %4560 = vrot.lane.b32.xlu0 %v3627, 100
      %v4561 = vpop.permute.xlu0 %4560
      %4562 = vrot.lane.b32.xlu0 %v3629, 100
      %v4563 = vpop.permute.xlu0 %4562
      %4564 = vrot.lane.b32.xlu0 %v3632, 100
      %v4565 = vpop.permute.xlu0 %4564
      %4566 = vrot.lane.b32.xlu0 %v3634, 100
      %v4567 = vpop.permute.xlu0 %4566
      %4568 = vrot.lane.b32.xlu0 %v3637, 100
      %v4569 = vpop.permute.xlu0 %4568
      %4570 = vrot.lane.b32.xlu0 %v3639, 100
      %v4571 = vpop.permute.xlu0 %4570
      %4572 = vrot.lane.b32.xlu0 %v3642, 100
      %v4573 = vpop.permute.xlu0 %4572
      %4574 = vrot.lane.b32.xlu0 %v3644, 100
      %v4575 = vpop.permute.xlu0 %4574
      %4576 = vrot.lane.b32.xlu0 %v3647, 100
      %v4577 = vpop.permute.xlu0 %4576
      %4578 = vrot.lane.b32.xlu0 %v3649, 100
      %v4579 = vpop.permute.xlu0 %4578
      %4580 = vrot.lane.b32.xlu0 %v3652, 100
      %v4581 = vpop.permute.xlu0 %4580
      %4582 = vrot.lane.b32.xlu0 %v3654, 100
      %v4583 = vpop.permute.xlu0 %4582
      %4584 = vrot.lane.b32.xlu0 %v3657, 100
      %v4585 = vpop.permute.xlu0 %4584
      %4586 = vrot.lane.b32.xlu0 %v3659, 100
      %v4587 = vpop.permute.xlu0 %4586
      %4588 = vrot.lane.b32.xlu0 %v3662, 100
      %v4589 = vpop.permute.xlu0 %4588
      %4590 = vrot.lane.b32.xlu0 %v3664, 100
      %v4591 = vpop.permute.xlu0 %4590
      %4592 = vrot.lane.b32.xlu0 %v3667, 100
      %v4593 = vpop.permute.xlu0 %4592
      %4594 = vrot.lane.b32.xlu0 %v3669, 100
      %v4595 = vpop.permute.xlu0 %4594
      %4596 = vrot.lane.b32.xlu0 %v3672, 100
      %v4597 = vpop.permute.xlu0 %4596
      %4598 = vrot.lane.b32.xlu0 %v3674, 100
      %v4599 = vpop.permute.xlu0 %4598
      %4600 = vrot.lane.b32.xlu0 %v4144, 100
      %v4601 = vpop.permute.xlu0 %4600
      %4602 = vrot.lane.b32.xlu0 %v4146, 100
      %v4603 = vpop.permute.xlu0 %4602
      %4604 = vrot.lane.b32.xlu0 %v4541, 100
      %v4605 = vpop.permute.xlu0 %4604
      %4606 = vrot.lane.b32.xlu0 %v4543, 100
      %v4607 = vpop.permute.xlu0 %4606
      %v4640 = vadd.f32 %v4506, %v4545
      %v4641 = vadd.f32 %v4507, %v4547
      %v4642 = vadd.f32 %v4508, %v4549
      %v4643 = vadd.f32 %v4509, %v4551
      %v4644 = vadd.f32 %v4510, %v4553
      %v4645 = vadd.f32 %v4511, %v4555
      %v4646 = vadd.f32 %v4512, %v4557
      %v4647 = vadd.f32 %v4513, %v4559
      %v4648 = vadd.f32 %v4514, %v4561
      %v4649 = vadd.f32 %v4515, %v4563
      %v4650 = vadd.f32 %v4516, %v4565
      %v4651 = vadd.f32 %v4517, %v4567
      %v4652 = vadd.f32 %v4518, %v4569
      %v4653 = vadd.f32 %v4519, %v4571
      %v4654 = vadd.f32 %v4520, %v4573
      %v4655 = vadd.f32 %v4521, %v4575
      %v4656 = vadd.f32 %v4522, %v4577
      %v4657 = vadd.f32 %v4523, %v4579
      %v4658 = vadd.f32 %v4524, %v4581
      %v4659 = vadd.f32 %v4525, %v4583
      %v4660 = vadd.f32 %v4526, %v4585
      %v4661 = vadd.f32 %v4527, %v4587
      %v4662 = vadd.f32 %v4528, %v4589
      %v4663 = vadd.f32 %v4529, %v4591
      %v4664 = vadd.f32 %v4530, %v4593
      %v4665 = vadd.f32 %v4531, %v4595
      %v4666 = vadd.f32 %v4532, %v4597
      %v4667 = vadd.f32 %v4533, %v4599
      %v4668 = vadd.f32 %v4534, %v4601
      %v4669 = vadd.f32 %v4535, %v4603
      %v4670 = vadd.f32 %v4536, %v4605
      %v4671 = vadd.f32 %v4537, %v4607
      %v4672 = vrot.slane %v3536, 2
      %v4673 = vrot.slane %v3541, 2
      %v4674 = vsel %vm1320, %v4672, %v4673
      %v4675 = vrot.slane %v3544, 2
      %v4676 = vsel %vm1320, %v4673, %v4675
      %4677 = vrot.lane.b32.xlu0 %v3815, 96
      %v4678 = vpop.permute.xlu0 %4677
      %4679 = vrot.lane.b32.xlu0 %v3817, 96
      %v4680 = vpop.permute.xlu0 %4679
      %4681 = vrot.lane.b32.xlu0 %v3820, 96
      %v4682 = vpop.permute.xlu0 %4681
      %4683 = vrot.lane.b32.xlu0 %v3822, 96
      %v4684 = vpop.permute.xlu0 %4683
      %4685 = vrot.lane.b32.xlu0 %v3825, 96
      %v4686 = vpop.permute.xlu0 %4685
      %4687 = vrot.lane.b32.xlu0 %v3827, 96
      %v4688 = vpop.permute.xlu0 %4687
      %4689 = vrot.lane.b32.xlu0 %v3830, 96
      %v4690 = vpop.permute.xlu0 %4689
      %4691 = vrot.lane.b32.xlu0 %v3832, 96
      %v4692 = vpop.permute.xlu0 %4691
      %4693 = vrot.lane.b32.xlu0 %v3835, 96
      %v4694 = vpop.permute.xlu0 %4693
      %4695 = vrot.lane.b32.xlu0 %v3837, 96
      %v4696 = vpop.permute.xlu0 %4695
      %4697 = vrot.lane.b32.xlu0 %v3840, 96
      %v4698 = vpop.permute.xlu0 %4697
      %4699 = vrot.lane.b32.xlu0 %v3842, 96
      %v4700 = vpop.permute.xlu0 %4699
      %4701 = vrot.lane.b32.xlu0 %v3845, 96
      %v4702 = vpop.permute.xlu0 %4701
      %4703 = vrot.lane.b32.xlu0 %v3847, 96
      %v4704 = vpop.permute.xlu0 %4703
      %4705 = vrot.lane.b32.xlu0 %v3850, 96
      %v4706 = vpop.permute.xlu0 %4705
      %4707 = vrot.lane.b32.xlu0 %v3852, 96
      %v4708 = vpop.permute.xlu0 %4707
      %4709 = vrot.lane.b32.xlu0 %v3855, 96
      %v4710 = vpop.permute.xlu0 %4709
      %4711 = vrot.lane.b32.xlu0 %v3857, 96
      %v4712 = vpop.permute.xlu0 %4711
      %4713 = vrot.lane.b32.xlu0 %v3860, 96
      %v4714 = vpop.permute.xlu0 %4713
      %4715 = vrot.lane.b32.xlu0 %v3862, 96
      %v4716 = vpop.permute.xlu0 %4715
      %4717 = vrot.lane.b32.xlu0 %v3865, 96
      %v4718 = vpop.permute.xlu0 %4717
      %4719 = vrot.lane.b32.xlu0 %v3867, 96
      %v4720 = vpop.permute.xlu0 %4719
      %4721 = vrot.lane.b32.xlu0 %v3870, 96
      %v4722 = vpop.permute.xlu0 %4721
      %4723 = vrot.lane.b32.xlu0 %v3872, 96
      %v4724 = vpop.permute.xlu0 %4723
      %4725 = vrot.lane.b32.xlu0 %v3875, 96
      %v4726 = vpop.permute.xlu0 %4725
      %4727 = vrot.lane.b32.xlu0 %v3877, 96
      %v4728 = vpop.permute.xlu0 %4727
      %4729 = vrot.lane.b32.xlu0 %v3880, 96
      %v4730 = vpop.permute.xlu0 %4729
      %4731 = vrot.lane.b32.xlu0 %v3882, 96
      %v4732 = vpop.permute.xlu0 %4731
      %4733 = vrot.lane.b32.xlu0 %v4277, 96
      %v4734 = vpop.permute.xlu0 %4733
      %4735 = vrot.lane.b32.xlu0 %v4279, 96
      %v4736 = vpop.permute.xlu0 %4735
      %4737 = vrot.lane.b32.xlu0 %v4674, 96
      %v4738 = vpop.permute.xlu0 %4737
      %4739 = vrot.lane.b32.xlu0 %v4676, 96
      %v4740 = vpop.permute.xlu0 %4739
      %v4773 = vadd.f32 %v4640, %v4678
      %v4774 = vadd.f32 %v4641, %v4680
      %v4775 = vadd.f32 %v4642, %v4682
      %v4776 = vadd.f32 %v4643, %v4684
      %v4777 = vadd.f32 %v4644, %v4686
      %v4778 = vadd.f32 %v4645, %v4688
      %v4779 = vadd.f32 %v4646, %v4690
      %v4780 = vadd.f32 %v4647, %v4692
      %v4781 = vadd.f32 %v4648, %v4694
      %v4782 = vadd.f32 %v4649, %v4696
      %v4783 = vadd.f32 %v4650, %v4698
      %v4784 = vadd.f32 %v4651, %v4700
      %v4785 = vadd.f32 %v4652, %v4702
      %v4786 = vadd.f32 %v4653, %v4704
      %v4787 = vadd.f32 %v4654, %v4706
      %v4788 = vadd.f32 %v4655, %v4708
      %v4789 = vadd.f32 %v4656, %v4710
      %v4790 = vadd.f32 %v4657, %v4712
      %v4791 = vadd.f32 %v4658, %v4714
      %v4792 = vadd.f32 %v4659, %v4716
      %v4793 = vadd.f32 %v4660, %v4718
      %v4794 = vadd.f32 %v4661, %v4720
      %v4795 = vadd.f32 %v4662, %v4722
      %v4796 = vadd.f32 %v4663, %v4724
      %v4797 = vadd.f32 %v4664, %v4726
      %v4798 = vadd.f32 %v4665, %v4728
      %v4799 = vadd.f32 %v4666, %v4730
      %v4800 = vadd.f32 %v4667, %v4732
      %v4801 = vadd.f32 %v4668, %v4734
      %v4802 = vadd.f32 %v4669, %v4736
      %v4803 = vadd.f32 %v4670, %v4738
      %v4804 = vadd.f32 %v4671, %v4740
      %v4805 = vld [vmem:[%s4] sm:$0x1]
      %v4807 = vlaneseq
      %v4808 = vshrl.u32 %v4807, 7
      %v4809 = vsub.s32 0, %v4808
      %v4810 = vrot.slane %v4805, %v4809
      %v4812 = vadd.f32 %v4773, %v4810
      %v4813 = vadd.f32 %v4774, %v4810
      %v4814 = vadd.f32 %v4775, %v4810
      %v4815 = vadd.f32 %v4776, %v4810
      %v4816 = vadd.f32 %v4777, %v4810
      %v4817 = vadd.f32 %v4778, %v4810
      %v4818 = vadd.f32 %v4779, %v4810
      %v4819 = vadd.f32 %v4780, %v4810
      %v4820 = vadd.f32 %v4781, %v4810
      %v4821 = vadd.f32 %v4782, %v4810
      %v4822 = vadd.f32 %v4783, %v4810
      %v4823 = vadd.f32 %v4784, %v4810
      %v4824 = vadd.f32 %v4785, %v4810
      %v4825 = vadd.f32 %v4786, %v4810
      %v4826 = vadd.f32 %v4787, %v4810
      %v4827 = vadd.f32 %v4788, %v4810
      %v4828 = vadd.f32 %v4789, %v4810
      %v4829 = vadd.f32 %v4790, %v4810
      %v4830 = vadd.f32 %v4791, %v4810
      %v4831 = vadd.f32 %v4792, %v4810
      %v4832 = vadd.f32 %v4793, %v4810
      %v4833 = vadd.f32 %v4794, %v4810
      %v4834 = vadd.f32 %v4795, %v4810
      %v4835 = vadd.f32 %v4796, %v4810
      %v4836 = vadd.f32 %v4797, %v4810
      %v4837 = vadd.f32 %v4798, %v4810
      %v4838 = vadd.f32 %v4799, %v4810
      %v4839 = vadd.f32 %v4800, %v4810
      %v4840 = vadd.f32 %v4801, %v4810
      %v4841 = vadd.f32 %v4802, %v4810
      %v4842 = vadd.f32 %v4803, %v4810
      %v4843 = vadd.f32 %v4804, %v4810
      %v4876 = vrot.slane %v4812, 6
      %v4877 = vrot.slane %v4813, 6
      %v4878 = vsel %vm548, %v4876, %v4877
      %v4879 = vrot.slane %v4814, 6
      %v4880 = vrot.slane %v4815, 6
      %v4881 = vsel %vm548, %v4879, %v4880
      %v4882 = vrot.slane %v4816, 6
      %v4883 = vrot.slane %v4817, 6
      %v4884 = vsel %vm548, %v4882, %v4883
      %v4885 = vrot.slane %v4818, 6
      %v4886 = vrot.slane %v4819, 6
      %v4887 = vsel %vm548, %v4885, %v4886
      %v4888 = vrot.slane %v4820, 6
      %v4889 = vrot.slane %v4821, 6
      %v4890 = vsel %vm548, %v4888, %v4889
      %v4891 = vrot.slane %v4822, 6
      %v4892 = vrot.slane %v4823, 6
      %v4893 = vsel %vm548, %v4891, %v4892
      %v4894 = vrot.slane %v4824, 6
      %v4895 = vrot.slane %v4825, 6
      %v4896 = vsel %vm548, %v4894, %v4895
      %v4897 = vrot.slane %v4826, 6
      %v4898 = vrot.slane %v4827, 6
      %v4899 = vsel %vm548, %v4897, %v4898
      %v4900 = vrot.slane %v4828, 6
      %v4901 = vrot.slane %v4829, 6
      %v4902 = vsel %vm548, %v4900, %v4901
      %v4903 = vrot.slane %v4830, 6
      %v4904 = vrot.slane %v4831, 6
      %v4905 = vsel %vm548, %v4903, %v4904
      %v4906 = vrot.slane %v4832, 6
      %v4907 = vrot.slane %v4833, 6
      %v4908 = vsel %vm548, %v4906, %v4907
      %v4909 = vrot.slane %v4834, 6
      %v4910 = vrot.slane %v4835, 6
      %v4911 = vsel %vm548, %v4909, %v4910
      %v4912 = vrot.slane %v4836, 6
      %v4913 = vrot.slane %v4837, 6
      %v4914 = vsel %vm548, %v4912, %v4913
      %v4915 = vrot.slane %v4838, 6
      %v4916 = vrot.slane %v4839, 6
      %v4917 = vsel %vm548, %v4915, %v4916
      %v4918 = vrot.slane %v4840, 6
      %v4919 = vrot.slane %v4841, 6
      %v4920 = vsel %vm548, %v4918, %v4919
      %v4921 = vrot.slane %v4842, 6
      %v4922 = vrot.slane %v4843, 6
      %v4923 = vsel %vm548, %v4921, %v4922
      %v4972 = vadd.f32 %v234, %v4876
      %v4973 = vadd.f32 %v235, %v4878
      %v4974 = vadd.f32 %v236, %v4877
      %v4975 = vadd.f32 %v238, %v4879
      %v4976 = vadd.f32 %v239, %v4881
      %v4977 = vadd.f32 %v240, %v4880
      %v4978 = vadd.f32 %v242, %v4882
      %v4979 = vadd.f32 %v243, %v4884
      %v4980 = vadd.f32 %v244, %v4883
      %v4981 = vadd.f32 %v246, %v4885
      %v4982 = vadd.f32 %v247, %v4887
      %v4983 = vadd.f32 %v248, %v4886
      %v4984 = vadd.f32 %v250, %v4888
      %v4985 = vadd.f32 %v251, %v4890
      %v4986 = vadd.f32 %v252, %v4889
      %v4987 = vadd.f32 %v254, %v4891
      %v4988 = vadd.f32 %v255, %v4893
      %v4989 = vadd.f32 %v256, %v4892
      %v4990 = vadd.f32 %v258, %v4894
      %v4991 = vadd.f32 %v259, %v4896
      %v4992 = vadd.f32 %v260, %v4895
      %v4993 = vadd.f32 %v262, %v4897
      %v4994 = vadd.f32 %v263, %v4899
      %v4995 = vadd.f32 %v264, %v4898
      %v4996 = vadd.f32 %v266, %v4900
      %v4997 = vadd.f32 %v267, %v4902
      %v4998 = vadd.f32 %v268, %v4901
      %v4999 = vadd.f32 %v270, %v4903
      %v5000 = vadd.f32 %v271, %v4905
      %v5001 = vadd.f32 %v272, %v4904
      %v5002 = vadd.f32 %v274, %v4906
      %v5003 = vadd.f32 %v275, %v4908
      %v5004 = vadd.f32 %v276, %v4907
      %v5005 = vadd.f32 %v278, %v4909
      %v5006 = vadd.f32 %v279, %v4911
      %v5007 = vadd.f32 %v280, %v4910
      %v5008 = vadd.f32 %v282, %v4912
      %v5009 = vadd.f32 %v283, %v4914
      %v5010 = vadd.f32 %v284, %v4913
      %v5011 = vadd.f32 %v286, %v4915
      %v5012 = vadd.f32 %v287, %v4917
      %v5013 = vadd.f32 %v288, %v4916
      %v5014 = vadd.f32 %v290, %v4918
      %v5015 = vadd.f32 %v291, %v4920
      %v5016 = vadd.f32 %v292, %v4919
      %v5017 = vadd.f32 %v294, %v4921
      %v5018 = vadd.f32 %v295, %v4923
      %v5019 = vadd.f32 %v296, %v4922
      %vm5020 = vcmask 31746
      %5021 = vst.msk [vmem:[%s224 - $0x2] sm:$0xfc] %vm5020, %v4972
      %5022 = vst.msk [vmem:[%s224 + $0x6] sm:$0xff] %vm427, %v4973
      %vm5023 = vcmask 25600
      %5024 = vst.msk [vmem:[%s224 + $0xe] sm:$0x3] %vm5023, %v4974
      %5025 = vst.msk [vmem:[%s224 + $0xe] sm:$0xfc] %vm5020, %v4975
      %5026 = vst.msk [vmem:[%s224 + $0x16] sm:$0xff] %vm427, %v4976
      %5027 = vst.msk [vmem:[%s224 + $0x1e] sm:$0x3] %vm5023, %v4977
      %5028 = vst.msk [vmem:[%s224 + $0x1e] sm:$0xfc] %vm5020, %v4978
      %5029 = vst.msk [vmem:[%s224 + $0x26] sm:$0xff] %vm427, %v4979
      %5030 = vst.msk [vmem:[%s224 + $0x2e] sm:$0x3] %vm5023, %v4980
      %5031 = vst.msk [vmem:[%s224 + $0x2e] sm:$0xfc] %vm5020, %v4981
      %5032 = vst.msk [vmem:[%s224 + $0x36] sm:$0xff] %vm427, %v4982
      %5033 = vst.msk [vmem:[%s224 + $0x3e] sm:$0x3] %vm5023, %v4983
      %5034 = vst.msk [vmem:[%s224 + $0x3e] sm:$0xfc] %vm5020, %v4984
      %5035 = vst.msk [vmem:[%s224 + $0x46] sm:$0xff] %vm427, %v4985
      %5036 = vst.msk [vmem:[%s224 + $0x4e] sm:$0x3] %vm5023, %v4986
      %5037 = vst.msk [vmem:[%s224 + $0x4e] sm:$0xfc] %vm5020, %v4987
      %5038 = vst.msk [vmem:[%s224 + $0x56] sm:$0xff] %vm427, %v4988
      %5039 = vst.msk [vmem:[%s224 + $0x5e] sm:$0x3] %vm5023, %v4989
      %5040 = vst.msk [vmem:[%s224 + $0x5e] sm:$0xfc] %vm5020, %v4990
      %5041 = vst.msk [vmem:[%s224 + $0x66] sm:$0xff] %vm427, %v4991
      %5042 = vst.msk [vmem:[%s224 + $0x6e] sm:$0x3] %vm5023, %v4992
      %5043 = vst.msk [vmem:[%s224 + $0x6e] sm:$0xfc] %vm5020, %v4993
      %5044 = vst.msk [vmem:[%s224 + $0x76] sm:$0xff] %vm427, %v4994
      %5045 = vst.msk [vmem:[%s224 + $0x7e] sm:$0x3] %vm5023, %v4995
      %5046 = vst.msk [vmem:[%s224 + $0x7e] sm:$0xfc] %vm5020, %v4996
      %5047 = vst.msk [vmem:[%s224 + $0x86] sm:$0xff] %vm427, %v4997
      %5048 = vst.msk [vmem:[%s224 + $0x8e] sm:$0x3] %vm5023, %v4998
      %5049 = vst.msk [vmem:[%s224 + $0x8e] sm:$0xfc] %vm5020, %v4999
      %5050 = vst.msk [vmem:[%s224 + $0x96] sm:$0xff] %vm427, %v5000
      %5051 = vst.msk [vmem:[%s224 + $0x9e] sm:$0x3] %vm5023, %v5001
      %5052 = vst.msk [vmem:[%s224 + $0x9e] sm:$0xfc] %vm5020, %v5002
      %5053 = vst.msk [vmem:[%s224 + $0xa6] sm:$0xff] %vm427, %v5003
      %5054 = vst.msk [vmem:[%s224 + $0xae] sm:$0x3] %vm5023, %v5004
      %5055 = vst.msk [vmem:[%s224 + $0xae] sm:$0xfc] %vm5020, %v5005
      %5056 = vst.msk [vmem:[%s224 + $0xb6] sm:$0xff] %vm427, %v5006
      %5057 = vst.msk [vmem:[%s224 + $0xbe] sm:$0x3] %vm5023, %v5007
      %5058 = vst.msk [vmem:[%s224 + $0xbe] sm:$0xfc] %vm5020, %v5008
      %5059 = vst.msk [vmem:[%s224 + $0xc6] sm:$0xff] %vm427, %v5009
      %5060 = vst.msk [vmem:[%s224 + $0xce] sm:$0x3] %vm5023, %v5010
      %5061 = vst.msk [vmem:[%s224 + $0xce] sm:$0xfc] %vm5020, %v5011
      %5062 = vst.msk [vmem:[%s224 + $0xd6] sm:$0xff] %vm427, %v5012
      %5063 = vst.msk [vmem:[%s224 + $0xde] sm:$0x3] %vm5023, %v5013
      %5064 = vst.msk [vmem:[%s224 + $0xde] sm:$0xfc] %vm5020, %v5014
      %5065 = vst.msk [vmem:[%s224 + $0xe6] sm:$0xff] %vm427, %v5015
      %5066 = vst.msk [vmem:[%s224 + $0xee] sm:$0x3] %vm5023, %v5016
      %5067 = vst.msk [vmem:[%s224 + $0xee] sm:$0xfc] %vm5020, %v5017
      %5068 = vst.msk [vmem:[%s224 + $0xf6] sm:$0xff] %vm427, %v5018
      %5069 = vst.msk [vmem:[%s224 + $0xfe] sm:$0x3] %vm5023, %v5019
      %p5070 = scmp.lt.s32.totalorder %s16, 1
      %s5071 = scalar_select %p5070, %s16, 1
      %s5072 = smul.addr %s5071, 32
      %s5073 = smul.addr %s5072, 8
      %s5074 = scalar_lea.vmem %s5, %s5073
      // Predicated region
      $region41: #{tpu_custom_call.1} parent=39 // pred_check
        %p5075 = pneg %p144
      $region42: #{tpu_custom_call.1} parent=39 // pred_check_branch
        %5077 = sbr.rel (%p5075) target = $region44
      $region43: #{tpu_custom_call.1} parent=39 // pred_region
        _
      $region44: #{tpu_custom_call.1} parent=39 // pred_fallthru
        _
    $region40: #{tpu_custom_call.1} parent=5 // pred_fallthru
      _
    %p5078 = scmp.le.s32.totalorder 2, %s11
    // Predicated region
    $region45: #{tpu_custom_call.1} parent=5 // pred_check
      %p5079 = pneg %p5078
    $region46: #{tpu_custom_call.1} parent=5 // pred_check_branch
      %5081 = sbr.rel (%p5079) target = $region48
    $region47: #{tpu_custom_call.1} parent=5 // pred_region
      %s5082 = ssub.s32 %s11, 2
      // Predicated region
      $region49: #{tpu_custom_call.1} parent=47 // pred_check
        %p5083 = pneg %p150
      $region50: #{tpu_custom_call.1} parent=47 // pred_check_branch
        %5085 = sbr.rel (%p5083) target = $region52
      $region51: #{tpu_custom_call.1} parent=47 // pred_region
        %p5086 = scmp.lt.s32.totalorder %s17, 1
        %s5087 = scalar_select %p5086, %s17, 1
        %s5088 = smul.addr %s5087, 32
        %s5089 = smul.addr %s5088, 8
        %s5090 = scalar_lea.vmem %s5, %s5089
      $region52: #{tpu_custom_call.1} parent=47 // pred_fallthru
        _
    $region48: #{tpu_custom_call.1} parent=5 // pred_fallthru
      _
  $region6: #{tpu_custom_call.1} parent=0 // loop_footer
    %s15 = sadd.s32 1, %s11
  $region7: #{tpu_custom_call.1} parent=0 // loop_footer_branch
    %10 = sbr.rel target = $region3
  $region8: #{tpu_custom_call.1} parent=0 // loop_exit
    _

</llo_original>
